<compile_context>
chip_gen: v7x
topology: tpu7x:2x2x1
jax: 0.10.0
libtpu: 0.0.40
codegen_flags: <defaults>
</compile_context>

<pallas_src>
import functools
import operator

import jax
import jax.numpy as jnp
from jax.experimental import pallas as pl
from jax.experimental.pallas import tpu as pltpu

# ----------------------------- configuration --------------------------------
B = 2          # batch
S = 1          # decode step length
L = 2          # decoder layers
D = 64         # d_model
H = 4          # heads
DK = 16        # d_kv per head  (H * DK == D)
F = 128        # d_ff
V = 256        # vocab
SE = 8         # encoder sequence length
SP = 7         # cached self-attention length (new cache length = SP + S)

BS = B * S
HD = H * DK
SKV = SP + S


# ----------------------------- fused decoder-step kernel ---------------------

def _rms(x, w):
    """T5 LayerNorm: no mean subtraction, no bias.  x: [M, D] f32, w: [1, D]."""
    var = jnp.mean(x * x, axis=-1, keepdims=True)
    return x * jax.lax.rsqrt(var + 1e-6) * w


def _attend_all_heads(q_row, k_ld, v_ld, m_sum, m_exp, bias_col=None):
    """All-heads attention for one batch element, lane-dense layouts.

    q_row : [1, HD]   query for the single new token (heads concatenated)
    k_ld  : [T, HD]   keys,   k_ld[t, h*DK+d]
    v_ld  : [T, HD]   values, v_ld[t, h*DK+d]
    m_sum : [HD, H]   head segment-sum matrix (1 where lane belongs to head)
    m_exp : [H, HD]   head expand matrix (m_sum transposed)
    bias_col : [T, 1] additive bias per key position (or None)
    returns [1, HD].  T5 attention has no 1/sqrt(dk) scaling.
    """
    qk = k_ld * q_row                                                   # [T, HD] VPU
    s = jnp.dot(qk, m_sum, preferred_element_type=jnp.float32)          # [T, H]
    if bias_col is not None:
        s = s + bias_col
    s = s - jnp.max(s, axis=0, keepdims=True)
    e = jnp.exp(s)
    p = e * pl.reciprocal(jnp.sum(e, axis=0, keepdims=True), approx=True)  # [T, H]
    p_exp = jnp.dot(p, m_exp, preferred_element_type=jnp.float32)       # [T, HD]
    return jnp.sum(p_exp * v_ld, axis=0, keepdims=True)                 # [1, HD]


def _decoder_step_kernel(ids_ref, embed_ref, maskt_ref,
                         ln1_ref, ln2_ref, ln3_ref,
                         wqkv_ref, sao_ref, caq_ref, cao_ref,
                         wi_ref, wo_ref, lnf_ref, lmh_ref,
                         *rest):
    cache_refs = rest[:4 * L]                       # per layer: pk, pv, ck, cv (lane-dense)
    out_refs = rest[4 * L:4 * L + 1 + 2 * L]        # logits, (k_new, v_new) per layer
    (attn_scr,) = rest[4 * L + 1 + 2 * L:]

    logits_ref = out_refs[0]

    # ---- head segment-sum / expand matrices (built once, hoisted) ------------
    lane = jax.lax.broadcasted_iota(jnp.int32, (HD, H), 0)
    head = jax.lax.broadcasted_iota(jnp.int32, (HD, H), 1)
    m_sum = ((lane >= head * DK) & (lane < head * DK + DK)).astype(jnp.float32)
    head2 = jax.lax.broadcasted_iota(jnp.int32, (H, HD), 0)
    lane2 = jax.lax.broadcasted_iota(jnp.int32, (H, HD), 1)
    m_exp = ((lane2 >= head2 * DK) & (lane2 < head2 * DK + DK)).astype(jnp.float32)

    # ---- embedding gather: one one-hot compare + one MXU matmul --------------
    iota_v = jax.lax.broadcasted_iota(jnp.int32, (BS, V), 1)
    one_hot = (iota_v == ids_ref[...]).astype(jnp.float32)              # [BS, V]
    x = jnp.dot(one_hot, embed_ref[...], preferred_element_type=jnp.float32)  # [BS, D]

    # encoder padding bias, column layout [SE, B] (never touches HBM)
    enc_bias = (1.0 - maskt_ref[...]) * jnp.float32(-1e9)               # [SE, B]

    for li in range(L):
        pk_ref, pv_ref, ck_ref, cv_ref = cache_refs[4 * li:4 * li + 4]
        nk_ref = out_refs[1 + 2 * li]                                   # [B, SKV, HD]
        nv_ref = out_refs[2 + 2 * li]

        # ---------------- self attention (fused QKV + KV-cache append) --------
        h = _rms(x, ln1_ref[li])
        qkv = jnp.dot(h, wqkv_ref[li],
                      preferred_element_type=jnp.float32)               # [BS, 3*HD]

        # new cache = [old | new token], written straight into the output refs.
        nk_ref[:, 0:SP, :] = pk_ref[...]
        nv_ref[:, 0:SP, :] = pv_ref[...]
        for b in range(B):
            nk_ref[b:b + 1, SP:SP + S, :] = qkv[b:b + 1, HD:2 * HD].reshape(1, S, HD)
            nv_ref[b:b + 1, SP:SP + S, :] = qkv[b:b + 1, 2 * HD:3 * HD].reshape(1, S, HD)

        k_all = nk_ref[...]                                             # [B, SKV, HD]
        v_all = nv_ref[...]
        # TODO(synk): T5 relative-position bias lives inside the opaque ONNX graph
        # and is omitted here (self-attention bias = 0 for the single new token).
        for b in range(B):
            attn_scr[b:b + 1, :] = _attend_all_heads(
                qkv[b:b + 1, 0:HD], k_all[b], v_all[b], m_sum, m_exp)
        x = x + jnp.dot(attn_scr[...], sao_ref[li],
                        preferred_element_type=jnp.float32)

        # ---------------- cross attention (cached encoder K/V) ----------------
        h = _rms(x, ln2_ref[li])
        qc = jnp.dot(h, caq_ref[li], preferred_element_type=jnp.float32)  # [BS, HD]
        ck = ck_ref[...]                                                # [B, SE, HD]
        cv = cv_ref[...]
        for b in range(B):
            attn_scr[b:b + 1, :] = _attend_all_heads(
                qc[b:b + 1, :], ck[b], cv[b], m_sum, m_exp,
                bias_col=enc_bias[:, b:b + 1])
        x = x + jnp.dot(attn_scr[...], cao_ref[li],
                        preferred_element_type=jnp.float32)

        # ---------------- feed forward (DenseReluDense) ------------------------
        h = _rms(x, ln3_ref[li])
        f1 = jnp.maximum(jnp.dot(h, wi_ref[li],
                                 preferred_element_type=jnp.float32), 0.0)
        x = x + jnp.dot(f1, wo_ref[li], preferred_element_type=jnp.float32)

    # ---------------- final norm + tied LM head (D**-0.5 rescale) -------------
    h = _rms(x, lnf_ref[...]) * jnp.float32(D ** -0.5)
    # TODO(synk): at real T5 sizes (V~32k, D>=512) the lm_head must be vocab-tiled
    # and streamed (will not fit v7x's 64 MiB VMEM); at V=256 it stays resident.
    logits_ref[...] = jnp.dot(h, lmh_ref[...],
                              preferred_element_type=jnp.float32)       # [BS, V]


# ----------------------------- wrapper ----------------------------------------

def _full_spec(shape):
    """Full-array BlockSpec (block == whole array)."""
    zeros = (0,) * len(shape)
    return pl.BlockSpec(tuple(shape), lambda i, _z=zeros: _z)


@jax.jit
def t5_decoder_step(params, input_ids, attention_mask, encoder_output,
                    past_key_values):
    # encoder_hidden_states is accepted (as in the ONNX graph) but the with-past
    # decoder uses the cached cross K/V, so it is unused here.
    del encoder_output
    b, s = input_ids.shape
    assert (b, s) == (B, S)

    # Layout plumbing (outside the kernel, XLA ops on tiny arrays):
    #   ids as a VMEM int32 column, mask transposed to [SE, B],
    #   caches transposed to lane-dense [B, T, H*DK].
    ids = input_ids.reshape(BS, 1).astype(jnp.int32)
    mask_t = attention_mask.astype(jnp.float32).T                       # [SE, B]

    dense_args = (params["embed"], mask_t,
                  params["ln1"], params["ln2"], params["ln3"],
                  params["w_qkv"], params["sa_o"], params["ca_q"], params["ca_o"],
                  params["wi"], params["wo"], params["ln_f"], params["lm_head"])

    cache_args = []
    for li in range(L):
        pk, pv, ck, cv = past_key_values[li]
        cache_args.append(pk.transpose(0, 2, 1, 3).reshape(B, SP, HD))
        cache_args.append(pv.transpose(0, 2, 1, 3).reshape(B, SP, HD))
        cache_args.append(ck.transpose(0, 2, 1, 3).reshape(B, SE, HD))
        cache_args.append(cv.transpose(0, 2, 1, 3).reshape(B, SE, HD))

    in_arrays = (ids, *dense_args, *cache_args)
    in_specs = [_full_spec(a.shape) for a in in_arrays]

    out_shapes = [jax.ShapeDtypeStruct((BS, V), jnp.float32)]
    out_specs = [_full_spec((BS, V))]
    for _ in range(L):
        for _ in range(2):                                              # k_new, v_new
            out_shapes.append(jax.ShapeDtypeStruct((B, SKV, HD), jnp.float32))
            out_specs.append(_full_spec((B, SKV, HD)))

    grid_spec = pltpu.PrefetchScalarGridSpec(
        num_scalar_prefetch=0,
        grid=(1,),
        in_specs=in_specs,
        out_specs=tuple(out_specs),
        scratch_shapes=[pltpu.VMEM((BS, HD), jnp.float32)],             # attn output rows
    )

    outs = pl.pallas_call(
        _decoder_step_kernel,
        out_shape=tuple(out_shapes),
        grid_spec=grid_spec,
        compiler_params=pltpu.CompilerParams(
            dimension_semantics=("arbitrary",)),
    )(*in_arrays)

    logits = outs[0].reshape(b, s, V)
    new_pkv = []
    for li in range(L):
        k_new = outs[1 + 2 * li].reshape(B, SKV, H, DK).transpose(0, 2, 1, 3)
        v_new = outs[2 + 2 * li].reshape(B, SKV, H, DK).transpose(0, 2, 1, 3)
        _, _, ck, cv = past_key_values[li]
        new_pkv.append((k_new, v_new, ck, cv))                          # cross K/V pass through
    return logits, tuple(new_pkv)


def t5_decoder_forward(params, input_ids, attention_mask, encoder_output,
                       past_key_values):
    """Mirrors fastT5 T5Decoder.forward: flatten pkv, run, regroup by 4."""
    flat_pkv = functools.reduce(operator.iconcat, past_key_values, [])
    grouped = tuple(tuple(flat_pkv[i:i + 4]) for i in range(0, len(flat_pkv), 4))
    logits, out_pkv = t5_decoder_step(params, input_ids, attention_mask,
                                      encoder_output, grouped)
    return logits, out_pkv


# ----------------------------- parameters -------------------------------------

def init_params(key):
    def nrm(k, shape, scale=0.05):
        return (scale * jax.random.normal(k, shape)).astype(jnp.float32)

    keys = iter(jax.random.split(key, 8))
    params = {
        "embed": nrm(next(keys), (V, D)),
        "ln1": jnp.ones((L, 1, D), jnp.float32),
        "ln2": jnp.ones((L, 1, D), jnp.float32),
        "ln3": jnp.ones((L, 1, D), jnp.float32),
        "ln_f": jnp.ones((1, D), jnp.float32),
        "w_qkv": nrm(next(keys), (L, D, 3 * HD)),     # fused self-attn Q|K|V
        "sa_o": nrm(next(keys), (L, HD, D)),
        "ca_q": nrm(next(keys), (L, D, HD)),
        "ca_o": nrm(next(keys), (L, HD, D)),
        "wi": nrm(next(keys), (L, D, F)),
        "wo": nrm(next(keys), (L, F, D)),
    }
    params["lm_head"] = params["embed"].T              # tied LM head
    return params


# ----------------------------- main --------------------------------------------

if __name__ == "__main__":
    key = jax.random.PRNGKey(0)
    kp, kid, kenc, kpkv = jax.random.split(key, 4)
    params = init_params(kp)

    input_ids = jax.random.randint(kid, (B, S), 0, V, dtype=jnp.int32)
    attention_mask = jnp.ones((B, SE), jnp.int32)
    encoder_output = (0.05 * jax.random.normal(kenc, (B, SE, D))).astype(jnp.float32)

    pkv_keys = jax.random.split(kpkv, L * 4)
    past_key_values = tuple(
        tuple(
            (0.05 * jax.random.normal(pkv_keys[li * 4 + j],
                                      (B, H, SP if j < 2 else SE, DK))
             ).astype(jnp.float32)
            for j in range(4)
        )
        for li in range(L)
    )

    logits, new_pkv = t5_decoder_forward(params, input_ids, attention_mask,
                                         encoder_output, past_key_values)
    jax.block_until_ready(logits)
    jax.block_until_ready(new_pkv)

    assert logits.shape == (B, S, V)
    assert len(new_pkv) == L and all(len(t) == 4 for t in new_pkv)
    assert new_pkv[0][0].shape == (B, H, SP + S, DK)
    assert new_pkv[0][2].shape == (B, H, SE, DK)
    assert bool(jnp.all(jnp.isfinite(logits)))
    # cache prefix must be carried over exactly (layout plumbing round-trips)
    assert bool(jnp.allclose(new_pkv[0][0][:, :, :SP, :], past_key_values[0][0]))
    assert bool(jnp.allclose(new_pkv[1][1][:, :, :SP, :], past_key_values[1][1]))
    print("KERNEL_OK")
</pallas_src>

<mosaic_0001>
module attributes {stable_mosaic.version = 11 : i64} {
  func.func @_decoder_step_kernel(%arg0: i32, %arg1: memref<2x1xi32, #tpu.memory_space<vmem>>, %arg2: memref<256x64xf32, #tpu.memory_space<vmem>>, %arg3: memref<8x2xf32, #tpu.memory_space<vmem>>, %arg4: memref<2x1x64xf32, #tpu.memory_space<vmem>>, %arg5: memref<2x1x64xf32, #tpu.memory_space<vmem>>, %arg6: memref<2x1x64xf32, #tpu.memory_space<vmem>>, %arg7: memref<2x64x192xf32, #tpu.memory_space<vmem>>, %arg8: memref<2x64x64xf32, #tpu.memory_space<vmem>>, %arg9: memref<2x64x64xf32, #tpu.memory_space<vmem>>, %arg10: memref<2x64x64xf32, #tpu.memory_space<vmem>>, %arg11: memref<2x64x128xf32, #tpu.memory_space<vmem>>, %arg12: memref<2x128x64xf32, #tpu.memory_space<vmem>>, %arg13: memref<1x64xf32, #tpu.memory_space<vmem>>, %arg14: memref<64x256xf32, #tpu.memory_space<vmem>>, %arg15: memref<2x7x64xf32, #tpu.memory_space<vmem>>, %arg16: memref<2x7x64xf32, #tpu.memory_space<vmem>>, %arg17: memref<2x8x64xf32, #tpu.memory_space<vmem>>, %arg18: memref<2x8x64xf32, #tpu.memory_space<vmem>>, %arg19: memref<2x7x64xf32, #tpu.memory_space<vmem>>, %arg20: memref<2x7x64xf32, #tpu.memory_space<vmem>>, %arg21: memref<2x8x64xf32, #tpu.memory_space<vmem>>, %arg22: memref<2x8x64xf32, #tpu.memory_space<vmem>>, %arg23: memref<2x256xf32, #tpu.memory_space<vmem>>, %arg24: memref<2x8x64xf32, #tpu.memory_space<vmem>>, %arg25: memref<2x8x64xf32, #tpu.memory_space<vmem>>, %arg26: memref<2x8x64xf32, #tpu.memory_space<vmem>>, %arg27: memref<2x8x64xf32, #tpu.memory_space<vmem>>, %arg28: memref<2x64xf32, #tpu.memory_space<vmem>>) attributes {dimension_semantics = [#tpu.dimension_semantics<arbitrary>], iteration_bounds = array<i64: 1>, scalar_prefetch = 0 : i64, scratch_operands = 1 : i64, tpu.core_type = #tpu.core_type<tc>, window_params = [{pipeline_mode = #tpu.pipeline_mode<synchronous>, transform_indices = @transform_0, window_bounds = array<i64: 2, 1>}, {pipeline_mode = #tpu.pipeline_mode<synchronous>, transform_indices = @transform_1, window_bounds = array<i64: 256, 64>}, {pipeline_mode = #tpu.pipeline_mode<synchronous>, transform_indices = @transform_2, window_bounds = array<i64: 8, 2>}, {pipeline_mode = #tpu.pipeline_mode<synchronous>, transform_indices = @transform_3, window_bounds = array<i64: 2, 1, 64>}, {pipeline_mode = #tpu.pipeline_mode<synchronous>, transform_indices = @transform_4, window_bounds = array<i64: 2, 1, 64>}, {pipeline_mode = #tpu.pipeline_mode<synchronous>, transform_indices = @transform_5, window_bounds = array<i64: 2, 1, 64>}, {pipeline_mode = #tpu.pipeline_mode<synchronous>, transform_indices = @transform_6, window_bounds = array<i64: 2, 64, 192>}, {pipeline_mode = #tpu.pipeline_mode<synchronous>, transform_indices = @transform_7, window_bounds = array<i64: 2, 64, 64>}, {pipeline_mode = #tpu.pipeline_mode<synchronous>, transform_indices = @transform_8, window_bounds = array<i64: 2, 64, 64>}, {pipeline_mode = #tpu.pipeline_mode<synchronous>, transform_indices = @transform_9, window_bounds = array<i64: 2, 64, 64>}, {pipeline_mode = #tpu.pipeline_mode<synchronous>, transform_indices = @transform_10, window_bounds = array<i64: 2, 64, 128>}, {pipeline_mode = #tpu.pipeline_mode<synchronous>, transform_indices = @transform_11, window_bounds = array<i64: 2, 128, 64>}, {pipeline_mode = #tpu.pipeline_mode<synchronous>, transform_indices = @transform_12, window_bounds = array<i64: 1, 64>}, {pipeline_mode = #tpu.pipeline_mode<synchronous>, transform_indices = @transform_13, window_bounds = array<i64: 64, 256>}, {pipeline_mode = #tpu.pipeline_mode<synchronous>, transform_indices = @transform_14, window_bounds = array<i64: 2, 7, 64>}, {pipeline_mode = #tpu.pipeline_mode<synchronous>, transform_indices = @transform_15, window_bounds = array<i64: 2, 7, 64>}, {pipeline_mode = #tpu.pipeline_mode<synchronous>, transform_indices = @transform_16, window_bounds = array<i64: 2, 8, 64>}, {pipeline_mode = #tpu.pipeline_mode<synchronous>, transform_indices = @transform_17, window_bounds = array<i64: 2, 8, 64>}, {pipeline_mode = #tpu.pipeline_mode<synchronous>, transform_indices = @transform_18, window_bounds = array<i64: 2, 7, 64>}, {pipeline_mode = #tpu.pipeline_mode<synchronous>, transform_indices = @transform_19, window_bounds = array<i64: 2, 7, 64>}, {pipeline_mode = #tpu.pipeline_mode<synchronous>, transform_indices = @transform_20, window_bounds = array<i64: 2, 8, 64>}, {pipeline_mode = #tpu.pipeline_mode<synchronous>, transform_indices = @transform_21, window_bounds = array<i64: 2, 8, 64>}, {pipeline_mode = #tpu.pipeline_mode<synchronous>, transform_indices = @transform_22, window_bounds = array<i64: 2, 256>}, {pipeline_mode = #tpu.pipeline_mode<synchronous>, transform_indices = @transform_23, window_bounds = array<i64: 2, 8, 64>}, {pipeline_mode = #tpu.pipeline_mode<synchronous>, transform_indices = @transform_24, window_bounds = array<i64: 2, 8, 64>}, {pipeline_mode = #tpu.pipeline_mode<synchronous>, transform_indices = @transform_25, window_bounds = array<i64: 2, 8, 64>}, {pipeline_mode = #tpu.pipeline_mode<synchronous>, transform_indices = @transform_26, window_bounds = array<i64: 2, 8, 64>}]} {
    %0 = tpu.iota {dimensions = array<i32: 0>} : vector<64x4xi32>
    %1 = tpu.iota {dimensions = array<i32: 1>} : vector<64x4xi32>
    %c16_i32 = arith.constant 16 : i32
    %2 = vector.broadcast %c16_i32 : i32 to vector<64x4xi32>
    %3 = arith.muli %1, %2 : vector<64x4xi32>
    %4 = arith.cmpi sge, %0, %3 : vector<64x4xi32>
    %c16_i32_0 = arith.constant 16 : i32
    %5 = vector.broadcast %c16_i32_0 : i32 to vector<64x4xi32>
    %6 = arith.muli %1, %5 : vector<64x4xi32>
    %c16_i32_1 = arith.constant 16 : i32
    %7 = vector.broadcast %c16_i32_1 : i32 to vector<64x4xi32>
    %8 = arith.addi %6, %7 : vector<64x4xi32>
    %9 = arith.cmpi slt, %0, %8 : vector<64x4xi32>
    %10 = arith.andi %4, %9 : vector<64x4xi1>
    %11 = arith.extui %10 : vector<64x4xi1> to vector<64x4xi32>
    %12 = arith.sitofp %11 : vector<64x4xi32> to vector<64x4xf32>
    %13 = tpu.iota {dimensions = array<i32: 0>} : vector<4x64xi32>
    %14 = tpu.iota {dimensions = array<i32: 1>} : vector<4x64xi32>
    %c16_i32_2 = arith.constant 16 : i32
    %15 = vector.broadcast %c16_i32_2 : i32 to vector<4x64xi32>
    %16 = arith.muli %13, %15 : vector<4x64xi32>
    %17 = arith.cmpi sge, %14, %16 : vector<4x64xi32>
    %c16_i32_3 = arith.constant 16 : i32
    %18 = vector.broadcast %c16_i32_3 : i32 to vector<4x64xi32>
    %19 = arith.muli %13, %18 : vector<4x64xi32>
    %c16_i32_4 = arith.constant 16 : i32
    %20 = vector.broadcast %c16_i32_4 : i32 to vector<4x64xi32>
    %21 = arith.addi %19, %20 : vector<4x64xi32>
    %22 = arith.cmpi slt, %14, %21 : vector<4x64xi32>
    %23 = arith.andi %17, %22 : vector<4x64xi1>
    %24 = arith.extui %23 : vector<4x64xi1> to vector<4x64xi32>
    %25 = arith.sitofp %24 : vector<4x64xi32> to vector<4x64xf32>
    %26 = tpu.iota {dimensions = array<i32: 1>} : vector<2x256xi32>
    %c0 = arith.constant 0 : index
    %c0_5 = arith.constant 0 : index
    %27 = vector.load %arg1[%c0, %c0_5] : memref<2x1xi32, #tpu.memory_space<vmem>>, vector<2x1xi32>
    %28 = vector.broadcast %27 : vector<2x1xi32> to vector<2x256xi32>
    %29 = arith.cmpi eq, %26, %28 : vector<2x256xi32>
    %30 = arith.extui %29 : vector<2x256xi1> to vector<2x256xi32>
    %31 = arith.sitofp %30 : vector<2x256xi32> to vector<2x256xf32>
    %c0_6 = arith.constant 0 : index
    %c0_7 = arith.constant 0 : index
    %32 = vector.load %arg2[%c0_6, %c0_7] : memref<256x64xf32, #tpu.memory_space<vmem>>, vector<256x64xf32>
    %cst = arith.constant dense<0.000000e+00> : vector<2x64xf32>
    %33 = tpu.matmul %31, %32, %cst {dimension_numbers = #tpu.dot_dimension_numbers<[1], [0], [0], [1], [0, 0, 1, 1], [], []>} : vector<2x256xf32>, vector<256x64xf32>, vector<2x64xf32> -> vector<2x64xf32>
    %c0_8 = arith.constant 0 : index
    %c0_9 = arith.constant 0 : index
    %34 = vector.load %arg3[%c0_8, %c0_9] : memref<8x2xf32, #tpu.memory_space<vmem>>, vector<8x2xf32>
    %cst_10 = arith.constant 1.000000e+00 : f32
    %35 = vector.broadcast %cst_10 : f32 to vector<8x2xf32>
    %36 = arith.subf %35, %34 : vector<8x2xf32>
    %cst_11 = arith.constant -1.000000e+09 : f32
    %37 = vector.broadcast %cst_11 : f32 to vector<8x2xf32>
    %38 = arith.mulf %36, %37 : vector<8x2xf32>
    %c0_12 = arith.constant 0 : index
    %c0_13 = arith.constant 0 : index
    %c0_14 = arith.constant 0 : index
    %39 = vector.load %arg4[%c0_12, %c0_13, %c0_14] : memref<2x1x64xf32, #tpu.memory_space<vmem>>, vector<1x1x64xf32>
    %40 = vector.shape_cast %39 : vector<1x1x64xf32> to vector<1x64xf32>
    %41 = arith.mulf %33, %33 : vector<2x64xf32>
    %cst_15 = arith.constant dense<0.000000e+00> : vector<2xf32>
    %42 = vector.multi_reduction <add>, %41, %cst_15 [1] : vector<2x64xf32> to vector<2xf32>
    %43 = vector.shape_cast %42 : vector<2xf32> to vector<2x1xf32>
    %cst_16 = arith.constant 6.400000e+01 : f32
    %44 = vector.broadcast %cst_16 : f32 to vector<2x1xf32>
    %45 = arith.divf %43, %44 : vector<2x1xf32>
    %cst_17 = arith.constant 9.99999997E-7 : f32
    %46 = vector.broadcast %cst_17 : f32 to vector<2x1xf32>
    %47 = arith.addf %45, %46 : vector<2x1xf32>
    %48 = math.rsqrt %47 : vector<2x1xf32>
    %49 = vector.broadcast %48 : vector<2x1xf32> to vector<2x64xf32>
    %50 = arith.mulf %33, %49 : vector<2x64xf32>
    %51 = vector.broadcast %40 : vector<1x64xf32> to vector<2x64xf32>
    %52 = arith.mulf %50, %51 : vector<2x64xf32>
    %c0_18 = arith.constant 0 : index
    %c0_19 = arith.constant 0 : index
    %c0_20 = arith.constant 0 : index
    %53 = vector.load %arg7[%c0_18, %c0_19, %c0_20] : memref<2x64x192xf32, #tpu.memory_space<vmem>>, vector<1x64x192xf32>
    %54 = vector.shape_cast %53 : vector<1x64x192xf32> to vector<64x192xf32>
    %cst_21 = arith.constant dense<0.000000e+00> : vector<2x192xf32>
    %55 = tpu.matmul %52, %54, %cst_21 {dimension_numbers = #tpu.dot_dimension_numbers<[1], [0], [0], [1], [0, 0, 1, 1], [], []>} : vector<2x64xf32>, vector<64x192xf32>, vector<2x192xf32> -> vector<2x192xf32>
    %c0_22 = arith.constant 0 : index
    %c0_23 = arith.constant 0 : index
    %c0_24 = arith.constant 0 : index
    %56 = vector.load %arg15[%c0_22, %c0_23, %c0_24] : memref<2x7x64xf32, #tpu.memory_space<vmem>>, vector<2x7x64xf32>
    %c0_25 = arith.constant 0 : index
    %c0_26 = arith.constant 0 : index
    %c0_27 = arith.constant 0 : index
    %57 = vector.load %arg24[%c0_25, %c0_26, %c0_27] : memref<2x8x64xf32, #tpu.memory_space<vmem>>, vector<2x7x64xf32>
    tpu.vector_store %arg24[%c0_25, %c0_26, %c0_27], %56 {strides = array<i32>} : memref<2x8x64xf32, #tpu.memory_space<vmem>>, vector<2x7x64xf32>,
    %c0_28 = arith.constant 0 : index
    %c0_29 = arith.constant 0 : index
    %c0_30 = arith.constant 0 : index
    %58 = vector.load %arg16[%c0_28, %c0_29, %c0_30] : memref<2x7x64xf32, #tpu.memory_space<vmem>>, vector<2x7x64xf32>
    %c0_31 = arith.constant 0 : index
    %c0_32 = arith.constant 0 : index
    %c0_33 = arith.constant 0 : index
    %59 = vector.load %arg25[%c0_31, %c0_32, %c0_33] : memref<2x8x64xf32, #tpu.memory_space<vmem>>, vector<2x7x64xf32>
    tpu.vector_store %arg25[%c0_31, %c0_32, %c0_33], %58 {strides = array<i32>} : memref<2x8x64xf32, #tpu.memory_space<vmem>>, vector<2x7x64xf32>,
    %60 = vector.extract_strided_slice %55 {offsets = [0, 64], sizes = [1, 64], strides = [1, 1]} : vector<2x192xf32> to vector<1x64xf32>
    %61 = vector.shape_cast %60 : vector<1x64xf32> to vector<1x1x64xf32>
    %c0_34 = arith.constant 0 : index
    %c7 = arith.constant 7 : index
    %c0_35 = arith.constant 0 : index
    %62 = vector.load %arg24[%c0_34, %c7, %c0_35] : memref<2x8x64xf32, #tpu.memory_space<vmem>>, vector<1x1x64xf32>
    tpu.vector_store %arg24[%c0_34, %c7, %c0_35], %61 {strides = array<i32>} : memref<2x8x64xf32, #tpu.memory_space<vmem>>, vector<1x1x64xf32>,
    %63 = vector.extract_strided_slice %55 {offsets = [0, 128], sizes = [1, 64], strides = [1, 1]} : vector<2x192xf32> to vector<1x64xf32>
    %64 = vector.shape_cast %63 : vector<1x64xf32> to vector<1x1x64xf32>
    %c0_36 = arith.constant 0 : index
    %c7_37 = arith.constant 7 : index
    %c0_38 = arith.constant 0 : index
    %65 = vector.load %arg25[%c0_36, %c7_37, %c0_38] : memref<2x8x64xf32, #tpu.memory_space<vmem>>, vector<1x1x64xf32>
    tpu.vector_store %arg25[%c0_36, %c7_37, %c0_38], %64 {strides = array<i32>} : memref<2x8x64xf32, #tpu.memory_space<vmem>>, vector<1x1x64xf32>,
    %66 = vector.extract_strided_slice %55 {offsets = [1, 64], sizes = [1, 64], strides = [1, 1]} : vector<2x192xf32> to vector<1x64xf32>
    %67 = vector.shape_cast %66 : vector<1x64xf32> to vector<1x1x64xf32>
    %c1 = arith.constant 1 : index
    %c7_39 = arith.constant 7 : index
    %c0_40 = arith.constant 0 : index
    %68 = vector.load %arg24[%c1, %c7_39, %c0_40] : memref<2x8x64xf32, #tpu.memory_space<vmem>>, vector<1x1x64xf32>
    tpu.vector_store %arg24[%c1, %c7_39, %c0_40], %67 {strides = array<i32>} : memref<2x8x64xf32, #tpu.memory_space<vmem>>, vector<1x1x64xf32>,
    %69 = vector.extract_strided_slice %55 {offsets = [1, 128], sizes = [1, 64], strides = [1, 1]} : vector<2x192xf32> to vector<1x64xf32>
    %70 = vector.shape_cast %69 : vector<1x64xf32> to vector<1x1x64xf32>
    %c1_41 = arith.constant 1 : index
    %c7_42 = arith.constant 7 : index
    %c0_43 = arith.constant 0 : index
    %71 = vector.load %arg25[%c1_41, %c7_42, %c0_43] : memref<2x8x64xf32, #tpu.memory_space<vmem>>, vector<1x1x64xf32>
    tpu.vector_store %arg25[%c1_41, %c7_42, %c0_43], %70 {strides = array<i32>} : memref<2x8x64xf32, #tpu.memory_space<vmem>>, vector<1x1x64xf32>,
    %c0_44 = arith.constant 0 : index
    %c0_45 = arith.constant 0 : index
    %c0_46 = arith.constant 0 : index
    %72 = vector.load %arg24[%c0_44, %c0_45, %c0_46] : memref<2x8x64xf32, #tpu.memory_space<vmem>>, vector<2x8x64xf32>
    %c0_47 = arith.constant 0 : index
    %c0_48 = arith.constant 0 : index
    %c0_49 = arith.constant 0 : index
    %73 = vector.load %arg25[%c0_47, %c0_48, %c0_49] : memref<2x8x64xf32, #tpu.memory_space<vmem>>, vector<2x8x64xf32>
    %74 = vector.extract_strided_slice %55 {offsets = [0, 0], sizes = [1, 64], strides = [1, 1]} : vector<2x192xf32> to vector<1x64xf32>
    %75 = vector.extract_strided_slice %72 {offsets = [0, 0, 0], sizes = [1, 8, 64], strides = [1, 1, 1]} : vector<2x8x64xf32> to vector<1x8x64xf32>
    %76 = vector.shape_cast %75 : vector<1x8x64xf32> to vector<8x64xf32>
    %77 = vector.extract_strided_slice %73 {offsets = [0, 0, 0], sizes = [1, 8, 64], strides = [1, 1, 1]} : vector<2x8x64xf32> to vector<1x8x64xf32>
    %78 = vector.shape_cast %77 : vector<1x8x64xf32> to vector<8x64xf32>
    %79 = vector.broadcast %74 : vector<1x64xf32> to vector<8x64xf32>
    %80 = arith.mulf %76, %79 : vector<8x64xf32>
    %cst_50 = arith.constant dense<0.000000e+00> : vector<8x4xf32>
    %81 = tpu.matmul %80, %12, %cst_50 {dimension_numbers = #tpu.dot_dimension_numbers<[1], [0], [0], [1], [0, 0, 1, 1], [], []>} : vector<8x64xf32>, vector<64x4xf32>, vector<8x4xf32> -> vector<8x4xf32>
    %cst_51 = arith.constant dense<0xFF800000> : vector<4xf32>
    %82 = vector.multi_reduction <maximumf>, %81, %cst_51 [0] : vector<8x4xf32> to vector<4xf32>
    %83 = vector.shape_cast %82 : vector<4xf32> to vector<1x4xf32>
    %84 = vector.broadcast %83 : vector<1x4xf32> to vector<8x4xf32>
    %85 = arith.subf %81, %84 : vector<8x4xf32>
    %86 = math.exp %85 : vector<8x4xf32>
    %cst_52 = arith.constant dense<0.000000e+00> : vector<4xf32>
    %87 = vector.multi_reduction <add>, %86, %cst_52 [0] : vector<8x4xf32> to vector<4xf32>
    %88 = vector.shape_cast %87 : vector<4xf32> to vector<1x4xf32>
    %89 = tpu.reciprocal %88 {approx = true} : vector<1x4xf32> -> vector<1x4xf32>
    %90 = vector.broadcast %89 : vector<1x4xf32> to vector<8x4xf32>
    %91 = arith.mulf %86, %90 : vector<8x4xf32>
    %cst_53 = arith.constant dense<0.000000e+00> : vector<8x64xf32>
    %92 = tpu.matmul %91, %25, %cst_53 {dimension_numbers = #tpu.dot_dimension_numbers<[1], [0], [0], [1], [0, 0, 1, 1], [], []>} : vector<8x4xf32>, vector<4x64xf32>, vector<8x64xf32> -> vector<8x64xf32>
    %93 = arith.mulf %92, %78 : vector<8x64xf32>
    %cst_54 = arith.constant dense<0.000000e+00> : vector<64xf32>
    %94 = vector.multi_reduction <add>, %93, %cst_54 [0] : vector<8x64xf32> to vector<64xf32>
    %95 = vector.shape_cast %94 : vector<64xf32> to vector<1x64xf32>
    %c0_55 = arith.constant 0 : index
    %c0_56 = arith.constant 0 : index
    %96 = vector.load %arg28[%c0_55, %c0_56] : memref<2x64xf32, #tpu.memory_space<vmem>>, vector<1x64xf32>
    tpu.vector_store %arg28[%c0_55, %c0_56], %95 {strides = array<i32>} : memref<2x64xf32, #tpu.memory_space<vmem>>, vector<1x64xf32>,
    %97 = vector.extract_strided_slice %55 {offsets = [1, 0], sizes = [1, 64], strides = [1, 1]} : vector<2x192xf32> to vector<1x64xf32>
    %98 = vector.extract_strided_slice %72 {offsets = [1, 0, 0], sizes = [1, 8, 64], strides = [1, 1, 1]} : vector<2x8x64xf32> to vector<1x8x64xf32>
    %99 = vector.shape_cast %98 : vector<1x8x64xf32> to vector<8x64xf32>
    %100 = vector.extract_strided_slice %73 {offsets = [1, 0, 0], sizes = [1, 8, 64], strides = [1, 1, 1]} : vector<2x8x64xf32> to vector<1x8x64xf32>
    %101 = vector.shape_cast %100 : vector<1x8x64xf32> to vector<8x64xf32>
    %102 = vector.broadcast %97 : vector<1x64xf32> to vector<8x64xf32>
    %103 = arith.mulf %99, %102 : vector<8x64xf32>
    %cst_57 = arith.constant dense<0.000000e+00> : vector<8x4xf32>
    %104 = tpu.matmul %103, %12, %cst_57 {dimension_numbers = #tpu.dot_dimension_numbers<[1], [0], [0], [1], [0, 0, 1, 1], [], []>} : vector<8x64xf32>, vector<64x4xf32>, vector<8x4xf32> -> vector<8x4xf32>
    %cst_58 = arith.constant dense<0xFF800000> : vector<4xf32>
    %105 = vector.multi_reduction <maximumf>, %104, %cst_58 [0] : vector<8x4xf32> to vector<4xf32>
    %106 = vector.shape_cast %105 : vector<4xf32> to vector<1x4xf32>
    %107 = vector.broadcast %106 : vector<1x4xf32> to vector<8x4xf32>
    %108 = arith.subf %104, %107 : vector<8x4xf32>
    %109 = math.exp %108 : vector<8x4xf32>
    %cst_59 = arith.constant dense<0.000000e+00> : vector<4xf32>
    %110 = vector.multi_reduction <add>, %109, %cst_59 [0] : vector<8x4xf32> to vector<4xf32>
    %111 = vector.shape_cast %110 : vector<4xf32> to vector<1x4xf32>
    %112 = tpu.reciprocal %111 {approx = true} : vector<1x4xf32> -> vector<1x4xf32>
    %113 = vector.broadcast %112 : vector<1x4xf32> to vector<8x4xf32>
    %114 = arith.mulf %109, %113 : vector<8x4xf32>
    %cst_60 = arith.constant dense<0.000000e+00> : vector<8x64xf32>
    %115 = tpu.matmul %114, %25, %cst_60 {dimension_numbers = #tpu.dot_dimension_numbers<[1], [0], [0], [1], [0, 0, 1, 1], [], []>} : vector<8x4xf32>, vector<4x64xf32>, vector<8x64xf32> -> vector<8x64xf32>
    %116 = arith.mulf %115, %101 : vector<8x64xf32>
    %cst_61 = arith.constant dense<0.000000e+00> : vector<64xf32>
    %117 = vector.multi_reduction <add>, %116, %cst_61 [0] : vector<8x64xf32> to vector<64xf32>
    %118 = vector.shape_cast %117 : vector<64xf32> to vector<1x64xf32>
    %c1_62 = arith.constant 1 : index
    %c0_63 = arith.constant 0 : index
    %119 = vector.load %arg28[%c1_62, %c0_63] : memref<2x64xf32, #tpu.memory_space<vmem>>, vector<1x64xf32>
    tpu.vector_store %arg28[%c1_62, %c0_63], %118 {strides = array<i32>} : memref<2x64xf32, #tpu.memory_space<vmem>>, vector<1x64xf32>,
    %c0_64 = arith.constant 0 : index
    %c0_65 = arith.constant 0 : index
    %120 = vector.load %arg28[%c0_64, %c0_65] : memref<2x64xf32, #tpu.memory_space<vmem>>, vector<2x64xf32>
    %c0_66 = arith.constant 0 : index
    %c0_67 = arith.constant 0 : index
    %c0_68 = arith.constant 0 : index
    %121 = vector.load %arg8[%c0_66, %c0_67, %c0_68] : memref<2x64x64xf32, #tpu.memory_space<vmem>>, vector<1x64x64xf32>
    %122 = vector.shape_cast %121 : vector<1x64x64xf32> to vector<64x64xf32>
    %cst_69 = arith.constant dense<0.000000e+00> : vector<2x64xf32>
    %123 = tpu.matmul %120, %122, %cst_69 {dimension_numbers = #tpu.dot_dimension_numbers<[1], [0], [0], [1], [0, 0, 1, 1], [], []>} : vector<2x64xf32>, vector<64x64xf32>, vector<2x64xf32> -> vector<2x64xf32>
    %124 = arith.addf %33, %123 : vector<2x64xf32>
    %c0_70 = arith.constant 0 : index
    %c0_71 = arith.constant 0 : index
    %c0_72 = arith.constant 0 : index
    %125 = vector.load %arg5[%c0_70, %c0_71, %c0_72] : memref<2x1x64xf32, #tpu.memory_space<vmem>>, vector<1x1x64xf32>
    %126 = vector.shape_cast %125 : vector<1x1x64xf32> to vector<1x64xf32>
    %127 = arith.mulf %124, %124 : vector<2x64xf32>
    %cst_73 = arith.constant dense<0.000000e+00> : vector<2xf32>
    %128 = vector.multi_reduction <add>, %127, %cst_73 [1] : vector<2x64xf32> to vector<2xf32>
    %129 = vector.shape_cast %128 : vector<2xf32> to vector<2x1xf32>
    %cst_74 = arith.constant 6.400000e+01 : f32
    %130 = vector.broadcast %cst_74 : f32 to vector<2x1xf32>
    %131 = arith.divf %129, %130 : vector<2x1xf32>
    %cst_75 = arith.constant 9.99999997E-7 : f32
    %132 = vector.broadcast %cst_75 : f32 to vector<2x1xf32>
    %133 = arith.addf %131, %132 : vector<2x1xf32>
    %134 = math.rsqrt %133 : vector<2x1xf32>
    %135 = vector.broadcast %134 : vector<2x1xf32> to vector<2x64xf32>
    %136 = arith.mulf %124, %135 : vector<2x64xf32>
    %137 = vector.broadcast %126 : vector<1x64xf32> to vector<2x64xf32>
    %138 = arith.mulf %136, %137 : vector<2x64xf32>
    %c0_76 = arith.constant 0 : index
    %c0_77 = arith.constant 0 : index
    %c0_78 = arith.constant 0 : index
    %139 = vector.load %arg9[%c0_76, %c0_77, %c0_78] : memref<2x64x64xf32, #tpu.memory_space<vmem>>, vector<1x64x64xf32>
    %140 = vector.shape_cast %139 : vector<1x64x64xf32> to vector<64x64xf32>
    %cst_79 = arith.constant dense<0.000000e+00> : vector<2x64xf32>
    %141 = tpu.matmul %138, %140, %cst_79 {dimension_numbers = #tpu.dot_dimension_numbers<[1], [0], [0], [1], [0, 0, 1, 1], [], []>} : vector<2x64xf32>, vector<64x64xf32>, vector<2x64xf32> -> vector<2x64xf32>
    %c0_80 = arith.constant 0 : index
    %c0_81 = arith.constant 0 : index
    %c0_82 = arith.constant 0 : index
    %142 = vector.load %arg17[%c0_80, %c0_81, %c0_82] : memref<2x8x64xf32, #tpu.memory_space<vmem>>, vector<2x8x64xf32>
    %c0_83 = arith.constant 0 : index
    %c0_84 = arith.constant 0 : index
    %c0_85 = arith.constant 0 : index
    %143 = vector.load %arg18[%c0_83, %c0_84, %c0_85] : memref<2x8x64xf32, #tpu.memory_space<vmem>>, vector<2x8x64xf32>
    %144 = vector.extract_strided_slice %141 {offsets = [0, 0], sizes = [1, 64], strides = [1, 1]} : vector<2x64xf32> to vector<1x64xf32>
    %145 = vector.extract_strided_slice %142 {offsets = [0, 0, 0], sizes = [1, 8, 64], strides = [1, 1, 1]} : vector<2x8x64xf32> to vector<1x8x64xf32>
    %146 = vector.shape_cast %145 : vector<1x8x64xf32> to vector<8x64xf32>
    %147 = vector.extract_strided_slice %143 {offsets = [0, 0, 0], sizes = [1, 8, 64], strides = [1, 1, 1]} : vector<2x8x64xf32> to vector<1x8x64xf32>
    %148 = vector.shape_cast %147 : vector<1x8x64xf32> to vector<8x64xf32>
    %149 = vector.extract_strided_slice %38 {offsets = [0, 0], sizes = [8, 1], strides = [1, 1]} : vector<8x2xf32> to vector<8x1xf32>
    %150 = vector.broadcast %144 : vector<1x64xf32> to vector<8x64xf32>
    %151 = arith.mulf %146, %150 : vector<8x64xf32>
    %cst_86 = arith.constant dense<0.000000e+00> : vector<8x4xf32>
    %152 = tpu.matmul %151, %12, %cst_86 {dimension_numbers = #tpu.dot_dimension_numbers<[1], [0], [0], [1], [0, 0, 1, 1], [], []>} : vector<8x64xf32>, vector<64x4xf32>, vector<8x4xf32> -> vector<8x4xf32>
    %153 = vector.broadcast %149 : vector<8x1xf32> to vector<8x4xf32>
    %154 = arith.addf %152, %153 : vector<8x4xf32>
    %cst_87 = arith.constant dense<0xFF800000> : vector<4xf32>
    %155 = vector.multi_reduction <maximumf>, %154, %cst_87 [0] : vector<8x4xf32> to vector<4xf32>
    %156 = vector.shape_cast %155 : vector<4xf32> to vector<1x4xf32>
    %157 = vector.broadcast %156 : vector<1x4xf32> to vector<8x4xf32>
    %158 = arith.subf %154, %157 : vector<8x4xf32>
    %159 = math.exp %158 : vector<8x4xf32>
    %cst_88 = arith.constant dense<0.000000e+00> : vector<4xf32>
    %160 = vector.multi_reduction <add>, %159, %cst_88 [0] : vector<8x4xf32> to vector<4xf32>
    %161 = vector.shape_cast %160 : vector<4xf32> to vector<1x4xf32>
    %162 = tpu.reciprocal %161 {approx = true} : vector<1x4xf32> -> vector<1x4xf32>
    %163 = vector.broadcast %162 : vector<1x4xf32> to vector<8x4xf32>
    %164 = arith.mulf %159, %163 : vector<8x4xf32>
    %cst_89 = arith.constant dense<0.000000e+00> : vector<8x64xf32>
    %165 = tpu.matmul %164, %25, %cst_89 {dimension_numbers = #tpu.dot_dimension_numbers<[1], [0], [0], [1], [0, 0, 1, 1], [], []>} : vector<8x4xf32>, vector<4x64xf32>, vector<8x64xf32> -> vector<8x64xf32>
    %166 = arith.mulf %165, %148 : vector<8x64xf32>
    %cst_90 = arith.constant dense<0.000000e+00> : vector<64xf32>
    %167 = vector.multi_reduction <add>, %166, %cst_90 [0] : vector<8x64xf32> to vector<64xf32>
    %168 = vector.shape_cast %167 : vector<64xf32> to vector<1x64xf32>
    %c0_91 = arith.constant 0 : index
    %c0_92 = arith.constant 0 : index
    %169 = vector.load %arg28[%c0_91, %c0_92] : memref<2x64xf32, #tpu.memory_space<vmem>>, vector<1x64xf32>
    tpu.vector_store %arg28[%c0_91, %c0_92], %168 {strides = array<i32>} : memref<2x64xf32, #tpu.memory_space<vmem>>, vector<1x64xf32>,
    %170 = vector.extract_strided_slice %141 {offsets = [1, 0], sizes = [1, 64], strides = [1, 1]} : vector<2x64xf32> to vector<1x64xf32>
    %171 = vector.extract_strided_slice %142 {offsets = [1, 0, 0], sizes = [1, 8, 64], strides = [1, 1, 1]} : vector<2x8x64xf32> to vector<1x8x64xf32>
    %172 = vector.shape_cast %171 : vector<1x8x64xf32> to vector<8x64xf32>
    %173 = vector.extract_strided_slice %143 {offsets = [1, 0, 0], sizes = [1, 8, 64], strides = [1, 1, 1]} : vector<2x8x64xf32> to vector<1x8x64xf32>
    %174 = vector.shape_cast %173 : vector<1x8x64xf32> to vector<8x64xf32>
    %175 = vector.extract_strided_slice %38 {offsets = [0, 1], sizes = [8, 1], strides = [1, 1]} : vector<8x2xf32> to vector<8x1xf32>
    %176 = vector.broadcast %170 : vector<1x64xf32> to vector<8x64xf32>
    %177 = arith.mulf %172, %176 : vector<8x64xf32>
    %cst_93 = arith.constant dense<0.000000e+00> : vector<8x4xf32>
    %178 = tpu.matmul %177, %12, %cst_93 {dimension_numbers = #tpu.dot_dimension_numbers<[1], [0], [0], [1], [0, 0, 1, 1], [], []>} : vector<8x64xf32>, vector<64x4xf32>, vector<8x4xf32> -> vector<8x4xf32>
    %179 = vector.broadcast %175 : vector<8x1xf32> to vector<8x4xf32>
    %180 = arith.addf %178, %179 : vector<8x4xf32>
    %cst_94 = arith.constant dense<0xFF800000> : vector<4xf32>
    %181 = vector.multi_reduction <maximumf>, %180, %cst_94 [0] : vector<8x4xf32> to vector<4xf32>
    %182 = vector.shape_cast %181 : vector<4xf32> to vector<1x4xf32>
    %183 = vector.broadcast %182 : vector<1x4xf32> to vector<8x4xf32>
    %184 = arith.subf %180, %183 : vector<8x4xf32>
    %185 = math.exp %184 : vector<8x4xf32>
    %cst_95 = arith.constant dense<0.000000e+00> : vector<4xf32>
    %186 = vector.multi_reduction <add>, %185, %cst_95 [0] : vector<8x4xf32> to vector<4xf32>
    %187 = vector.shape_cast %186 : vector<4xf32> to vector<1x4xf32>
    %188 = tpu.reciprocal %187 {approx = true} : vector<1x4xf32> -> vector<1x4xf32>
    %189 = vector.broadcast %188 : vector<1x4xf32> to vector<8x4xf32>
    %190 = arith.mulf %185, %189 : vector<8x4xf32>
    %cst_96 = arith.constant dense<0.000000e+00> : vector<8x64xf32>
    %191 = tpu.matmul %190, %25, %cst_96 {dimension_numbers = #tpu.dot_dimension_numbers<[1], [0], [0], [1], [0, 0, 1, 1], [], []>} : vector<8x4xf32>, vector<4x64xf32>, vector<8x64xf32> -> vector<8x64xf32>
    %192 = arith.mulf %191, %174 : vector<8x64xf32>
    %cst_97 = arith.constant dense<0.000000e+00> : vector<64xf32>
    %193 = vector.multi_reduction <add>, %192, %cst_97 [0] : vector<8x64xf32> to vector<64xf32>
    %194 = vector.shape_cast %193 : vector<64xf32> to vector<1x64xf32>
    %c1_98 = arith.constant 1 : index
    %c0_99 = arith.constant 0 : index
    %195 = vector.load %arg28[%c1_98, %c0_99] : memref<2x64xf32, #tpu.memory_space<vmem>>, vector<1x64xf32>
    tpu.vector_store %arg28[%c1_98, %c0_99], %194 {strides = array<i32>} : memref<2x64xf32, #tpu.memory_space<vmem>>, vector<1x64xf32>,
    %c0_100 = arith.constant 0 : index
    %c0_101 = arith.constant 0 : index
    %196 = vector.load %arg28[%c0_100, %c0_101] : memref<2x64xf32, #tpu.memory_space<vmem>>, vector<2x64xf32>
    %c0_102 = arith.constant 0 : index
    %c0_103 = arith.constant 0 : index
    %c0_104 = arith.constant 0 : index
    %197 = vector.load %arg10[%c0_102, %c0_103, %c0_104] : memref<2x64x64xf32, #tpu.memory_space<vmem>>, vector<1x64x64xf32>
    %198 = vector.shape_cast %197 : vector<1x64x64xf32> to vector<64x64xf32>
    %cst_105 = arith.constant dense<0.000000e+00> : vector<2x64xf32>
    %199 = tpu.matmul %196, %198, %cst_105 {dimension_numbers = #tpu.dot_dimension_numbers<[1], [0], [0], [1], [0, 0, 1, 1], [], []>} : vector<2x64xf32>, vector<64x64xf32>, vector<2x64xf32> -> vector<2x64xf32>
    %200 = arith.addf %124, %199 : vector<2x64xf32>
    %c0_106 = arith.constant 0 : index
    %c0_107 = arith.constant 0 : index
    %c0_108 = arith.constant 0 : index
    %201 = vector.load %arg6[%c0_106, %c0_107, %c0_108] : memref<2x1x64xf32, #tpu.memory_space<vmem>>, vector<1x1x64xf32>
    %202 = vector.shape_cast %201 : vector<1x1x64xf32> to vector<1x64xf32>
    %203 = arith.mulf %200, %200 : vector<2x64xf32>
    %cst_109 = arith.constant dense<0.000000e+00> : vector<2xf32>
    %204 = vector.multi_reduction <add>, %203, %cst_109 [1] : vector<2x64xf32> to vector<2xf32>
    %205 = vector.shape_cast %204 : vector<2xf32> to vector<2x1xf32>
    %cst_110 = arith.constant 6.400000e+01 : f32
    %206 = vector.broadcast %cst_110 : f32 to vector<2x1xf32>
    %207 = arith.divf %205, %206 : vector<2x1xf32>
    %cst_111 = arith.constant 9.99999997E-7 : f32
    %208 = vector.broadcast %cst_111 : f32 to vector<2x1xf32>
    %209 = arith.addf %207, %208 : vector<2x1xf32>
    %210 = math.rsqrt %209 : vector<2x1xf32>
    %211 = vector.broadcast %210 : vector<2x1xf32> to vector<2x64xf32>
    %212 = arith.mulf %200, %211 : vector<2x64xf32>
    %213 = vector.broadcast %202 : vector<1x64xf32> to vector<2x64xf32>
    %214 = arith.mulf %212, %213 : vector<2x64xf32>
    %c0_112 = arith.constant 0 : index
    %c0_113 = arith.constant 0 : index
    %c0_114 = arith.constant 0 : index
    %215 = vector.load %arg11[%c0_112, %c0_113, %c0_114] : memref<2x64x128xf32, #tpu.memory_space<vmem>>, vector<1x64x128xf32>
    %216 = vector.shape_cast %215 : vector<1x64x128xf32> to vector<64x128xf32>
    %cst_115 = arith.constant dense<0.000000e+00> : vector<2x128xf32>
    %217 = tpu.matmul %214, %216, %cst_115 {dimension_numbers = #tpu.dot_dimension_numbers<[1], [0], [0], [1], [0, 0, 1, 1], [], []>} : vector<2x64xf32>, vector<64x128xf32>, vector<2x128xf32> -> vector<2x128xf32>
    %cst_116 = arith.constant 0.000000e+00 : f32
    %218 = vector.broadcast %cst_116 : f32 to vector<2x128xf32>
    %219 = arith.maximumf %217, %218 : vector<2x128xf32>
    %c0_117 = arith.constant 0 : index
    %c0_118 = arith.constant 0 : index
    %c0_119 = arith.constant 0 : index
    %220 = vector.load %arg12[%c0_117, %c0_118, %c0_119] : memref<2x128x64xf32, #tpu.memory_space<vmem>>, vector<1x128x64xf32>
    %221 = vector.shape_cast %220 : vector<1x128x64xf32> to vector<128x64xf32>
    %cst_120 = arith.constant dense<0.000000e+00> : vector<2x64xf32>
    %222 = tpu.matmul %219, %221, %cst_120 {dimension_numbers = #tpu.dot_dimension_numbers<[1], [0], [0], [1], [0, 0, 1, 1], [], []>} : vector<2x128xf32>, vector<128x64xf32>, vector<2x64xf32> -> vector<2x64xf32>
    %223 = arith.addf %200, %222 : vector<2x64xf32>
    %c1_121 = arith.constant 1 : index
    %c0_122 = arith.constant 0 : index
    %c0_123 = arith.constant 0 : index
    %224 = vector.load %arg4[%c1_121, %c0_122, %c0_123] : memref<2x1x64xf32, #tpu.memory_space<vmem>>, vector<1x1x64xf32>
    %225 = vector.shape_cast %224 : vector<1x1x64xf32> to vector<1x64xf32>
    %226 = arith.mulf %223, %223 : vector<2x64xf32>
    %cst_124 = arith.constant dense<0.000000e+00> : vector<2xf32>
    %227 = vector.multi_reduction <add>, %226, %cst_124 [1] : vector<2x64xf32> to vector<2xf32>
    %228 = vector.shape_cast %227 : vector<2xf32> to vector<2x1xf32>
    %cst_125 = arith.constant 6.400000e+01 : f32
    %229 = vector.broadcast %cst_125 : f32 to vector<2x1xf32>
    %230 = arith.divf %228, %229 : vector<2x1xf32>
    %cst_126 = arith.constant 9.99999997E-7 : f32
    %231 = vector.broadcast %cst_126 : f32 to vector<2x1xf32>
    %232 = arith.addf %230, %231 : vector<2x1xf32>
    %233 = math.rsqrt %232 : vector<2x1xf32>
    %234 = vector.broadcast %233 : vector<2x1xf32> to vector<2x64xf32>
    %235 = arith.mulf %223, %234 : vector<2x64xf32>
    %236 = vector.broadcast %225 : vector<1x64xf32> to vector<2x64xf32>
    %237 = arith.mulf %235, %236 : vector<2x64xf32>
    %c1_127 = arith.constant 1 : index
    %c0_128 = arith.constant 0 : index
    %c0_129 = arith.constant 0 : index
    %238 = vector.load %arg7[%c1_127, %c0_128, %c0_129] : memref<2x64x192xf32, #tpu.memory_space<vmem>>, vector<1x64x192xf32>
    %239 = vector.shape_cast %238 : vector<1x64x192xf32> to vector<64x192xf32>
    %cst_130 = arith.constant dense<0.000000e+00> : vector<2x192xf32>
    %240 = tpu.matmul %237, %239, %cst_130 {dimension_numbers = #tpu.dot_dimension_numbers<[1], [0], [0], [1], [0, 0, 1, 1], [], []>} : vector<2x64xf32>, vector<64x192xf32>, vector<2x192xf32> -> vector<2x192xf32>
    %c0_131 = arith.constant 0 : index
    %c0_132 = arith.constant 0 : index
    %c0_133 = arith.constant 0 : index
    %241 = vector.load %arg19[%c0_131, %c0_132, %c0_133] : memref<2x7x64xf32, #tpu.memory_space<vmem>>, vector<2x7x64xf32>
    %c0_134 = arith.constant 0 : index
    %c0_135 = arith.constant 0 : index
    %c0_136 = arith.constant 0 : index
    %242 = vector.load %arg26[%c0_134, %c0_135, %c0_136] : memref<2x8x64xf32, #tpu.memory_space<vmem>>, vector<2x7x64xf32>
    tpu.vector_store %arg26[%c0_134, %c0_135, %c0_136], %241 {strides = array<i32>} : memref<2x8x64xf32, #tpu.memory_space<vmem>>, vector<2x7x64xf32>,
    %c0_137 = arith.constant 0 : index
    %c0_138 = arith.constant 0 : index
    %c0_139 = arith.constant 0 : index
    %243 = vector.load %arg20[%c0_137, %c0_138, %c0_139] : memref<2x7x64xf32, #tpu.memory_space<vmem>>, vector<2x7x64xf32>
    %c0_140 = arith.constant 0 : index
    %c0_141 = arith.constant 0 : index
    %c0_142 = arith.constant 0 : index
    %244 = vector.load %arg27[%c0_140, %c0_141, %c0_142] : memref<2x8x64xf32, #tpu.memory_space<vmem>>, vector<2x7x64xf32>
    tpu.vector_store %arg27[%c0_140, %c0_141, %c0_142], %243 {strides = array<i32>} : memref<2x8x64xf32, #tpu.memory_space<vmem>>, vector<2x7x64xf32>,
    %245 = vector.extract_strided_slice %240 {offsets = [0, 64], sizes = [1, 64], strides = [1, 1]} : vector<2x192xf32> to vector<1x64xf32>
    %246 = vector.shape_cast %245 : vector<1x64xf32> to vector<1x1x64xf32>
    %c0_143 = arith.constant 0 : index
    %c7_144 = arith.constant 7 : index
    %c0_145 = arith.constant 0 : index
    %247 = vector.load %arg26[%c0_143, %c7_144, %c0_145] : memref<2x8x64xf32, #tpu.memory_space<vmem>>, vector<1x1x64xf32>
    tpu.vector_store %arg26[%c0_143, %c7_144, %c0_145], %246 {strides = array<i32>} : memref<2x8x64xf32, #tpu.memory_space<vmem>>, vector<1x1x64xf32>,
    %248 = vector.extract_strided_slice %240 {offsets = [0, 128], sizes = [1, 64], strides = [1, 1]} : vector<2x192xf32> to vector<1x64xf32>
    %249 = vector.shape_cast %248 : vector<1x64xf32> to vector<1x1x64xf32>
    %c0_146 = arith.constant 0 : index
    %c7_147 = arith.constant 7 : index
    %c0_148 = arith.constant 0 : index
    %250 = vector.load %arg27[%c0_146, %c7_147, %c0_148] : memref<2x8x64xf32, #tpu.memory_space<vmem>>, vector<1x1x64xf32>
    tpu.vector_store %arg27[%c0_146, %c7_147, %c0_148], %249 {strides = array<i32>} : memref<2x8x64xf32, #tpu.memory_space<vmem>>, vector<1x1x64xf32>,
    %251 = vector.extract_strided_slice %240 {offsets = [1, 64], sizes = [1, 64], strides = [1, 1]} : vector<2x192xf32> to vector<1x64xf32>
    %252 = vector.shape_cast %251 : vector<1x64xf32> to vector<1x1x64xf32>
    %c1_149 = arith.constant 1 : index
    %c7_150 = arith.constant 7 : index
    %c0_151 = arith.constant 0 : index
    %253 = vector.load %arg26[%c1_149, %c7_150, %c0_151] : memref<2x8x64xf32, #tpu.memory_space<vmem>>, vector<1x1x64xf32>
    tpu.vector_store %arg26[%c1_149, %c7_150, %c0_151], %252 {strides = array<i32>} : memref<2x8x64xf32, #tpu.memory_space<vmem>>, vector<1x1x64xf32>,
    %254 = vector.extract_strided_slice %240 {offsets = [1, 128], sizes = [1, 64], strides = [1, 1]} : vector<2x192xf32> to vector<1x64xf32>
    %255 = vector.shape_cast %254 : vector<1x64xf32> to vector<1x1x64xf32>
    %c1_152 = arith.constant 1 : index
    %c7_153 = arith.constant 7 : index
    %c0_154 = arith.constant 0 : index
    %256 = vector.load %arg27[%c1_152, %c7_153, %c0_154] : memref<2x8x64xf32, #tpu.memory_space<vmem>>, vector<1x1x64xf32>
    tpu.vector_store %arg27[%c1_152, %c7_153, %c0_154], %255 {strides = array<i32>} : memref<2x8x64xf32, #tpu.memory_space<vmem>>, vector<1x1x64xf32>,
    %c0_155 = arith.constant 0 : index
    %c0_156 = arith.constant 0 : index
    %c0_157 = arith.constant 0 : index
    %257 = vector.load %arg26[%c0_155, %c0_156, %c0_157] : memref<2x8x64xf32, #tpu.memory_space<vmem>>, vector<2x8x64xf32>
    %c0_158 = arith.constant 0 : index
    %c0_159 = arith.constant 0 : index
    %c0_160 = arith.constant 0 : index
    %258 = vector.load %arg27[%c0_158, %c0_159, %c0_160] : memref<2x8x64xf32, #tpu.memory_space<vmem>>, vector<2x8x64xf32>
    %259 = vector.extract_strided_slice %240 {offsets = [0, 0], sizes = [1, 64], strides = [1, 1]} : vector<2x192xf32> to vector<1x64xf32>
    %260 = vector.extract_strided_slice %257 {offsets = [0, 0, 0], sizes = [1, 8, 64], strides = [1, 1, 1]} : vector<2x8x64xf32> to vector<1x8x64xf32>
    %261 = vector.shape_cast %260 : vector<1x8x64xf32> to vector<8x64xf32>
    %262 = vector.extract_strided_slice %258 {offsets = [0, 0, 0], sizes = [1, 8, 64], strides = [1, 1, 1]} : vector<2x8x64xf32> to vector<1x8x64xf32>
    %263 = vector.shape_cast %262 : vector<1x8x64xf32> to vector<8x64xf32>
    %264 = vector.broadcast %259 : vector<1x64xf32> to vector<8x64xf32>
    %265 = arith.mulf %261, %264 : vector<8x64xf32>
    %cst_161 = arith.constant dense<0.000000e+00> : vector<8x4xf32>
    %266 = tpu.matmul %265, %12, %cst_161 {dimension_numbers = #tpu.dot_dimension_numbers<[1], [0], [0], [1], [0, 0, 1, 1], [], []>} : vector<8x64xf32>, vector<64x4xf32>, vector<8x4xf32> -> vector<8x4xf32>
    %cst_162 = arith.constant dense<0xFF800000> : vector<4xf32>
    %267 = vector.multi_reduction <maximumf>, %266, %cst_162 [0] : vector<8x4xf32> to vector<4xf32>
    %268 = vector.shape_cast %267 : vector<4xf32> to vector<1x4xf32>
    %269 = vector.broadcast %268 : vector<1x4xf32> to vector<8x4xf32>
    %270 = arith.subf %266, %269 : vector<8x4xf32>
    %271 = math.exp %270 : vector<8x4xf32>
    %cst_163 = arith.constant dense<0.000000e+00> : vector<4xf32>
    %272 = vector.multi_reduction <add>, %271, %cst_163 [0] : vector<8x4xf32> to vector<4xf32>
    %273 = vector.shape_cast %272 : vector<4xf32> to vector<1x4xf32>
    %274 = tpu.reciprocal %273 {approx = true} : vector<1x4xf32> -> vector<1x4xf32>
    %275 = vector.broadcast %274 : vector<1x4xf32> to vector<8x4xf32>
    %276 = arith.mulf %271, %275 : vector<8x4xf32>
    %cst_164 = arith.constant dense<0.000000e+00> : vector<8x64xf32>
    %277 = tpu.matmul %276, %25, %cst_164 {dimension_numbers = #tpu.dot_dimension_numbers<[1], [0], [0], [1], [0, 0, 1, 1], [], []>} : vector<8x4xf32>, vector<4x64xf32>, vector<8x64xf32> -> vector<8x64xf32>
    %278 = arith.mulf %277, %263 : vector<8x64xf32>
    %cst_165 = arith.constant dense<0.000000e+00> : vector<64xf32>
    %279 = vector.multi_reduction <add>, %278, %cst_165 [0] : vector<8x64xf32> to vector<64xf32>
    %280 = vector.shape_cast %279 : vector<64xf32> to vector<1x64xf32>
    %c0_166 = arith.constant 0 : index
    %c0_167 = arith.constant 0 : index
    %281 = vector.load %arg28[%c0_166, %c0_167] : memref<2x64xf32, #tpu.memory_space<vmem>>, vector<1x64xf32>
    tpu.vector_store %arg28[%c0_166, %c0_167], %280 {strides = array<i32>} : memref<2x64xf32, #tpu.memory_space<vmem>>, vector<1x64xf32>,
    %282 = vector.extract_strided_slice %240 {offsets = [1, 0], sizes = [1, 64], strides = [1, 1]} : vector<2x192xf32> to vector<1x64xf32>
    %283 = vector.extract_strided_slice %257 {offsets = [1, 0, 0], sizes = [1, 8, 64], strides = [1, 1, 1]} : vector<2x8x64xf32> to vector<1x8x64xf32>
    %284 = vector.shape_cast %283 : vector<1x8x64xf32> to vector<8x64xf32>
    %285 = vector.extract_strided_slice %258 {offsets = [1, 0, 0], sizes = [1, 8, 64], strides = [1, 1, 1]} : vector<2x8x64xf32> to vector<1x8x64xf32>
    %286 = vector.shape_cast %285 : vector<1x8x64xf32> to vector<8x64xf32>
    %287 = vector.broadcast %282 : vector<1x64xf32> to vector<8x64xf32>
    %288 = arith.mulf %284, %287 : vector<8x64xf32>
    %cst_168 = arith.constant dense<0.000000e+00> : vector<8x4xf32>
    %289 = tpu.matmul %288, %12, %cst_168 {dimension_numbers = #tpu.dot_dimension_numbers<[1], [0], [0], [1], [0, 0, 1, 1], [], []>} : vector<8x64xf32>, vector<64x4xf32>, vector<8x4xf32> -> vector<8x4xf32>
    %cst_169 = arith.constant dense<0xFF800000> : vector<4xf32>
    %290 = vector.multi_reduction <maximumf>, %289, %cst_169 [0] : vector<8x4xf32> to vector<4xf32>
    %291 = vector.shape_cast %290 : vector<4xf32> to vector<1x4xf32>
    %292 = vector.broadcast %291 : vector<1x4xf32> to vector<8x4xf32>
    %293 = arith.subf %289, %292 : vector<8x4xf32>
    %294 = math.exp %293 : vector<8x4xf32>
    %cst_170 = arith.constant dense<0.000000e+00> : vector<4xf32>
    %295 = vector.multi_reduction <add>, %294, %cst_170 [0] : vector<8x4xf32> to vector<4xf32>
    %296 = vector.shape_cast %295 : vector<4xf32> to vector<1x4xf32>
    %297 = tpu.reciprocal %296 {approx = true} : vector<1x4xf32> -> vector<1x4xf32>
    %298 = vector.broadcast %297 : vector<1x4xf32> to vector<8x4xf32>
    %299 = arith.mulf %294, %298 : vector<8x4xf32>
    %cst_171 = arith.constant dense<0.000000e+00> : vector<8x64xf32>
    %300 = tpu.matmul %299, %25, %cst_171 {dimension_numbers = #tpu.dot_dimension_numbers<[1], [0], [0], [1], [0, 0, 1, 1], [], []>} : vector<8x4xf32>, vector<4x64xf32>, vector<8x64xf32> -> vector<8x64xf32>
    %301 = arith.mulf %300, %286 : vector<8x64xf32>
    %cst_172 = arith.constant dense<0.000000e+00> : vector<64xf32>
    %302 = vector.multi_reduction <add>, %301, %cst_172 [0] : vector<8x64xf32> to vector<64xf32>
    %303 = vector.shape_cast %302 : vector<64xf32> to vector<1x64xf32>
    %c1_173 = arith.constant 1 : index
    %c0_174 = arith.constant 0 : index
    %304 = vector.load %arg28[%c1_173, %c0_174] : memref<2x64xf32, #tpu.memory_space<vmem>>, vector<1x64xf32>
    tpu.vector_store %arg28[%c1_173, %c0_174], %303 {strides = array<i32>} : memref<2x64xf32, #tpu.memory_space<vmem>>, vector<1x64xf32>,
    %c0_175 = arith.constant 0 : index
    %c0_176 = arith.constant 0 : index
    %305 = vector.load %arg28[%c0_175, %c0_176] : memref<2x64xf32, #tpu.memory_space<vmem>>, vector<2x64xf32>
    %c1_177 = arith.constant 1 : index
    %c0_178 = arith.constant 0 : index
    %c0_179 = arith.constant 0 : index
    %306 = vector.load %arg8[%c1_177, %c0_178, %c0_179] : memref<2x64x64xf32, #tpu.memory_space<vmem>>, vector<1x64x64xf32>
    %307 = vector.shape_cast %306 : vector<1x64x64xf32> to vector<64x64xf32>
    %cst_180 = arith.constant dense<0.000000e+00> : vector<2x64xf32>
    %308 = tpu.matmul %305, %307, %cst_180 {dimension_numbers = #tpu.dot_dimension_numbers<[1], [0], [0], [1], [0, 0, 1, 1], [], []>} : vector<2x64xf32>, vector<64x64xf32>, vector<2x64xf32> -> vector<2x64xf32>
    %309 = arith.addf %223, %308 : vector<2x64xf32>
    %c1_181 = arith.constant 1 : index
    %c0_182 = arith.constant 0 : index
    %c0_183 = arith.constant 0 : index
    %310 = vector.load %arg5[%c1_181, %c0_182, %c0_183] : memref<2x1x64xf32, #tpu.memory_space<vmem>>, vector<1x1x64xf32>
    %311 = vector.shape_cast %310 : vector<1x1x64xf32> to vector<1x64xf32>
    %312 = arith.mulf %309, %309 : vector<2x64xf32>
    %cst_184 = arith.constant dense<0.000000e+00> : vector<2xf32>
    %313 = vector.multi_reduction <add>, %312, %cst_184 [1] : vector<2x64xf32> to vector<2xf32>
    %314 = vector.shape_cast %313 : vector<2xf32> to vector<2x1xf32>
    %cst_185 = arith.constant 6.400000e+01 : f32
    %315 = vector.broadcast %cst_185 : f32 to vector<2x1xf32>
    %316 = arith.divf %314, %315 : vector<2x1xf32>
    %cst_186 = arith.constant 9.99999997E-7 : f32
    %317 = vector.broadcast %cst_186 : f32 to vector<2x1xf32>
    %318 = arith.addf %316, %317 : vector<2x1xf32>
    %319 = math.rsqrt %318 : vector<2x1xf32>
    %320 = vector.broadcast %319 : vector<2x1xf32> to vector<2x64xf32>
    %321 = arith.mulf %309, %320 : vector<2x64xf32>
    %322 = vector.broadcast %311 : vector<1x64xf32> to vector<2x64xf32>
    %323 = arith.mulf %321, %322 : vector<2x64xf32>
    %c1_187 = arith.constant 1 : index
    %c0_188 = arith.constant 0 : index
    %c0_189 = arith.constant 0 : index
    %324 = vector.load %arg9[%c1_187, %c0_188, %c0_189] : memref<2x64x64xf32, #tpu.memory_space<vmem>>, vector<1x64x64xf32>
    %325 = vector.shape_cast %324 : vector<1x64x64xf32> to vector<64x64xf32>
    %cst_190 = arith.constant dense<0.000000e+00> : vector<2x64xf32>
    %326 = tpu.matmul %323, %325, %cst_190 {dimension_numbers = #tpu.dot_dimension_numbers<[1], [0], [0], [1], [0, 0, 1, 1], [], []>} : vector<2x64xf32>, vector<64x64xf32>, vector<2x64xf32> -> vector<2x64xf32>
    %c0_191 = arith.constant 0 : index
    %c0_192 = arith.constant 0 : index
    %c0_193 = arith.constant 0 : index
    %327 = vector.load %arg21[%c0_191, %c0_192, %c0_193] : memref<2x8x64xf32, #tpu.memory_space<vmem>>, vector<2x8x64xf32>
    %c0_194 = arith.constant 0 : index
    %c0_195 = arith.constant 0 : index
    %c0_196 = arith.constant 0 : index
    %328 = vector.load %arg22[%c0_194, %c0_195, %c0_196] : memref<2x8x64xf32, #tpu.memory_space<vmem>>, vector<2x8x64xf32>
    %329 = vector.extract_strided_slice %326 {offsets = [0, 0], sizes = [1, 64], strides = [1, 1]} : vector<2x64xf32> to vector<1x64xf32>
    %330 = vector.extract_strided_slice %327 {offsets = [0, 0, 0], sizes = [1, 8, 64], strides = [1, 1, 1]} : vector<2x8x64xf32> to vector<1x8x64xf32>
    %331 = vector.shape_cast %330 : vector<1x8x64xf32> to vector<8x64xf32>
    %332 = vector.extract_strided_slice %328 {offsets = [0, 0, 0], sizes = [1, 8, 64], strides = [1, 1, 1]} : vector<2x8x64xf32> to vector<1x8x64xf32>
    %333 = vector.shape_cast %332 : vector<1x8x64xf32> to vector<8x64xf32>
    %334 = vector.extract_strided_slice %38 {offsets = [0, 0], sizes = [8, 1], strides = [1, 1]} : vector<8x2xf32> to vector<8x1xf32>
    %335 = vector.broadcast %329 : vector<1x64xf32> to vector<8x64xf32>
    %336 = arith.mulf %331, %335 : vector<8x64xf32>
    %cst_197 = arith.constant dense<0.000000e+00> : vector<8x4xf32>
    %337 = tpu.matmul %336, %12, %cst_197 {dimension_numbers = #tpu.dot_dimension_numbers<[1], [0], [0], [1], [0, 0, 1, 1], [], []>} : vector<8x64xf32>, vector<64x4xf32>, vector<8x4xf32> -> vector<8x4xf32>
    %338 = vector.broadcast %334 : vector<8x1xf32> to vector<8x4xf32>
    %339 = arith.addf %337, %338 : vector<8x4xf32>
    %cst_198 = arith.constant dense<0xFF800000> : vector<4xf32>
    %340 = vector.multi_reduction <maximumf>, %339, %cst_198 [0] : vector<8x4xf32> to vector<4xf32>
    %341 = vector.shape_cast %340 : vector<4xf32> to vector<1x4xf32>
    %342 = vector.broadcast %341 : vector<1x4xf32> to vector<8x4xf32>
    %343 = arith.subf %339, %342 : vector<8x4xf32>
    %344 = math.exp %343 : vector<8x4xf32>
    %cst_199 = arith.constant dense<0.000000e+00> : vector<4xf32>
    %345 = vector.multi_reduction <add>, %344, %cst_199 [0] : vector<8x4xf32> to vector<4xf32>
    %346 = vector.shape_cast %345 : vector<4xf32> to vector<1x4xf32>
    %347 = tpu.reciprocal %346 {approx = true} : vector<1x4xf32> -> vector<1x4xf32>
    %348 = vector.broadcast %347 : vector<1x4xf32> to vector<8x4xf32>
    %349 = arith.mulf %344, %348 : vector<8x4xf32>
    %cst_200 = arith.constant dense<0.000000e+00> : vector<8x64xf32>
    %350 = tpu.matmul %349, %25, %cst_200 {dimension_numbers = #tpu.dot_dimension_numbers<[1], [0], [0], [1], [0, 0, 1, 1], [], []>} : vector<8x4xf32>, vector<4x64xf32>, vector<8x64xf32> -> vector<8x64xf32>
    %351 = arith.mulf %350, %333 : vector<8x64xf32>
    %cst_201 = arith.constant dense<0.000000e+00> : vector<64xf32>
    %352 = vector.multi_reduction <add>, %351, %cst_201 [0] : vector<8x64xf32> to vector<64xf32>
    %353 = vector.shape_cast %352 : vector<64xf32> to vector<1x64xf32>
    %c0_202 = arith.constant 0 : index
    %c0_203 = arith.constant 0 : index
    %354 = vector.load %arg28[%c0_202, %c0_203] : memref<2x64xf32, #tpu.memory_space<vmem>>, vector<1x64xf32>
    tpu.vector_store %arg28[%c0_202, %c0_203], %353 {strides = array<i32>} : memref<2x64xf32, #tpu.memory_space<vmem>>, vector<1x64xf32>,
    %355 = vector.extract_strided_slice %326 {offsets = [1, 0], sizes = [1, 64], strides = [1, 1]} : vector<2x64xf32> to vector<1x64xf32>
    %356 = vector.extract_strided_slice %327 {offsets = [1, 0, 0], sizes = [1, 8, 64], strides = [1, 1, 1]} : vector<2x8x64xf32> to vector<1x8x64xf32>
    %357 = vector.shape_cast %356 : vector<1x8x64xf32> to vector<8x64xf32>
    %358 = vector.extract_strided_slice %328 {offsets = [1, 0, 0], sizes = [1, 8, 64], strides = [1, 1, 1]} : vector<2x8x64xf32> to vector<1x8x64xf32>
    %359 = vector.shape_cast %358 : vector<1x8x64xf32> to vector<8x64xf32>
    %360 = vector.extract_strided_slice %38 {offsets = [0, 1], sizes = [8, 1], strides = [1, 1]} : vector<8x2xf32> to vector<8x1xf32>
    %361 = vector.broadcast %355 : vector<1x64xf32> to vector<8x64xf32>
    %362 = arith.mulf %357, %361 : vector<8x64xf32>
    %cst_204 = arith.constant dense<0.000000e+00> : vector<8x4xf32>
    %363 = tpu.matmul %362, %12, %cst_204 {dimension_numbers = #tpu.dot_dimension_numbers<[1], [0], [0], [1], [0, 0, 1, 1], [], []>} : vector<8x64xf32>, vector<64x4xf32>, vector<8x4xf32> -> vector<8x4xf32>
    %364 = vector.broadcast %360 : vector<8x1xf32> to vector<8x4xf32>
    %365 = arith.addf %363, %364 : vector<8x4xf32>
    %cst_205 = arith.constant dense<0xFF800000> : vector<4xf32>
    %366 = vector.multi_reduction <maximumf>, %365, %cst_205 [0] : vector<8x4xf32> to vector<4xf32>
    %367 = vector.shape_cast %366 : vector<4xf32> to vector<1x4xf32>
    %368 = vector.broadcast %367 : vector<1x4xf32> to vector<8x4xf32>
    %369 = arith.subf %365, %368 : vector<8x4xf32>
    %370 = math.exp %369 : vector<8x4xf32>
    %cst_206 = arith.constant dense<0.000000e+00> : vector<4xf32>
    %371 = vector.multi_reduction <add>, %370, %cst_206 [0] : vector<8x4xf32> to vector<4xf32>
    %372 = vector.shape_cast %371 : vector<4xf32> to vector<1x4xf32>
    %373 = tpu.reciprocal %372 {approx = true} : vector<1x4xf32> -> vector<1x4xf32>
    %374 = vector.broadcast %373 : vector<1x4xf32> to vector<8x4xf32>
    %375 = arith.mulf %370, %374 : vector<8x4xf32>
    %cst_207 = arith.constant dense<0.000000e+00> : vector<8x64xf32>
    %376 = tpu.matmul %375, %25, %cst_207 {dimension_numbers = #tpu.dot_dimension_numbers<[1], [0], [0], [1], [0, 0, 1, 1], [], []>} : vector<8x4xf32>, vector<4x64xf32>, vector<8x64xf32> -> vector<8x64xf32>
    %377 = arith.mulf %376, %359 : vector<8x64xf32>
    %cst_208 = arith.constant dense<0.000000e+00> : vector<64xf32>
    %378 = vector.multi_reduction <add>, %377, %cst_208 [0] : vector<8x64xf32> to vector<64xf32>
    %379 = vector.shape_cast %378 : vector<64xf32> to vector<1x64xf32>
    %c1_209 = arith.constant 1 : index
    %c0_210 = arith.constant 0 : index
    %380 = vector.load %arg28[%c1_209, %c0_210] : memref<2x64xf32, #tpu.memory_space<vmem>>, vector<1x64xf32>
    tpu.vector_store %arg28[%c1_209, %c0_210], %379 {strides = array<i32>} : memref<2x64xf32, #tpu.memory_space<vmem>>, vector<1x64xf32>,
    %c0_211 = arith.constant 0 : index
    %c0_212 = arith.constant 0 : index
    %381 = vector.load %arg28[%c0_211, %c0_212] : memref<2x64xf32, #tpu.memory_space<vmem>>, vector<2x64xf32>
    %c1_213 = arith.constant 1 : index
    %c0_214 = arith.constant 0 : index
    %c0_215 = arith.constant 0 : index
    %382 = vector.load %arg10[%c1_213, %c0_214, %c0_215] : memref<2x64x64xf32, #tpu.memory_space<vmem>>, vector<1x64x64xf32>
    %383 = vector.shape_cast %382 : vector<1x64x64xf32> to vector<64x64xf32>
    %cst_216 = arith.constant dense<0.000000e+00> : vector<2x64xf32>
    %384 = tpu.matmul %381, %383, %cst_216 {dimension_numbers = #tpu.dot_dimension_numbers<[1], [0], [0], [1], [0, 0, 1, 1], [], []>} : vector<2x64xf32>, vector<64x64xf32>, vector<2x64xf32> -> vector<2x64xf32>
    %385 = arith.addf %309, %384 : vector<2x64xf32>
    %c1_217 = arith.constant 1 : index
    %c0_218 = arith.constant 0 : index
    %c0_219 = arith.constant 0 : index
    %386 = vector.load %arg6[%c1_217, %c0_218, %c0_219] : memref<2x1x64xf32, #tpu.memory_space<vmem>>, vector<1x1x64xf32>
    %387 = vector.shape_cast %386 : vector<1x1x64xf32> to vector<1x64xf32>
    %388 = arith.mulf %385, %385 : vector<2x64xf32>
    %cst_220 = arith.constant dense<0.000000e+00> : vector<2xf32>
    %389 = vector.multi_reduction <add>, %388, %cst_220 [1] : vector<2x64xf32> to vector<2xf32>
    %390 = vector.shape_cast %389 : vector<2xf32> to vector<2x1xf32>
    %cst_221 = arith.constant 6.400000e+01 : f32
    %391 = vector.broadcast %cst_221 : f32 to vector<2x1xf32>
    %392 = arith.divf %390, %391 : vector<2x1xf32>
    %cst_222 = arith.constant 9.99999997E-7 : f32
    %393 = vector.broadcast %cst_222 : f32 to vector<2x1xf32>
    %394 = arith.addf %392, %393 : vector<2x1xf32>
    %395 = math.rsqrt %394 : vector<2x1xf32>
    %396 = vector.broadcast %395 : vector<2x1xf32> to vector<2x64xf32>
    %397 = arith.mulf %385, %396 : vector<2x64xf32>
    %398 = vector.broadcast %387 : vector<1x64xf32> to vector<2x64xf32>
    %399 = arith.mulf %397, %398 : vector<2x64xf32>
    %c1_223 = arith.constant 1 : index
    %c0_224 = arith.constant 0 : index
    %c0_225 = arith.constant 0 : index
    %400 = vector.load %arg11[%c1_223, %c0_224, %c0_225] : memref<2x64x128xf32, #tpu.memory_space<vmem>>, vector<1x64x128xf32>
    %401 = vector.shape_cast %400 : vector<1x64x128xf32> to vector<64x128xf32>
    %cst_226 = arith.constant dense<0.000000e+00> : vector<2x128xf32>
    %402 = tpu.matmul %399, %401, %cst_226 {dimension_numbers = #tpu.dot_dimension_numbers<[1], [0], [0], [1], [0, 0, 1, 1], [], []>} : vector<2x64xf32>, vector<64x128xf32>, vector<2x128xf32> -> vector<2x128xf32>
    %cst_227 = arith.constant 0.000000e+00 : f32
    %403 = vector.broadcast %cst_227 : f32 to vector<2x128xf32>
    %404 = arith.maximumf %402, %403 : vector<2x128xf32>
    %c1_228 = arith.constant 1 : index
    %c0_229 = arith.constant 0 : index
    %c0_230 = arith.constant 0 : index
    %405 = vector.load %arg12[%c1_228, %c0_229, %c0_230] : memref<2x128x64xf32, #tpu.memory_space<vmem>>, vector<1x128x64xf32>
    %406 = vector.shape_cast %405 : vector<1x128x64xf32> to vector<128x64xf32>
    %cst_231 = arith.constant dense<0.000000e+00> : vector<2x64xf32>
    %407 = tpu.matmul %404, %406, %cst_231 {dimension_numbers = #tpu.dot_dimension_numbers<[1], [0], [0], [1], [0, 0, 1, 1], [], []>} : vector<2x128xf32>, vector<128x64xf32>, vector<2x64xf32> -> vector<2x64xf32>
    %408 = arith.addf %385, %407 : vector<2x64xf32>
    %c0_232 = arith.constant 0 : index
    %c0_233 = arith.constant 0 : index
    %409 = vector.load %arg13[%c0_232, %c0_233] : memref<1x64xf32, #tpu.memory_space<vmem>>, vector<1x64xf32>
    %410 = arith.mulf %408, %408 : vector<2x64xf32>
    %cst_234 = arith.constant dense<0.000000e+00> : vector<2xf32>
    %411 = vector.multi_reduction <add>, %410, %cst_234 [1] : vector<2x64xf32> to vector<2xf32>
    %412 = vector.shape_cast %411 : vector<2xf32> to vector<2x1xf32>
    %cst_235 = arith.constant 6.400000e+01 : f32
    %413 = vector.broadcast %cst_235 : f32 to vector<2x1xf32>
    %414 = arith.divf %412, %413 : vector<2x1xf32>
    %cst_236 = arith.constant 9.99999997E-7 : f32
    %415 = vector.broadcast %cst_236 : f32 to vector<2x1xf32>
    %416 = arith.addf %414, %415 : vector<2x1xf32>
    %417 = math.rsqrt %416 : vector<2x1xf32>
    %418 = vector.broadcast %417 : vector<2x1xf32> to vector<2x64xf32>
    %419 = arith.mulf %408, %418 : vector<2x64xf32>
    %420 = vector.broadcast %409 : vector<1x64xf32> to vector<2x64xf32>
    %421 = arith.mulf %419, %420 : vector<2x64xf32>
    %cst_237 = arith.constant 1.250000e-01 : f32
    %422 = vector.broadcast %cst_237 : f32 to vector<2x64xf32>
    %423 = arith.mulf %421, %422 : vector<2x64xf32>
    %c0_238 = arith.constant 0 : index
    %c0_239 = arith.constant 0 : index
    %424 = vector.load %arg14[%c0_238, %c0_239] : memref<64x256xf32, #tpu.memory_space<vmem>>, vector<64x256xf32>
    %cst_240 = arith.constant dense<0.000000e+00> : vector<2x256xf32>
    %425 = tpu.matmul %423, %424, %cst_240 {dimension_numbers = #tpu.dot_dimension_numbers<[1], [0], [0], [1], [0, 0, 1, 1], [], []>} : vector<2x64xf32>, vector<64x256xf32>, vector<2x256xf32> -> vector<2x256xf32>
    %c0_241 = arith.constant 0 : index
    %c0_242 = arith.constant 0 : index
    %426 = vector.load %arg23[%c0_241, %c0_242] : memref<2x256xf32, #tpu.memory_space<vmem>>, vector<2x256xf32>
    tpu.vector_store %arg23[%c0_241, %c0_242], %425 {strides = array<i32>} : memref<2x256xf32, #tpu.memory_space<vmem>>, vector<2x256xf32>,
    return
  }
  func.func @transform_0(%arg0: i32) -> (i32, i32) {
    %c0_i32 = arith.constant 0 : i32
    %c0_i32_0 = arith.constant 0 : i32
    %c0_i32_1 = arith.constant 0 : i32
    return %c0_i32, %c0_i32_0 : i32, i32
  }
  func.func @transform_1(%arg0: i32) -> (i32, i32) {
    %c0_i32 = arith.constant 0 : i32
    %c0_i32_0 = arith.constant 0 : i32
    %c0_i32_1 = arith.constant 0 : i32
    return %c0_i32, %c0_i32_0 : i32, i32
  }
  func.func @transform_2(%arg0: i32) -> (i32, i32) {
    %c0_i32 = arith.constant 0 : i32
    %c0_i32_0 = arith.constant 0 : i32
    %c0_i32_1 = arith.constant 0 : i32
    return %c0_i32, %c0_i32_0 : i32, i32
  }
  func.func @transform_3(%arg0: i32) -> (i32, i32, i32) {
    %c0_i32 = arith.constant 0 : i32
    %c0_i32_0 = arith.constant 0 : i32
    %c0_i32_1 = arith.constant 0 : i32
    %c0_i32_2 = arith.constant 0 : i32
    return %c0_i32, %c0_i32_0, %c0_i32_1 : i32, i32, i32
  }
  func.func @transform_4(%arg0: i32) -> (i32, i32, i32) {
    %c0_i32 = arith.constant 0 : i32
    %c0_i32_0 = arith.constant 0 : i32
    %c0_i32_1 = arith.constant 0 : i32
    %c0_i32_2 = arith.constant 0 : i32
    return %c0_i32, %c0_i32_0, %c0_i32_1 : i32, i32, i32
  }
  func.func @transform_5(%arg0: i32) -> (i32, i32, i32) {
    %c0_i32 = arith.constant 0 : i32
    %c0_i32_0 = arith.constant 0 : i32
    %c0_i32_1 = arith.constant 0 : i32
    %c0_i32_2 = arith.constant 0 : i32
    return %c0_i32, %c0_i32_0, %c0_i32_1 : i32, i32, i32
  }
  func.func @transform_6(%arg0: i32) -> (i32, i32, i32) {
    %c0_i32 = arith.constant 0 : i32
    %c0_i32_0 = arith.constant 0 : i32
    %c0_i32_1 = arith.constant 0 : i32
    %c0_i32_2 = arith.constant 0 : i32
    return %c0_i32, %c0_i32_0, %c0_i32_1 : i32, i32, i32
  }
  func.func @transform_7(%arg0: i32) -> (i32, i32, i32) {
    %c0_i32 = arith.constant 0 : i32
    %c0_i32_0 = arith.constant 0 : i32
    %c0_i32_1 = arith.constant 0 : i32
    %c0_i32_2 = arith.constant 0 : i32
    return %c0_i32, %c0_i32_0, %c0_i32_1 : i32, i32, i32
  }
  func.func @transform_8(%arg0: i32) -> (i32, i32, i32) {
    %c0_i32 = arith.constant 0 : i32
    %c0_i32_0 = arith.constant 0 : i32
    %c0_i32_1 = arith.constant 0 : i32
    %c0_i32_2 = arith.constant 0 : i32
    return %c0_i32, %c0_i32_0, %c0_i32_1 : i32, i32, i32
  }
  func.func @transform_9(%arg0: i32) -> (i32, i32, i32) {
    %c0_i32 = arith.constant 0 : i32
    %c0_i32_0 = arith.constant 0 : i32
    %c0_i32_1 = arith.constant 0 : i32
    %c0_i32_2 = arith.constant 0 : i32
    return %c0_i32, %c0_i32_0, %c0_i32_1 : i32, i32, i32
  }
  func.func @transform_10(%arg0: i32) -> (i32, i32, i32) {
    %c0_i32 = arith.constant 0 : i32
    %c0_i32_0 = arith.constant 0 : i32
    %c0_i32_1 = arith.constant 0 : i32
    %c0_i32_2 = arith.constant 0 : i32
    return %c0_i32, %c0_i32_0, %c0_i32_1 : i32, i32, i32
  }
  func.func @transform_11(%arg0: i32) -> (i32, i32, i32) {
    %c0_i32 = arith.constant 0 : i32
    %c0_i32_0 = arith.constant 0 : i32
    %c0_i32_1 = arith.constant 0 : i32
    %c0_i32_2 = arith.constant 0 : i32
    return %c0_i32, %c0_i32_0, %c0_i32_1 : i32, i32, i32
  }
  func.func @transform_12(%arg0: i32) -> (i32, i32) {
    %c0_i32 = arith.constant 0 : i32
    %c0_i32_0 = arith.constant 0 : i32
    %c0_i32_1 = arith.constant 0 : i32
    return %c0_i32, %c0_i32_0 : i32, i32
  }
  func.func @transform_13(%arg0: i32) -> (i32, i32) {
    %c0_i32 = arith.constant 0 : i32
    %c0_i32_0 = arith.constant 0 : i32
    %c0_i32_1 = arith.constant 0 : i32
    return %c0_i32, %c0_i32_0 : i32, i32
  }
  func.func @transform_14(%arg0: i32) -> (i32, i32, i32) {
    %c0_i32 = arith.constant 0 : i32
    %c0_i32_0 = arith.constant 0 : i32
    %c0_i32_1 = arith.constant 0 : i32
    %c0_i32_2 = arith.constant 0 : i32
    return %c0_i32, %c0_i32_0, %c0_i32_1 : i32, i32, i32
  }
  func.func @transform_15(%arg0: i32) -> (i32, i32, i32) {
    %c0_i32 = arith.constant 0 : i32
    %c0_i32_0 = arith.constant 0 : i32
    %c0_i32_1 = arith.constant 0 : i32
    %c0_i32_2 = arith.constant 0 : i32
    return %c0_i32, %c0_i32_0, %c0_i32_1 : i32, i32, i32
  }
  func.func @transform_16(%arg0: i32) -> (i32, i32, i32) {
    %c0_i32 = arith.constant 0 : i32
    %c0_i32_0 = arith.constant 0 : i32
    %c0_i32_1 = arith.constant 0 : i32
    %c0_i32_2 = arith.constant 0 : i32
    return %c0_i32, %c0_i32_0, %c0_i32_1 : i32, i32, i32
  }
  func.func @transform_17(%arg0: i32) -> (i32, i32, i32) {
    %c0_i32 = arith.constant 0 : i32
    %c0_i32_0 = arith.constant 0 : i32
    %c0_i32_1 = arith.constant 0 : i32
    %c0_i32_2 = arith.constant 0 : i32
    return %c0_i32, %c0_i32_0, %c0_i32_1 : i32, i32, i32
  }
  func.func @transform_18(%arg0: i32) -> (i32, i32, i32) {
    %c0_i32 = arith.constant 0 : i32
    %c0_i32_0 = arith.constant 0 : i32
    %c0_i32_1 = arith.constant 0 : i32
    %c0_i32_2 = arith.constant 0 : i32
    return %c0_i32, %c0_i32_0, %c0_i32_1 : i32, i32, i32
  }
  func.func @transform_19(%arg0: i32) -> (i32, i32, i32) {
    %c0_i32 = arith.constant 0 : i32
    %c0_i32_0 = arith.constant 0 : i32
    %c0_i32_1 = arith.constant 0 : i32
    %c0_i32_2 = arith.constant 0 : i32
    return %c0_i32, %c0_i32_0, %c0_i32_1 : i32, i32, i32
  }
  func.func @transform_20(%arg0: i32) -> (i32, i32, i32) {
    %c0_i32 = arith.constant 0 : i32
    %c0_i32_0 = arith.constant 0 : i32
    %c0_i32_1 = arith.constant 0 : i32
    %c0_i32_2 = arith.constant 0 : i32
    return %c0_i32, %c0_i32_0, %c0_i32_1 : i32, i32, i32
  }
  func.func @transform_21(%arg0: i32) -> (i32, i32, i32) {
    %c0_i32 = arith.constant 0 : i32
    %c0_i32_0 = arith.constant 0 : i32
    %c0_i32_1 = arith.constant 0 : i32
    %c0_i32_2 = arith.constant 0 : i32
    return %c0_i32, %c0_i32_0, %c0_i32_1 : i32, i32, i32
  }
  func.func @transform_22(%arg0: i32) -> (i32, i32) {
    %c0_i32 = arith.constant 0 : i32
    %c0_i32_0 = arith.constant 0 : i32
    %c0_i32_1 = arith.constant 0 : i32
    return %c0_i32, %c0_i32_0 : i32, i32
  }
  func.func @transform_23(%arg0: i32) -> (i32, i32, i32) {
    %c0_i32 = arith.constant 0 : i32
    %c0_i32_0 = arith.constant 0 : i32
    %c0_i32_1 = arith.constant 0 : i32
    %c0_i32_2 = arith.constant 0 : i32
    return %c0_i32, %c0_i32_0, %c0_i32_1 : i32, i32, i32
  }
  func.func @transform_24(%arg0: i32) -> (i32, i32, i32) {
    %c0_i32 = arith.constant 0 : i32
    %c0_i32_0 = arith.constant 0 : i32
    %c0_i32_1 = arith.constant 0 : i32
    %c0_i32_2 = arith.constant 0 : i32
    return %c0_i32, %c0_i32_0, %c0_i32_1 : i32, i32, i32
  }
  func.func @transform_25(%arg0: i32) -> (i32, i32, i32) {
    %c0_i32 = arith.constant 0 : i32
    %c0_i32_0 = arith.constant 0 : i32
    %c0_i32_1 = arith.constant 0 : i32
    %c0_i32_2 = arith.constant 0 : i32
    return %c0_i32, %c0_i32_0, %c0_i32_1 : i32, i32, i32
  }
  func.func @transform_26(%arg0: i32) -> (i32, i32, i32) {
    %c0_i32 = arith.constant 0 : i32
    %c0_i32_0 = arith.constant 0 : i32
    %c0_i32_1 = arith.constant 0 : i32
    %c0_i32_2 = arith.constant 0 : i32
    return %c0_i32, %c0_i32_0, %c0_i32_1 : i32, i32, i32
  }
}

</mosaic_0001>

<llo_original>
// kernel: t5_decoder_step.1
$region0: #{t5_decoder_step.1}
  #allocation0 [shape = 'u32[]', space=smem, size = 0x4, offset = 0x4, fixed_abs, tag = 'smem constant byte address 0x4 - core index']
  #allocation1 [shape = 'u32[144,128]{1,0:T(1,128)}', space=vmem, size = 0x12000, scoped, tag = 'internal scratch']
  #allocation2 [shape = 'f32[2,64]{1,0:T(2,128)}', space=vmem, size = 0x400, scoped, tag = 'scratch operand']
  %s0 = inlined_call_operand.vmem [shape: s32[2,1], index: 0, kind: input, shape index: {}]
  %s1 = inlined_call_operand.vmem [shape: f32[256,64], index: 1, kind: input, shape index: {}]
  %s2 = inlined_call_operand.vmem [shape: f32[8,2], index: 2, kind: input, shape index: {}]
  %s3 = inlined_call_operand.vmem [shape: f32[2,1,64], index: 3, kind: input, shape index: {}]
  %s4 = inlined_call_operand.vmem [shape: f32[2,1,64], index: 4, kind: input, shape index: {}]
  %s5 = inlined_call_operand.vmem [shape: f32[2,1,64], index: 5, kind: input, shape index: {}]
  %s6 = inlined_call_operand.vmem [shape: f32[2,64,192], index: 6, kind: input, shape index: {}]
  %s7 = inlined_call_operand.vmem [shape: f32[2,64,64], index: 7, kind: input, shape index: {}]
  %s8 = inlined_call_operand.vmem [shape: f32[2,64,64], index: 8, kind: input, shape index: {}]
  %s9 = inlined_call_operand.vmem [shape: f32[2,64,64], index: 9, kind: input, shape index: {}]
  %s10 = inlined_call_operand.vmem [shape: f32[2,64,128], index: 10, kind: input, shape index: {}]
  %s11 = inlined_call_operand.vmem [shape: f32[2,128,64], index: 11, kind: input, shape index: {}]
  %s12 = inlined_call_operand.vmem [shape: f32[1,64], index: 12, kind: input, shape index: {}]
  %s13 = inlined_call_operand.vmem [shape: f32[64,256], index: 13, kind: input, shape index: {}]
  %s14 = inlined_call_operand.vmem [shape: f32[2,7,64], index: 14, kind: input, shape index: {}]
  %s15 = inlined_call_operand.vmem [shape: f32[2,7,64], index: 15, kind: input, shape index: {}]
  %s16 = inlined_call_operand.vmem [shape: f32[2,8,64], index: 16, kind: input, shape index: {}]
  %s17 = inlined_call_operand.vmem [shape: f32[2,8,64], index: 17, kind: input, shape index: {}]
  %s18 = inlined_call_operand.vmem [shape: f32[2,7,64], index: 18, kind: input, shape index: {}]
  %s19 = inlined_call_operand.vmem [shape: f32[2,7,64], index: 19, kind: input, shape index: {}]
  %s20 = inlined_call_operand.vmem [shape: f32[2,8,64], index: 20, kind: input, shape index: {}]
  %s21 = inlined_call_operand.vmem [shape: f32[2,8,64], index: 21, kind: input, shape index: {}]
  %s22 = inlined_call_operand.vmem [shape: f32[2,256], index: 22, kind: output, shape index: {0}]
  %s23 = inlined_call_operand.vmem [shape: f32[2,8,64], index: 23, kind: output, shape index: {1}]
  %s24 = inlined_call_operand.vmem [shape: f32[2,8,64], index: 24, kind: output, shape index: {2}]
  %s25 = inlined_call_operand.vmem [shape: f32[2,8,64], index: 25, kind: output, shape index: {3}]
  %s26 = inlined_call_operand.vmem [shape: f32[2,8,64], index: 26, kind: output, shape index: {4}]
  %27 = xla_tuple %s22, %s23, %s24, %s25, %s26
  %s28 = sld [smem:[#allocation0]]
  $region130: #{t5_decoder_step.1} parent=0
    _
  %s30 = ssub.s32 1, %s28
  %s31 = scalar_select 0, %s30, %s28
  // Predicated region
  $region2: #{t5_decoder_step.1} parent=0 // pred_check
    _
  $region3: #{t5_decoder_step.1} parent=0 // pred_check_branch
    %33 = sbr.rel (0) target = $region5
  $region4: #{t5_decoder_step.1} parent=0 // pred_region
    _
  $region5: #{t5_decoder_step.1} parent=0 // pred_fallthru
    _
  // Predicated region
  $region6: #{t5_decoder_step.1} parent=0 // pred_check
    _
  $region7: #{t5_decoder_step.1} parent=0 // pred_check_branch
    %35 = sbr.rel (0) target = $region9
  $region8: #{t5_decoder_step.1} parent=0 // pred_region
    _
  $region9: #{t5_decoder_step.1} parent=0 // pred_fallthru
    _
  // Predicated region
  $region10: #{t5_decoder_step.1} parent=0 // pred_check
    _
  $region11: #{t5_decoder_step.1} parent=0 // pred_check_branch
    %37 = sbr.rel (0) target = $region13
  $region12: #{t5_decoder_step.1} parent=0 // pred_region
    _
  $region13: #{t5_decoder_step.1} parent=0 // pred_fallthru
    _
  // Predicated region
  $region14: #{t5_decoder_step.1} parent=0 // pred_check
    _
  $region15: #{t5_decoder_step.1} parent=0 // pred_check_branch
    %39 = sbr.rel (0) target = $region17
  $region16: #{t5_decoder_step.1} parent=0 // pred_region
    _
  $region17: #{t5_decoder_step.1} parent=0 // pred_fallthru
    _
  // Predicated region
  $region18: #{t5_decoder_step.1} parent=0 // pred_check
    _
  $region19: #{t5_decoder_step.1} parent=0 // pred_check_branch
    %41 = sbr.rel (0) target = $region21
  $region20: #{t5_decoder_step.1} parent=0 // pred_region
    _
  $region21: #{t5_decoder_step.1} parent=0 // pred_fallthru
    _
  // Predicated region
  $region22: #{t5_decoder_step.1} parent=0 // pred_check
    _
  $region23: #{t5_decoder_step.1} parent=0 // pred_check_branch
    %43 = sbr.rel (0) target = $region25
  $region24: #{t5_decoder_step.1} parent=0 // pred_region
    _
  $region25: #{t5_decoder_step.1} parent=0 // pred_fallthru
    _
  // Predicated region
  $region26: #{t5_decoder_step.1} parent=0 // pred_check
    _
  $region27: #{t5_decoder_step.1} parent=0 // pred_check_branch
    %45 = sbr.rel (0) target = $region29
  $region28: #{t5_decoder_step.1} parent=0 // pred_region
    _
  $region29: #{t5_decoder_step.1} parent=0 // pred_fallthru
    _
  // Predicated region
  $region30: #{t5_decoder_step.1} parent=0 // pred_check
    _
  $region31: #{t5_decoder_step.1} parent=0 // pred_check_branch
    %47 = sbr.rel (0) target = $region33
  $region32: #{t5_decoder_step.1} parent=0 // pred_region
    _
  $region33: #{t5_decoder_step.1} parent=0 // pred_fallthru
    _
  // Predicated region
  $region34: #{t5_decoder_step.1} parent=0 // pred_check
    _
  $region35: #{t5_decoder_step.1} parent=0 // pred_check_branch
    %49 = sbr.rel (0) target = $region37
  $region36: #{t5_decoder_step.1} parent=0 // pred_region
    _
  $region37: #{t5_decoder_step.1} parent=0 // pred_fallthru
    _
  // Predicated region
  $region38: #{t5_decoder_step.1} parent=0 // pred_check
    _
  $region39: #{t5_decoder_step.1} parent=0 // pred_check_branch
    %51 = sbr.rel (0) target = $region41
  $region40: #{t5_decoder_step.1} parent=0 // pred_region
    _
  $region41: #{t5_decoder_step.1} parent=0 // pred_fallthru
    _
  // Predicated region
  $region42: #{t5_decoder_step.1} parent=0 // pred_check
    _
  $region43: #{t5_decoder_step.1} parent=0 // pred_check_branch
    %53 = sbr.rel (0) target = $region45
  $region44: #{t5_decoder_step.1} parent=0 // pred_region
    _
  $region45: #{t5_decoder_step.1} parent=0 // pred_fallthru
    _
  // Predicated region
  $region46: #{t5_decoder_step.1} parent=0 // pred_check
    _
  $region47: #{t5_decoder_step.1} parent=0 // pred_check_branch
    %55 = sbr.rel (0) target = $region49
  $region48: #{t5_decoder_step.1} parent=0 // pred_region
    _
  $region49: #{t5_decoder_step.1} parent=0 // pred_fallthru
    _
  // Predicated region
  $region50: #{t5_decoder_step.1} parent=0 // pred_check
    _
  $region51: #{t5_decoder_step.1} parent=0 // pred_check_branch
    %57 = sbr.rel (0) target = $region53
  $region52: #{t5_decoder_step.1} parent=0 // pred_region
    _
  $region53: #{t5_decoder_step.1} parent=0 // pred_fallthru
    _
  // Predicated region
  $region54: #{t5_decoder_step.1} parent=0 // pred_check
    _
  $region55: #{t5_decoder_step.1} parent=0 // pred_check_branch
    %59 = sbr.rel (0) target = $region57
  $region56: #{t5_decoder_step.1} parent=0 // pred_region
    _
  $region57: #{t5_decoder_step.1} parent=0 // pred_fallthru
    _
  // Predicated region
  $region58: #{t5_decoder_step.1} parent=0 // pred_check
    _
  $region59: #{t5_decoder_step.1} parent=0 // pred_check_branch
    %61 = sbr.rel (0) target = $region61
  $region60: #{t5_decoder_step.1} parent=0 // pred_region
    _
  $region61: #{t5_decoder_step.1} parent=0 // pred_fallthru
    _
  // Predicated region
  $region62: #{t5_decoder_step.1} parent=0 // pred_check
    _
  $region63: #{t5_decoder_step.1} parent=0 // pred_check_branch
    %63 = sbr.rel (0) target = $region65
  $region64: #{t5_decoder_step.1} parent=0 // pred_region
    _
  $region65: #{t5_decoder_step.1} parent=0 // pred_fallthru
    _
  // Predicated region
  $region66: #{t5_decoder_step.1} parent=0 // pred_check
    _
  $region67: #{t5_decoder_step.1} parent=0 // pred_check_branch
    %65 = sbr.rel (0) target = $region69
  $region68: #{t5_decoder_step.1} parent=0 // pred_region
    _
  $region69: #{t5_decoder_step.1} parent=0 // pred_fallthru
    _
  // Predicated region
  $region70: #{t5_decoder_step.1} parent=0 // pred_check
    _
  $region71: #{t5_decoder_step.1} parent=0 // pred_check_branch
    %67 = sbr.rel (0) target = $region73
  $region72: #{t5_decoder_step.1} parent=0 // pred_region
    _
  $region73: #{t5_decoder_step.1} parent=0 // pred_fallthru
    _
  // Predicated region
  $region74: #{t5_decoder_step.1} parent=0 // pred_check
    _
  $region75: #{t5_decoder_step.1} parent=0 // pred_check_branch
    %69 = sbr.rel (0) target = $region77
  $region76: #{t5_decoder_step.1} parent=0 // pred_region
    _
  $region77: #{t5_decoder_step.1} parent=0 // pred_fallthru
    _
  // Predicated region
  $region78: #{t5_decoder_step.1} parent=0 // pred_check
    _
  $region79: #{t5_decoder_step.1} parent=0 // pred_check_branch
    %71 = sbr.rel (0) target = $region81
  $region80: #{t5_decoder_step.1} parent=0 // pred_region
    _
  $region81: #{t5_decoder_step.1} parent=0 // pred_fallthru
    _
  // Predicated region
  $region82: #{t5_decoder_step.1} parent=0 // pred_check
    _
  $region83: #{t5_decoder_step.1} parent=0 // pred_check_branch
    %73 = sbr.rel (0) target = $region85
  $region84: #{t5_decoder_step.1} parent=0 // pred_region
    _
  $region85: #{t5_decoder_step.1} parent=0 // pred_fallthru
    _
  // Predicated region
  $region86: #{t5_decoder_step.1} parent=0 // pred_check
    _
  $region87: #{t5_decoder_step.1} parent=0 // pred_check_branch
    %75 = sbr.rel (0) target = $region89
  $region88: #{t5_decoder_step.1} parent=0 // pred_region
    _
  $region89: #{t5_decoder_step.1} parent=0 // pred_fallthru
    _
  %v76 = vlaneseq
  %v77 = vshrl.u32 %v76, 7
  %v78 = vadd.s32 %v77, 8
  %v79 = vadd.s32 %v77, 16
  %v80 = vadd.s32 %v77, 24
  %v81 = vadd.s32 %v77, 32
  %v82 = vadd.s32 %v77, 40
  %v83 = vadd.s32 %v77, 48
  %v84 = vadd.s32 %v77, 56
  %v85 = vlaneseq
  %v86 = vand.u32 %v85, 127
  %v87 = vmul.u32 %v86, 16
  %vm88 = vcmp.ge.s32.totalorder %v77, %v87
  %vm89 = vcmp.ge.s32.totalorder %v78, %v87
  %vm90 = vcmp.ge.s32.totalorder %v79, %v87
  %vm91 = vcmp.ge.s32.totalorder %v80, %v87
  %vm92 = vcmp.ge.s32.totalorder %v81, %v87
  %vm93 = vcmp.ge.s32.totalorder %v82, %v87
  %vm94 = vcmp.ge.s32.totalorder %v83, %v87
  %vm95 = vcmp.ge.s32.totalorder %v84, %v87
  %v96 = vadd.s32 %v87, 16
  %vm97 = vcmp.lt.s32.totalorder %v77, %v96
  %vm98 = vcmp.lt.s32.totalorder %v78, %v96
  %vm99 = vcmp.lt.s32.totalorder %v79, %v96
  %vm100 = vcmp.lt.s32.totalorder %v80, %v96
  %vm101 = vcmp.lt.s32.totalorder %v81, %v96
  %vm102 = vcmp.lt.s32.totalorder %v82, %v96
  %vm103 = vcmp.lt.s32.totalorder %v83, %v96
  %vm104 = vcmp.lt.s32.totalorder %v84, %v96
  %vm105 = vmand %vm88, %vm97
  %vm106 = vmand %vm89, %vm98
  %vm107 = vmand %vm90, %vm99
  %vm108 = vmand %vm91, %vm100
  %vm109 = vmand %vm92, %vm101
  %vm110 = vmand %vm93, %vm102
  %vm111 = vmand %vm94, %vm103
  %vm112 = vmand %vm95, %vm104
  %v113 = vsel %vm105, 1, 0
  %v114 = vsel %vm106, 1, 0
  %v115 = vsel %vm107, 1, 0
  %v116 = vsel %vm108, 1, 0
  %v117 = vsel %vm109, 1, 0
  %v118 = vsel %vm110, 1, 0
  %v119 = vsel %vm111, 1, 0
  %v120 = vsel %vm112, 1, 0
  %v121 = vcvt.s32.f32 %v113
  %v122 = vcvt.s32.f32 %v114
  %v123 = vcvt.s32.f32 %v115
  %v124 = vcvt.s32.f32 %v116
  %v125 = vcvt.s32.f32 %v117
  %v126 = vcvt.s32.f32 %v118
  %v127 = vcvt.s32.f32 %v119
  %v128 = vcvt.s32.f32 %v120
  %v129 = vmul.u32 %v77, 16
  %vm130 = vcmp.ge.s32.totalorder %v86, %v129
  %v131 = vadd.s32 %v129, 16
  %vm132 = vcmp.lt.s32.totalorder %v86, %v131
  %vm133 = vmand %vm130, %vm132
  %v134 = vsel %vm133, 1, 0
  %v135 = vcvt.s32.f32 %v134
  %v136 = vadd.s32 %v86, 128
  %v137 = vld [vmem:[%s0] sm:$0x3]
  %138 = vset.pattern.permute.xlu0 0
  %139 = vperm.xlu0 %138, %v137
  %v140 = vpop.permute.xlu0 %139
  %vm141 = vcmp.eq.s32.totalorder %v86, %v140
  %vm142 = vcmp.eq.s32.totalorder %v136, %v140
  %v143 = vsel %vm141, 1, 0
  %v144 = vsel %vm142, 1, 0
  %v145 = vcvt.s32.f32 %v143
  %v146 = vcvt.s32.f32 %v144
  %v147 = vld [vmem:[%s1] sm:$0xff]
  %v148 = vld [vmem:[%s1 + $0x8] sm:$0xff]
  %v149 = vld [vmem:[%s1 + $0x10] sm:$0xff]
  %v150 = vld [vmem:[%s1 + $0x18] sm:$0xff]
  %v151 = vld [vmem:[%s1 + $0x20] sm:$0xff]
  %v152 = vld [vmem:[%s1 + $0x28] sm:$0xff]
  %v153 = vld [vmem:[%s1 + $0x30] sm:$0xff]
  %v154 = vld [vmem:[%s1 + $0x38] sm:$0xff]
  %v155 = vld [vmem:[%s1 + $0x40] sm:$0xff]
  %v156 = vld [vmem:[%s1 + $0x48] sm:$0xff]
  %v157 = vld [vmem:[%s1 + $0x50] sm:$0xff]
  %v158 = vld [vmem:[%s1 + $0x58] sm:$0xff]
  %v159 = vld [vmem:[%s1 + $0x60] sm:$0xff]
  %v160 = vld [vmem:[%s1 + $0x68] sm:$0xff]
  %v161 = vld [vmem:[%s1 + $0x70] sm:$0xff]
  %v162 = vld [vmem:[%s1 + $0x78] sm:$0xff]
  %v163 = vld [vmem:[%s1 + $0x80] sm:$0xff]
  %v164 = vld [vmem:[%s1 + $0x88] sm:$0xff]
  %v165 = vld [vmem:[%s1 + $0x90] sm:$0xff]
  %v166 = vld [vmem:[%s1 + $0x98] sm:$0xff]
  %v167 = vld [vmem:[%s1 + $0xa0] sm:$0xff]
  %v168 = vld [vmem:[%s1 + $0xa8] sm:$0xff]
  %v169 = vld [vmem:[%s1 + $0xb0] sm:$0xff]
  %v170 = vld [vmem:[%s1 + $0xb8] sm:$0xff]
  %v171 = vld [vmem:[%s1 + $0xc0] sm:$0xff]
  %v172 = vld [vmem:[%s1 + $0xc8] sm:$0xff]
  %v173 = vld [vmem:[%s1 + $0xd0] sm:$0xff]
  %v174 = vld [vmem:[%s1 + $0xd8] sm:$0xff]
  %v175 = vld [vmem:[%s1 + $0xe0] sm:$0xff]
  %v176 = vld [vmem:[%s1 + $0xe8] sm:$0xff]
  %v177 = vld [vmem:[%s1 + $0xf0] sm:$0xff]
  %v178 = vld [vmem:[%s1 + $0xf8] sm:$0xff]
  %179 = vmatprep.subr.mxu0 0.0
  %180 = vmatpush1.msra.mxu0 %v147
  %181 = vmatprep.subr.mxu0 0.0
  %182 = vmatpush1.msra.mxu0 %v148
  %183 = vmatprep.subr.mxu0 0.0
  %184 = vmatpush1.msra.mxu0 %v149
  %185 = vmatprep.subr.mxu0 0.0
  %186 = vmatpush1.msra.mxu0 %v150
  %187 = vmatprep.subr.mxu0 0.0
  %188 = vmatpush1.msra.mxu0 %v151
  %189 = vmatprep.subr.mxu0 0.0
  %190 = vmatpush1.msra.mxu0 %v152
  %191 = vmatprep.subr.mxu0 0.0
  %192 = vmatpush1.msra.mxu0 %v153
  %193 = vmatprep.subr.mxu0 0.0
  %194 = vmatpush1.msra.mxu0 %v154
  %195 = vmatprep.subr.mxu0 0.0
  %196 = vmatpush1.msra.mxu0 %v155
  %197 = vmatprep.subr.mxu0 0.0
  %198 = vmatpush1.msra.mxu0 %v156
  %199 = vmatprep.subr.mxu0 0.0
  %200 = vmatpush1.msra.mxu0 %v157
  %201 = vmatprep.subr.mxu0 0.0
  %202 = vmatpush1.msra.mxu0 %v158
  %203 = vmatprep.subr.mxu0 0.0
  %204 = vmatpush1.msra.mxu0 %v159
  %205 = vmatprep.subr.mxu0 0.0
  %206 = vmatpush1.msra.mxu0 %v160
  %207 = vmatprep.subr.mxu0 0.0
  %208 = vmatpush1.msra.mxu0 %v161
  %209 = vmatprep.subr.mxu0 0.0
  %210 = vmatpush1.msra.mxu0 %v162
  %211 = vmatprep.subr.mxu0 0.0
  %212 = vmatpush1.msra.mxu0 %v163
  %213 = vmatprep.subr.mxu0 0.0
  %214 = vmatpush1.msra.mxu0 %v164
  %215 = vmatprep.subr.mxu0 0.0
  %216 = vmatpush1.msra.mxu0 %v165
  %217 = vmatprep.subr.mxu0 0.0
  %218 = vmatpush1.msra.mxu0 %v166
  %219 = vmatprep.subr.mxu0 0.0
  %220 = vmatpush1.msra.mxu0 %v167
  %221 = vmatprep.subr.mxu0 0.0
  %222 = vmatpush1.msra.mxu0 %v168
  %223 = vmatprep.subr.mxu0 0.0
  %224 = vmatpush1.msra.mxu0 %v169
  %225 = vmatprep.subr.mxu0 0.0
  %226 = vmatpush1.msra.mxu0 %v170
  %227 = vmatprep.subr.mxu0 0.0
  %228 = vmatpush1.msra.mxu0 %v171
  %229 = vmatprep.subr.mxu0 0.0
  %230 = vmatpush1.msra.mxu0 %v172
  %231 = vmatprep.subr.mxu0 0.0
  %232 = vmatpush1.msra.mxu0 %v173
  %233 = vmatprep.subr.mxu0 0.0
  %234 = vmatpush1.msra.mxu0 %v174
  %235 = vmatprep.subr.mxu0 0.0
  %236 = vmatpush1.msra.mxu0 %v175
  %237 = vmatprep.subr.mxu0 0.0
  %238 = vmatpush1.msra.mxu0 %v176
  %239 = vmatprep.subr.mxu0 0.0
  %240 = vmatpush1.msra.mxu0 %v177
  %241 = vmatprep.subr.mxu0 0.0
  %242 = vmatpush1.msra.mxu0 %v178
  %243 = vmatprep.mubr.f32.mxu0 %v146
  %244 = vmatmul.mubr.f32.gmra.mrb[0].mxu0 %v145
  %v245 = vpop.f32.mrb[0].mxu0
  %v246 = vadd.f32 0.0, %v245
  %v247 = vpop.f32.mrb[0].mxu0
  %248 = vdwg.mxu0
  %v249 = vld [vmem:[%s2] sm:$0xff]
  %v250 = vsub.f32 1.0, %v249
  %v251 = vmul.f32 %v250, -1e+09
  %v252 = vld [vmem:[%s3] sm:$0x1]
  %v253 = vmul.f32 %v246, %v246
  %vm254 = vcmask 517120
  %v255 = vsel %vm254, %v253, 0.0
  %256 = vadd.xlane.f32.xlu0 %v255
  %v257 = vpop.xlane.xlu0 %256
  %v258 = vrcp.pop 64.0
  %v259 = vmul.f32 %v257, %v258
  %v260 = vadd.f32 %v259, 1e-06
  %v261 = vrsqrt.pop %v260
  %v262 = vmul.f32 %v246, %v261
  %v264 = vlaneseq
  %v265 = vshrl.u32 %v264, 7
  %v266 = vsub.s32 0, %v265
  %v267 = vrot.slane %v252, %v266
  %v269 = vmul.f32 %v262, %v267
  %v270 = vld [vmem:[%s6] sm:$0xff]
  %v271 = vld [vmem:[%s6 + $0x8] sm:$0xff]
  %v272 = vld [vmem:[%s6 + $0x10] sm:$0xff]
  %v273 = vld [vmem:[%s6 + $0x18] sm:$0xff]
  %v274 = vld [vmem:[%s6 + $0x20] sm:$0xff]
  %v275 = vld [vmem:[%s6 + $0x28] sm:$0xff]
  %v276 = vld [vmem:[%s6 + $0x30] sm:$0xff]
  %v277 = vld [vmem:[%s6 + $0x38] sm:$0xff]
  %v278 = vld [vmem:[%s6 + $0x40] sm:$0xff]
  %v279 = vld [vmem:[%s6 + $0x48] sm:$0xff]
  %v280 = vld [vmem:[%s6 + $0x50] sm:$0xff]
  %v281 = vld [vmem:[%s6 + $0x58] sm:$0xff]
  %v282 = vld [vmem:[%s6 + $0x60] sm:$0xff]
  %v283 = vld [vmem:[%s6 + $0x68] sm:$0xff]
  %v284 = vld [vmem:[%s6 + $0x70] sm:$0xff]
  %v285 = vld [vmem:[%s6 + $0x78] sm:$0xff]
  %vm286 = vcmask 523264
  %v288 = vsel %vm286, %v269, 0
  %290 = vmatprep.subr.mxu0 %v271
  %291 = vmatpush1.msra.mxu0 %v270
  %292 = vmatprep.subr.mxu0 %v273
  %293 = vmatpush1.msra.mxu0 %v272
  %294 = vmatprep.subr.mxu0 %v275
  %295 = vmatpush1.msra.mxu0 %v274
  %296 = vmatprep.subr.mxu0 %v277
  %297 = vmatpush1.msra.mxu0 %v276
  %298 = vmatprep.subr.mxu0 %v279
  %299 = vmatpush1.msra.mxu0 %v278
  %300 = vmatprep.subr.mxu0 %v281
  %301 = vmatpush1.msra.mxu0 %v280
  %302 = vmatprep.subr.mxu0 %v283
  %303 = vmatpush1.msra.mxu0 %v282
  %304 = vmatprep.subr.mxu0 %v285
  %305 = vmatpush1.msra.mxu0 %v284
  %306 = vmatprep.subr.mxu0 0.0
  %307 = vmatpush1.msra.mxu0 0.0
  %308 = vmatprep.subr.mxu0 0.0
  %309 = vmatpush1.msra.mxu0 0.0
  %310 = vmatprep.subr.mxu0 0.0
  %311 = vmatpush1.msra.mxu0 0.0
  %312 = vmatprep.subr.mxu0 0.0
  %313 = vmatpush1.msra.mxu0 0.0
  %314 = vmatprep.subr.mxu0 0.0
  %315 = vmatpush1.msra.mxu0 0.0
  %316 = vmatprep.subr.mxu0 0.0
  %317 = vmatpush1.msra.mxu0 0.0
  %318 = vmatprep.subr.mxu0 0.0
  %319 = vmatpush1.msra.mxu0 0.0
  %320 = vmatprep.subr.mxu0 0.0
  %321 = vmatpush1.msra.mxu0 0.0
  %322 = vmatprep.subr.mxu0 0.0
  %323 = vmatpush1.msra.mxu0 0.0
  %324 = vmatprep.subr.mxu0 0.0
  %325 = vmatpush1.msra.mxu0 0.0
  %326 = vmatprep.subr.mxu0 0.0
  %327 = vmatpush1.msra.mxu0 0.0
  %328 = vmatprep.subr.mxu0 0.0
  %329 = vmatpush1.msra.mxu0 0.0
  %330 = vmatprep.subr.mxu0 0.0
  %331 = vmatpush1.msra.mxu0 0.0
  %332 = vmatprep.subr.mxu0 0.0
  %333 = vmatpush1.msra.mxu0 0.0
  %334 = vmatprep.subr.mxu0 0.0
  %335 = vmatpush1.msra.mxu0 0.0
  %336 = vmatprep.subr.mxu0 0.0
  %337 = vmatpush1.msra.mxu0 0.0
  %338 = vmatprep.subr.mxu0 0.0
  %339 = vmatpush1.msra.mxu0 0.0
  %340 = vmatprep.subr.mxu0 0.0
  %341 = vmatpush1.msra.mxu0 0.0
  %342 = vmatprep.subr.mxu0 0.0
  %343 = vmatpush1.msra.mxu0 0.0
  %344 = vmatprep.subr.mxu0 0.0
  %345 = vmatpush1.msra.mxu0 0.0
  %346 = vmatprep.subr.mxu0 0.0
  %347 = vmatpush1.msra.mxu0 0.0
  %348 = vmatprep.subr.mxu0 0.0
  %349 = vmatpush1.msra.mxu0 0.0
  %350 = vmatprep.subr.mxu0 0.0
  %351 = vmatpush1.msra.mxu0 0.0
  %352 = vmatprep.subr.mxu0 0.0
  %353 = vmatpush1.msra.mxu0 0.0
  %354 = vmatprep.mubr.f32.mxu0 0.0
  %355 = vmatmul.mubr.f32.gmra.mrb[0].mxu0 %v288
  %v356 = vpop.f32.mrb[0].mxu0
  %v357 = vadd.f32 0.0, %v356
  %v358 = vpop.f32.mrb[0].mxu0
  %v359 = vadd.f32 0.0, %v358
  %360 = vdwg.mxu0
  %v361 = vld [vmem:[%s14] sm:$0x7f]
  %v362 = vld [vmem:[%s14 + $0x8] sm:$0x7f]
  %vm363 = vcmask 522240
  %364 = vst.msk [vmem:[%s23] sm:$0x7f] %vm363, %v361
  %365 = vst.msk [vmem:[%s23 + $0x8] sm:$0x7f] %vm363, %v362
  %v366 = vld [vmem:[%s15] sm:$0x7f]
  %v367 = vld [vmem:[%s15 + $0x8] sm:$0x7f]
  %368 = vst.msk [vmem:[%s24] sm:$0x7f] %vm363, %v366
  %369 = vst.msk [vmem:[%s24 + $0x8] sm:$0x7f] %vm363, %v367
  %371 = vrot.lane.b32.xlu0 %v357, 64
  %v372 = vpop.permute.xlu0 %371
  %vm374 = vcmask 516096
  %375 = vst.msk [vmem:[%s23 + $0x7] sm:$0x1] %vm374, %v372
  %376 = vst.msk [vmem:[%s24 + $0x7] sm:$0x1] %vm374, %v359
  %s377 = scalar_lea.vmem %s23, 8
  %vm378 = vcmask 517121
  %379 = vst.msk [vmem:[%s377 + $0x6] sm:$0x2] %vm378, %v372
  %s380 = scalar_lea.vmem %s24, 8
  %381 = vst.msk [vmem:[%s380 + $0x6] sm:$0x2] %vm378, %v359
  %v382 = vld [vmem:[%s23] sm:$0xff]
  %v383 = vld [vmem:[%s23 + $0x8] sm:$0xff]
  %v384 = vld [vmem:[%s24] sm:$0xff]
  %v385 = vld [vmem:[%s24 + $0x8] sm:$0xff]
  %v386 = vlaneseq
  %v387 = vshrl.u32 %v386, 7
  %v388 = vsub.s32 0, %v387
  %v389 = vrot.slane %v357, %v388
  %v390 = vmul.f32 %v382, %v389
  %v392 = vsel %vm286, %v390, 0
  %394 = vmatprep.subr.mxu0 0.0
  %395 = vmatpush1.msra.mxu0 %v121
  %396 = vmatprep.subr.mxu0 0.0
  %397 = vmatpush1.msra.mxu0 %v122
  %398 = vmatprep.subr.mxu0 0.0
  %399 = vmatpush1.msra.mxu0 %v123
  %400 = vmatprep.subr.mxu0 0.0
  %401 = vmatpush1.msra.mxu0 %v124
  %402 = vmatprep.subr.mxu0 0.0
  %403 = vmatpush1.msra.mxu0 %v125
  %404 = vmatprep.subr.mxu0 0.0
  %405 = vmatpush1.msra.mxu0 %v126
  %406 = vmatprep.subr.mxu0 0.0
  %407 = vmatpush1.msra.mxu0 %v127
  %408 = vmatprep.subr.mxu0 0.0
  %409 = vmatpush1.msra.mxu0 %v128
  %410 = vmatprep.subr.mxu0 0.0
  %411 = vmatpush1.msra.mxu0 0.0
  %412 = vmatprep.subr.mxu0 0.0
  %413 = vmatpush1.msra.mxu0 0.0
  %414 = vmatprep.subr.mxu0 0.0
  %415 = vmatpush1.msra.mxu0 0.0
  %416 = vmatprep.subr.mxu0 0.0
  %417 = vmatpush1.msra.mxu0 0.0
  %418 = vmatprep.subr.mxu0 0.0
  %419 = vmatpush1.msra.mxu0 0.0
  %420 = vmatprep.subr.mxu0 0.0
  %421 = vmatpush1.msra.mxu0 0.0
  %422 = vmatprep.subr.mxu0 0.0
  %423 = vmatpush1.msra.mxu0 0.0
  %424 = vmatprep.subr.mxu0 0.0
  %425 = vmatpush1.msra.mxu0 0.0
  %426 = vmatprep.subr.mxu0 0.0
  %427 = vmatpush1.msra.mxu0 0.0
  %428 = vmatprep.subr.mxu0 0.0
  %429 = vmatpush1.msra.mxu0 0.0
  %430 = vmatprep.subr.mxu0 0.0
  %431 = vmatpush1.msra.mxu0 0.0
  %432 = vmatprep.subr.mxu0 0.0
  %433 = vmatpush1.msra.mxu0 0.0
  %434 = vmatprep.subr.mxu0 0.0
  %435 = vmatpush1.msra.mxu0 0.0
  %436 = vmatprep.subr.mxu0 0.0
  %437 = vmatpush1.msra.mxu0 0.0
  %438 = vmatprep.subr.mxu0 0.0
  %439 = vmatpush1.msra.mxu0 0.0
  %440 = vmatprep.subr.mxu0 0.0
  %441 = vmatpush1.msra.mxu0 0.0
  %442 = vmatprep.subr.mxu0 0.0
  %443 = vmatpush1.msra.mxu0 0.0
  %444 = vmatprep.subr.mxu0 0.0
  %445 = vmatpush1.msra.mxu0 0.0
  %446 = vmatprep.subr.mxu0 0.0
  %447 = vmatpush1.msra.mxu0 0.0
  %448 = vmatprep.subr.mxu0 0.0
  %449 = vmatpush1.msra.mxu0 0.0
  %450 = vmatprep.subr.mxu0 0.0
  %451 = vmatpush1.msra.mxu0 0.0
  %452 = vmatprep.subr.mxu0 0.0
  %453 = vmatpush1.msra.mxu0 0.0
  %454 = vmatprep.subr.mxu0 0.0
  %455 = vmatpush1.msra.mxu0 0.0
  %456 = vmatprep.subr.mxu0 0.0
  %457 = vmatpush1.msra.mxu0 0.0
  %458 = vmatprep.mubr.f32.mxu0 0.0
  %459 = vmatmul.mubr.f32.gmra.mrb[0].mxu0 %v392
  %v460 = vpop.f32.mrb[0].mxu0
  %v461 = vadd.f32 0.0, %v460
  %v462 = vpop.f32.mrb[0].mxu0
  %463 = vdwg.mxu0
  %vm464 = vcmask 31744
  %v465 = vsel %vm464, %v461, -inf
  %v466 = vrot.slane %v465, 4
  %v467 = vmax.f32 %v465, %v466
  %v468 = vrot.slane %v467, 2
  %v469 = vmax.f32 %v467, %v468
  %v470 = vrot.slane %v469, 1
  %v471 = vmax.f32 %v469, %v470
  %v472 = vsub.f32 %v461, %v471
  %v473 = vmul.f32 %v472, 1.442695
  %v474 = vpow.pop %v473
  %v475 = vsel %vm464, %v474, 0.0
  %v476 = vrot.slane %v475, 4
  %v477 = vadd.f32 %v475, %v476
  %v478 = vrot.slane %v477, 2
  %v479 = vadd.f32 %v477, %v478
  %v480 = vrot.slane %v479, 1
  %v481 = vadd.f32 %v479, %v480
  %v482 = vrcp.pop %v481
  %v483 = vmul.f32 %v474, %v482
  %v485 = vsel %vm464, %v483, 0
  %vm487 = vcmask 1043456
  %v489 = vsel %vm487, %v135, 0
  %491 = vmatprep.subr.mxu0 0.0
  %492 = vmatpush1.msra.mxu0 %v489
  %493 = vmatprep.subr.mxu0 0.0
  %494 = vmatpush1.msra.mxu0 0.0
  %495 = vmatprep.subr.mxu0 0.0
  %496 = vmatpush1.msra.mxu0 0.0
  %497 = vmatprep.subr.mxu0 0.0
  %498 = vmatpush1.msra.mxu0 0.0
  %499 = vmatprep.subr.mxu0 0.0
  %500 = vmatpush1.msra.mxu0 0.0
  %501 = vmatprep.subr.mxu0 0.0
  %502 = vmatpush1.msra.mxu0 0.0
  %503 = vmatprep.subr.mxu0 0.0
  %504 = vmatpush1.msra.mxu0 0.0
  %505 = vmatprep.subr.mxu0 0.0
  %506 = vmatpush1.msra.mxu0 0.0
  %507 = vmatprep.subr.mxu0 0.0
  %508 = vmatpush1.msra.mxu0 0.0
  %509 = vmatprep.subr.mxu0 0.0
  %510 = vmatpush1.msra.mxu0 0.0
  %511 = vmatprep.subr.mxu0 0.0
  %512 = vmatpush1.msra.mxu0 0.0
  %513 = vmatprep.subr.mxu0 0.0
  %514 = vmatpush1.msra.mxu0 0.0
  %515 = vmatprep.subr.mxu0 0.0
  %516 = vmatpush1.msra.mxu0 0.0
  %517 = vmatprep.subr.mxu0 0.0
  %518 = vmatpush1.msra.mxu0 0.0
  %519 = vmatprep.subr.mxu0 0.0
  %520 = vmatpush1.msra.mxu0 0.0
  %521 = vmatprep.subr.mxu0 0.0
  %522 = vmatpush1.msra.mxu0 0.0
  %523 = vmatprep.subr.mxu0 0.0
  %524 = vmatpush1.msra.mxu0 0.0
  %525 = vmatprep.subr.mxu0 0.0
  %526 = vmatpush1.msra.mxu0 0.0
  %527 = vmatprep.subr.mxu0 0.0
  %528 = vmatpush1.msra.mxu0 0.0
  %529 = vmatprep.subr.mxu0 0.0
  %530 = vmatpush1.msra.mxu0 0.0
  %531 = vmatprep.subr.mxu0 0.0
  %532 = vmatpush1.msra.mxu0 0.0
  %533 = vmatprep.subr.mxu0 0.0
  %534 = vmatpush1.msra.mxu0 0.0
  %535 = vmatprep.subr.mxu0 0.0
  %536 = vmatpush1.msra.mxu0 0.0
  %537 = vmatprep.subr.mxu0 0.0
  %538 = vmatpush1.msra.mxu0 0.0
  %539 = vmatprep.subr.mxu0 0.0
  %540 = vmatpush1.msra.mxu0 0.0
  %541 = vmatprep.subr.mxu0 0.0
  %542 = vmatpush1.msra.mxu0 0.0
  %543 = vmatprep.subr.mxu0 0.0
  %544 = vmatpush1.msra.mxu0 0.0
  %545 = vmatprep.subr.mxu0 0.0
  %546 = vmatpush1.msra.mxu0 0.0
  %547 = vmatprep.subr.mxu0 0.0
  %548 = vmatpush1.msra.mxu0 0.0
  %549 = vmatprep.subr.mxu0 0.0
  %550 = vmatpush1.msra.mxu0 0.0
  %551 = vmatprep.subr.mxu0 0.0
  %552 = vmatpush1.msra.mxu0 0.0
  %553 = vmatprep.subr.mxu0 0.0
  %554 = vmatpush1.msra.mxu0 0.0
  %555 = vmatprep.mubr.f32.mxu0 0.0
  %556 = vmatmul.mubr.f32.gmra.mrb[0].mxu0 %v485
  %v557 = vpop.f32.mrb[0].mxu0
  %v558 = vadd.f32 0.0, %v557
  %v559 = vpop.f32.mrb[0].mxu0
  %560 = vdwg.mxu0
  %v561 = vmul.f32 %v558, %v384
  %v562 = vsel %vm286, %v561, 0.0
  %v563 = vrot.slane %v562, 4
  %v564 = vadd.f32 %v562, %v563
  %v565 = vrot.slane %v564, 2
  %v566 = vadd.f32 %v564, %v565
  %v567 = vrot.slane %v566, 1
  %v568 = vadd.f32 %v566, %v567
  %569 = vst.msk [vmem:[#allocation2] sm:$0x1] %vm374, %v568
  %v570 = vlaneseq
  %v571 = vshrl.u32 %v570, 7
  %v572 = vsub.s32 1, %v571
  %v573 = vrot.slane %v357, %v572
  %v574 = vmul.f32 %v383, %v573
  %v576 = vsel %vm286, %v574, 0
  %578 = vmatprep.subr.mxu0 0.0
  %579 = vmatpush1.msra.mxu0 %v121
  %580 = vmatprep.subr.mxu0 0.0
  %581 = vmatpush1.msra.mxu0 %v122
  %582 = vmatprep.subr.mxu0 0.0
  %583 = vmatpush1.msra.mxu0 %v123
  %584 = vmatprep.subr.mxu0 0.0
  %585 = vmatpush1.msra.mxu0 %v124
  %586 = vmatprep.subr.mxu0 0.0
  %587 = vmatpush1.msra.mxu0 %v125
  %588 = vmatprep.subr.mxu0 0.0
  %589 = vmatpush1.msra.mxu0 %v126
  %590 = vmatprep.subr.mxu0 0.0
  %591 = vmatpush1.msra.mxu0 %v127
  %592 = vmatprep.subr.mxu0 0.0
  %593 = vmatpush1.msra.mxu0 %v128
  %594 = vmatprep.subr.mxu0 0.0
  %595 = vmatpush1.msra.mxu0 0.0
  %596 = vmatprep.subr.mxu0 0.0
  %597 = vmatpush1.msra.mxu0 0.0
  %598 = vmatprep.subr.mxu0 0.0
  %599 = vmatpush1.msra.mxu0 0.0
  %600 = vmatprep.subr.mxu0 0.0
  %601 = vmatpush1.msra.mxu0 0.0
  %602 = vmatprep.subr.mxu0 0.0
  %603 = vmatpush1.msra.mxu0 0.0
  %604 = vmatprep.subr.mxu0 0.0
  %605 = vmatpush1.msra.mxu0 0.0
  %606 = vmatprep.subr.mxu0 0.0
  %607 = vmatpush1.msra.mxu0 0.0
  %608 = vmatprep.subr.mxu0 0.0
  %609 = vmatpush1.msra.mxu0 0.0
  %610 = vmatprep.subr.mxu0 0.0
  %611 = vmatpush1.msra.mxu0 0.0
  %612 = vmatprep.subr.mxu0 0.0
  %613 = vmatpush1.msra.mxu0 0.0
  %614 = vmatprep.subr.mxu0 0.0
  %615 = vmatpush1.msra.mxu0 0.0
  %616 = vmatprep.subr.mxu0 0.0
  %617 = vmatpush1.msra.mxu0 0.0
  %618 = vmatprep.subr.mxu0 0.0
  %619 = vmatpush1.msra.mxu0 0.0
  %620 = vmatprep.subr.mxu0 0.0
  %621 = vmatpush1.msra.mxu0 0.0
  %622 = vmatprep.subr.mxu0 0.0
  %623 = vmatpush1.msra.mxu0 0.0
  %624 = vmatprep.subr.mxu0 0.0
  %625 = vmatpush1.msra.mxu0 0.0
  %626 = vmatprep.subr.mxu0 0.0
  %627 = vmatpush1.msra.mxu0 0.0
  %628 = vmatprep.subr.mxu0 0.0
  %629 = vmatpush1.msra.mxu0 0.0
  %630 = vmatprep.subr.mxu0 0.0
  %631 = vmatpush1.msra.mxu0 0.0
  %632 = vmatprep.subr.mxu0 0.0
  %633 = vmatpush1.msra.mxu0 0.0
  %634 = vmatprep.subr.mxu0 0.0
  %635 = vmatpush1.msra.mxu0 0.0
  %636 = vmatprep.subr.mxu0 0.0
  %637 = vmatpush1.msra.mxu0 0.0
  %638 = vmatprep.subr.mxu0 0.0
  %639 = vmatpush1.msra.mxu0 0.0
  %640 = vmatprep.subr.mxu0 0.0
  %641 = vmatpush1.msra.mxu0 0.0
  %642 = vmatprep.mubr.f32.mxu0 0.0
  %643 = vmatmul.mubr.f32.gmra.mrb[0].mxu0 %v576
  %v644 = vpop.f32.mrb[0].mxu0
  %v645 = vadd.f32 0.0, %v644
  %v646 = vpop.f32.mrb[0].mxu0
  %647 = vdwg.mxu0
  %v648 = vsel %vm464, %v645, -inf
  %v649 = vrot.slane %v648, 4
  %v650 = vmax.f32 %v648, %v649
  %v651 = vrot.slane %v650, 2
  %v652 = vmax.f32 %v650, %v651
  %v653 = vrot.slane %v652, 1
  %v654 = vmax.f32 %v652, %v653
  %v655 = vsub.f32 %v645, %v654
  %v656 = vmul.f32 %v655, 1.442695
  %v657 = vpow.pop %v656
  %v658 = vsel %vm464, %v657, 0.0
  %v659 = vrot.slane %v658, 4
  %v660 = vadd.f32 %v658, %v659
  %v661 = vrot.slane %v660, 2
  %v662 = vadd.f32 %v660, %v661
  %v663 = vrot.slane %v662, 1
  %v664 = vadd.f32 %v662, %v663
  %v665 = vrcp.pop %v664
  %v666 = vmul.f32 %v657, %v665
  %v668 = vsel %vm464, %v666, 0
  %670 = vmatprep.subr.mxu0 0.0
  %671 = vmatpush1.msra.mxu0 %v489
  %672 = vmatprep.subr.mxu0 0.0
  %673 = vmatpush1.msra.mxu0 0.0
  %674 = vmatprep.subr.mxu0 0.0
  %675 = vmatpush1.msra.mxu0 0.0
  %676 = vmatprep.subr.mxu0 0.0
  %677 = vmatpush1.msra.mxu0 0.0
  %678 = vmatprep.subr.mxu0 0.0
  %679 = vmatpush1.msra.mxu0 0.0
  %680 = vmatprep.subr.mxu0 0.0
  %681 = vmatpush1.msra.mxu0 0.0
  %682 = vmatprep.subr.mxu0 0.0
  %683 = vmatpush1.msra.mxu0 0.0
  %684 = vmatprep.subr.mxu0 0.0
  %685 = vmatpush1.msra.mxu0 0.0
  %686 = vmatprep.subr.mxu0 0.0
  %687 = vmatpush1.msra.mxu0 0.0
  %688 = vmatprep.subr.mxu0 0.0
  %689 = vmatpush1.msra.mxu0 0.0
  %690 = vmatprep.subr.mxu0 0.0
  %691 = vmatpush1.msra.mxu0 0.0
  %692 = vmatprep.subr.mxu0 0.0
  %693 = vmatpush1.msra.mxu0 0.0
  %694 = vmatprep.subr.mxu0 0.0
  %695 = vmatpush1.msra.mxu0 0.0
  %696 = vmatprep.subr.mxu0 0.0
  %697 = vmatpush1.msra.mxu0 0.0
  %698 = vmatprep.subr.mxu0 0.0
  %699 = vmatpush1.msra.mxu0 0.0
  %700 = vmatprep.subr.mxu0 0.0
  %701 = vmatpush1.msra.mxu0 0.0
  %702 = vmatprep.subr.mxu0 0.0
  %703 = vmatpush1.msra.mxu0 0.0
  %704 = vmatprep.subr.mxu0 0.0
  %705 = vmatpush1.msra.mxu0 0.0
  %706 = vmatprep.subr.mxu0 0.0
  %707 = vmatpush1.msra.mxu0 0.0
  %708 = vmatprep.subr.mxu0 0.0
  %709 = vmatpush1.msra.mxu0 0.0
  %710 = vmatprep.subr.mxu0 0.0
  %711 = vmatpush1.msra.mxu0 0.0
  %712 = vmatprep.subr.mxu0 0.0
  %713 = vmatpush1.msra.mxu0 0.0
  %714 = vmatprep.subr.mxu0 0.0
  %715 = vmatpush1.msra.mxu0 0.0
  %716 = vmatprep.subr.mxu0 0.0
  %717 = vmatpush1.msra.mxu0 0.0
  %718 = vmatprep.subr.mxu0 0.0
  %719 = vmatpush1.msra.mxu0 0.0
  %720 = vmatprep.subr.mxu0 0.0
  %721 = vmatpush1.msra.mxu0 0.0
  %722 = vmatprep.subr.mxu0 0.0
  %723 = vmatpush1.msra.mxu0 0.0
  %724 = vmatprep.subr.mxu0 0.0
  %725 = vmatpush1.msra.mxu0 0.0
  %726 = vmatprep.subr.mxu0 0.0
  %727 = vmatpush1.msra.mxu0 0.0
  %728 = vmatprep.subr.mxu0 0.0
  %729 = vmatpush1.msra.mxu0 0.0
  %730 = vmatprep.subr.mxu0 0.0
  %731 = vmatpush1.msra.mxu0 0.0
  %732 = vmatprep.subr.mxu0 0.0
  %733 = vmatpush1.msra.mxu0 0.0
  %734 = vmatprep.mubr.f32.mxu0 0.0
  %735 = vmatmul.mubr.f32.gmra.mrb[0].mxu0 %v668
  %v736 = vpop.f32.mrb[0].mxu0
  %v737 = vadd.f32 0.0, %v736
  %v738 = vpop.f32.mrb[0].mxu0
  %739 = vdwg.mxu0
  %v740 = vmul.f32 %v737, %v385
  %v741 = vsel %vm286, %v740, 0.0
  %v742 = vrot.slane %v741, 4
  %v743 = vadd.f32 %v741, %v742
  %v744 = vrot.slane %v743, 2
  %v745 = vadd.f32 %v743, %v744
  %v746 = vrot.slane %v745, 1
  %v747 = vadd.f32 %v745, %v746
  %748 = vst.msk [vmem:[#allocation2 + $0x1] sm:$0x1] %vm374, %v747
  %v749 = vld [vmem:[#allocation2] sm:$0x3]
  %v750 = vld [vmem:[%s7] sm:$0xff]
  %v751 = vld [vmem:[%s7 + $0x8] sm:$0xff]
  %v752 = vld [vmem:[%s7 + $0x10] sm:$0xff]
  %v753 = vld [vmem:[%s7 + $0x18] sm:$0xff]
  %v754 = vld [vmem:[%s7 + $0x20] sm:$0xff]
  %v755 = vld [vmem:[%s7 + $0x28] sm:$0xff]
  %v756 = vld [vmem:[%s7 + $0x30] sm:$0xff]
  %v757 = vld [vmem:[%s7 + $0x38] sm:$0xff]
  %v759 = vsel %vm286, %v749, 0
  %761 = vmatprep.subr.mxu0 0.0
  %762 = vmatpush1.msra.mxu0 %v750
  %763 = vmatprep.subr.mxu0 0.0
  %764 = vmatpush1.msra.mxu0 %v751
  %765 = vmatprep.subr.mxu0 0.0
  %766 = vmatpush1.msra.mxu0 %v752
  %767 = vmatprep.subr.mxu0 0.0
  %768 = vmatpush1.msra.mxu0 %v753
  %769 = vmatprep.subr.mxu0 0.0
  %770 = vmatpush1.msra.mxu0 %v754
  %771 = vmatprep.subr.mxu0 0.0
  %772 = vmatpush1.msra.mxu0 %v755
  %773 = vmatprep.subr.mxu0 0.0
  %774 = vmatpush1.msra.mxu0 %v756
  %775 = vmatprep.subr.mxu0 0.0
  %776 = vmatpush1.msra.mxu0 %v757
  %777 = vmatprep.subr.mxu0 0.0
  %778 = vmatpush1.msra.mxu0 0.0
  %779 = vmatprep.subr.mxu0 0.0
  %780 = vmatpush1.msra.mxu0 0.0
  %781 = vmatprep.subr.mxu0 0.0
  %782 = vmatpush1.msra.mxu0 0.0
  %783 = vmatprep.subr.mxu0 0.0
  %784 = vmatpush1.msra.mxu0 0.0
  %785 = vmatprep.subr.mxu0 0.0
  %786 = vmatpush1.msra.mxu0 0.0
  %787 = vmatprep.subr.mxu0 0.0
  %788 = vmatpush1.msra.mxu0 0.0
  %789 = vmatprep.subr.mxu0 0.0
  %790 = vmatpush1.msra.mxu0 0.0
  %791 = vmatprep.subr.mxu0 0.0
  %792 = vmatpush1.msra.mxu0 0.0
  %793 = vmatprep.subr.mxu0 0.0
  %794 = vmatpush1.msra.mxu0 0.0
  %795 = vmatprep.subr.mxu0 0.0
  %796 = vmatpush1.msra.mxu0 0.0
  %797 = vmatprep.subr.mxu0 0.0
  %798 = vmatpush1.msra.mxu0 0.0
  %799 = vmatprep.subr.mxu0 0.0
  %800 = vmatpush1.msra.mxu0 0.0
  %801 = vmatprep.subr.mxu0 0.0
  %802 = vmatpush1.msra.mxu0 0.0
  %803 = vmatprep.subr.mxu0 0.0
  %804 = vmatpush1.msra.mxu0 0.0
  %805 = vmatprep.subr.mxu0 0.0
  %806 = vmatpush1.msra.mxu0 0.0
  %807 = vmatprep.subr.mxu0 0.0
  %808 = vmatpush1.msra.mxu0 0.0
  %809 = vmatprep.subr.mxu0 0.0
  %810 = vmatpush1.msra.mxu0 0.0
  %811 = vmatprep.subr.mxu0 0.0
  %812 = vmatpush1.msra.mxu0 0.0
  %813 = vmatprep.subr.mxu0 0.0
  %814 = vmatpush1.msra.mxu0 0.0
  %815 = vmatprep.subr.mxu0 0.0
  %816 = vmatpush1.msra.mxu0 0.0
  %817 = vmatprep.subr.mxu0 0.0
  %818 = vmatpush1.msra.mxu0 0.0
  %819 = vmatprep.subr.mxu0 0.0
  %820 = vmatpush1.msra.mxu0 0.0
  %821 = vmatprep.subr.mxu0 0.0
  %822 = vmatpush1.msra.mxu0 0.0
  %823 = vmatprep.subr.mxu0 0.0
  %824 = vmatpush1.msra.mxu0 0.0
  %825 = vmatprep.mubr.f32.mxu0 0.0
  %826 = vmatmul.mubr.f32.gmra.mrb[0].mxu0 %v759
  %v827 = vpop.f32.mrb[0].mxu0
  %v828 = vadd.f32 0.0, %v827
  %v829 = vpop.f32.mrb[0].mxu0
  %830 = vdwg.mxu0
  %v831 = vadd.f32 %v246, %v828
  %v832 = vld [vmem:[%s4] sm:$0x1]
  %v833 = vmul.f32 %v831, %v831
  %v834 = vsel %vm254, %v833, 0.0
  %835 = vadd.xlane.f32.xlu0 %v834
  %v836 = vpop.xlane.xlu0 %835
  %v837 = vmul.f32 %v836, %v258
  %v838 = vadd.f32 %v837, 1e-06
  %v839 = vrsqrt.pop %v838
  %v840 = vmul.f32 %v831, %v839
  %v842 = vlaneseq
  %v843 = vshrl.u32 %v842, 7
  %v844 = vsub.s32 0, %v843
  %v845 = vrot.slane %v832, %v844
  %v847 = vmul.f32 %v840, %v845
  %v848 = vld [vmem:[%s8] sm:$0xff]
  %v849 = vld [vmem:[%s8 + $0x8] sm:$0xff]
  %v850 = vld [vmem:[%s8 + $0x10] sm:$0xff]
  %v851 = vld [vmem:[%s8 + $0x18] sm:$0xff]
  %v852 = vld [vmem:[%s8 + $0x20] sm:$0xff]
  %v853 = vld [vmem:[%s8 + $0x28] sm:$0xff]
  %v854 = vld [vmem:[%s8 + $0x30] sm:$0xff]
  %v855 = vld [vmem:[%s8 + $0x38] sm:$0xff]
  %v857 = vsel %vm286, %v847, 0
  %859 = vmatprep.subr.mxu0 0.0
  %860 = vmatpush1.msra.mxu0 %v848
  %861 = vmatprep.subr.mxu0 0.0
  %862 = vmatpush1.msra.mxu0 %v849
  %863 = vmatprep.subr.mxu0 0.0
  %864 = vmatpush1.msra.mxu0 %v850
  %865 = vmatprep.subr.mxu0 0.0
  %866 = vmatpush1.msra.mxu0 %v851
  %867 = vmatprep.subr.mxu0 0.0
  %868 = vmatpush1.msra.mxu0 %v852
  %869 = vmatprep.subr.mxu0 0.0
  %870 = vmatpush1.msra.mxu0 %v853
  %871 = vmatprep.subr.mxu0 0.0
  %872 = vmatpush1.msra.mxu0 %v854
  %873 = vmatprep.subr.mxu0 0.0
  %874 = vmatpush1.msra.mxu0 %v855
  %875 = vmatprep.subr.mxu0 0.0
  %876 = vmatpush1.msra.mxu0 0.0
  %877 = vmatprep.subr.mxu0 0.0
  %878 = vmatpush1.msra.mxu0 0.0
  %879 = vmatprep.subr.mxu0 0.0
  %880 = vmatpush1.msra.mxu0 0.0
  %881 = vmatprep.subr.mxu0 0.0
  %882 = vmatpush1.msra.mxu0 0.0
  %883 = vmatprep.subr.mxu0 0.0
  %884 = vmatpush1.msra.mxu0 0.0
  %885 = vmatprep.subr.mxu0 0.0
  %886 = vmatpush1.msra.mxu0 0.0
  %887 = vmatprep.subr.mxu0 0.0
  %888 = vmatpush1.msra.mxu0 0.0
  %889 = vmatprep.subr.mxu0 0.0
  %890 = vmatpush1.msra.mxu0 0.0
  %891 = vmatprep.subr.mxu0 0.0
  %892 = vmatpush1.msra.mxu0 0.0
  %893 = vmatprep.subr.mxu0 0.0
  %894 = vmatpush1.msra.mxu0 0.0
  %895 = vmatprep.subr.mxu0 0.0
  %896 = vmatpush1.msra.mxu0 0.0
  %897 = vmatprep.subr.mxu0 0.0
  %898 = vmatpush1.msra.mxu0 0.0
  %899 = vmatprep.subr.mxu0 0.0
  %900 = vmatpush1.msra.mxu0 0.0
  %901 = vmatprep.subr.mxu0 0.0
  %902 = vmatpush1.msra.mxu0 0.0
  %903 = vmatprep.subr.mxu0 0.0
  %904 = vmatpush1.msra.mxu0 0.0
  %905 = vmatprep.subr.mxu0 0.0
  %906 = vmatpush1.msra.mxu0 0.0
  %907 = vmatprep.subr.mxu0 0.0
  %908 = vmatpush1.msra.mxu0 0.0
  %909 = vmatprep.subr.mxu0 0.0
  %910 = vmatpush1.msra.mxu0 0.0
  %911 = vmatprep.subr.mxu0 0.0
  %912 = vmatpush1.msra.mxu0 0.0
  %913 = vmatprep.subr.mxu0 0.0
  %914 = vmatpush1.msra.mxu0 0.0
  %915 = vmatprep.subr.mxu0 0.0
  %916 = vmatpush1.msra.mxu0 0.0
  %917 = vmatprep.subr.mxu0 0.0
  %918 = vmatpush1.msra.mxu0 0.0
  %919 = vmatprep.subr.mxu0 0.0
  %920 = vmatpush1.msra.mxu0 0.0
  %921 = vmatprep.subr.mxu0 0.0
  %922 = vmatpush1.msra.mxu0 0.0
  %923 = vmatprep.mubr.f32.mxu0 0.0
  %924 = vmatmul.mubr.f32.gmra.mrb[0].mxu0 %v857
  %v925 = vpop.f32.mrb[0].mxu0
  %v926 = vadd.f32 0.0, %v925
  %v927 = vpop.f32.mrb[0].mxu0
  %928 = vdwg.mxu0
  %v929 = vld [vmem:[%s16] sm:$0xff]
  %v930 = vld [vmem:[%s16 + $0x8] sm:$0xff]
  %v931 = vld [vmem:[%s17] sm:$0xff]
  %v932 = vld [vmem:[%s17 + $0x8] sm:$0xff]
  %v933 = vlaneseq
  %v934 = vshrl.u32 %v933, 7
  %v935 = vsub.s32 0, %v934
  %v936 = vrot.slane %v926, %v935
  %v937 = vmul.f32 %v929, %v936
  %939 = vset.pattern.permute.xlu0 0
  %940 = vperm.xlu0 %939, %v251
  %v941 = vpop.permute.xlu0 %940
  %v944 = vsel %vm286, %v937, 0
  %946 = vmatprep.subr.mxu0 0.0
  %947 = vmatpush1.msra.mxu0 %v121
  %948 = vmatprep.subr.mxu0 0.0
  %949 = vmatpush1.msra.mxu0 %v122
  %950 = vmatprep.subr.mxu0 0.0
  %951 = vmatpush1.msra.mxu0 %v123
  %952 = vmatprep.subr.mxu0 0.0
  %953 = vmatpush1.msra.mxu0 %v124
  %954 = vmatprep.subr.mxu0 0.0
  %955 = vmatpush1.msra.mxu0 %v125
  %956 = vmatprep.subr.mxu0 0.0
  %957 = vmatpush1.msra.mxu0 %v126
  %958 = vmatprep.subr.mxu0 0.0
  %959 = vmatpush1.msra.mxu0 %v127
  %960 = vmatprep.subr.mxu0 0.0
  %961 = vmatpush1.msra.mxu0 %v128
  %962 = vmatprep.subr.mxu0 0.0
  %963 = vmatpush1.msra.mxu0 0.0
  %964 = vmatprep.subr.mxu0 0.0
  %965 = vmatpush1.msra.mxu0 0.0
  %966 = vmatprep.subr.mxu0 0.0
  %967 = vmatpush1.msra.mxu0 0.0
  %968 = vmatprep.subr.mxu0 0.0
  %969 = vmatpush1.msra.mxu0 0.0
  %970 = vmatprep.subr.mxu0 0.0
  %971 = vmatpush1.msra.mxu0 0.0
  %972 = vmatprep.subr.mxu0 0.0
  %973 = vmatpush1.msra.mxu0 0.0
  %974 = vmatprep.subr.mxu0 0.0
  %975 = vmatpush1.msra.mxu0 0.0
  %976 = vmatprep.subr.mxu0 0.0
  %977 = vmatpush1.msra.mxu0 0.0
  %978 = vmatprep.subr.mxu0 0.0
  %979 = vmatpush1.msra.mxu0 0.0
  %980 = vmatprep.subr.mxu0 0.0
  %981 = vmatpush1.msra.mxu0 0.0
  %982 = vmatprep.subr.mxu0 0.0
  %983 = vmatpush1.msra.mxu0 0.0
  %984 = vmatprep.subr.mxu0 0.0
  %985 = vmatpush1.msra.mxu0 0.0
  %986 = vmatprep.subr.mxu0 0.0
  %987 = vmatpush1.msra.mxu0 0.0
  %988 = vmatprep.subr.mxu0 0.0
  %989 = vmatpush1.msra.mxu0 0.0
  %990 = vmatprep.subr.mxu0 0.0
  %991 = vmatpush1.msra.mxu0 0.0
  %992 = vmatprep.subr.mxu0 0.0
  %993 = vmatpush1.msra.mxu0 0.0
  %994 = vmatprep.subr.mxu0 0.0
  %995 = vmatpush1.msra.mxu0 0.0
  %996 = vmatprep.subr.mxu0 0.0
  %997 = vmatpush1.msra.mxu0 0.0
  %998 = vmatprep.subr.mxu0 0.0
  %999 = vmatpush1.msra.mxu0 0.0
  %1000 = vmatprep.subr.mxu0 0.0
  %1001 = vmatpush1.msra.mxu0 0.0
  %1002 = vmatprep.subr.mxu0 0.0
  %1003 = vmatpush1.msra.mxu0 0.0
  %1004 = vmatprep.subr.mxu0 0.0
  %1005 = vmatpush1.msra.mxu0 0.0
  %1006 = vmatprep.subr.mxu0 0.0
  %1007 = vmatpush1.msra.mxu0 0.0
  %1008 = vmatprep.subr.mxu0 0.0
  %1009 = vmatpush1.msra.mxu0 0.0
  %1010 = vmatprep.mubr.f32.mxu0 0.0
  %1011 = vmatmul.mubr.f32.gmra.mrb[0].mxu0 %v944
  %v1012 = vpop.f32.mrb[0].mxu0
  %v1013 = vadd.f32 %v941, %v1012
  %v1014 = vpop.f32.mrb[0].mxu0
  %1015 = vdwg.mxu0
  %v1016 = vsel %vm464, %v1013, -inf
  %v1017 = vrot.slane %v1016, 4
  %v1018 = vmax.f32 %v1016, %v1017
  %v1019 = vrot.slane %v1018, 2
  %v1020 = vmax.f32 %v1018, %v1019
  %v1021 = vrot.slane %v1020, 1
  %v1022 = vmax.f32 %v1020, %v1021
  %v1023 = vsub.f32 %v1013, %v1022
  %v1024 = vmul.f32 %v1023, 1.442695
  %v1025 = vpow.pop %v1024
  %v1026 = vsel %vm464, %v1025, 0.0
  %v1027 = vrot.slane %v1026, 4
  %v1028 = vadd.f32 %v1026, %v1027
  %v1029 = vrot.slane %v1028, 2
  %v1030 = vadd.f32 %v1028, %v1029
  %v1031 = vrot.slane %v1030, 1
  %v1032 = vadd.f32 %v1030, %v1031
  %v1033 = vrcp.pop %v1032
  %v1034 = vmul.f32 %v1025, %v1033
  %v1036 = vsel %vm464, %v1034, 0
  %1038 = vmatprep.subr.mxu0 0.0
  %1039 = vmatpush1.msra.mxu0 %v489
  %1040 = vmatprep.subr.mxu0 0.0
  %1041 = vmatpush1.msra.mxu0 0.0
  %1042 = vmatprep.subr.mxu0 0.0
  %1043 = vmatpush1.msra.mxu0 0.0
  %1044 = vmatprep.subr.mxu0 0.0
  %1045 = vmatpush1.msra.mxu0 0.0
  %1046 = vmatprep.subr.mxu0 0.0
  %1047 = vmatpush1.msra.mxu0 0.0
  %1048 = vmatprep.subr.mxu0 0.0
  %1049 = vmatpush1.msra.mxu0 0.0
  %1050 = vmatprep.subr.mxu0 0.0
  %1051 = vmatpush1.msra.mxu0 0.0
  %1052 = vmatprep.subr.mxu0 0.0
  %1053 = vmatpush1.msra.mxu0 0.0
  %1054 = vmatprep.subr.mxu0 0.0
  %1055 = vmatpush1.msra.mxu0 0.0
  %1056 = vmatprep.subr.mxu0 0.0
  %1057 = vmatpush1.msra.mxu0 0.0
  %1058 = vmatprep.subr.mxu0 0.0
  %1059 = vmatpush1.msra.mxu0 0.0
  %1060 = vmatprep.subr.mxu0 0.0
  %1061 = vmatpush1.msra.mxu0 0.0
  %1062 = vmatprep.subr.mxu0 0.0
  %1063 = vmatpush1.msra.mxu0 0.0
  %1064 = vmatprep.subr.mxu0 0.0
  %1065 = vmatpush1.msra.mxu0 0.0
  %1066 = vmatprep.subr.mxu0 0.0
  %1067 = vmatpush1.msra.mxu0 0.0
  %1068 = vmatprep.subr.mxu0 0.0
  %1069 = vmatpush1.msra.mxu0 0.0
  %1070 = vmatprep.subr.mxu0 0.0
  %1071 = vmatpush1.msra.mxu0 0.0
  %1072 = vmatprep.subr.mxu0 0.0
  %1073 = vmatpush1.msra.mxu0 0.0
  %1074 = vmatprep.subr.mxu0 0.0
  %1075 = vmatpush1.msra.mxu0 0.0
  %1076 = vmatprep.subr.mxu0 0.0
  %1077 = vmatpush1.msra.mxu0 0.0
  %1078 = vmatprep.subr.mxu0 0.0
  %1079 = vmatpush1.msra.mxu0 0.0
  %1080 = vmatprep.subr.mxu0 0.0
  %1081 = vmatpush1.msra.mxu0 0.0
  %1082 = vmatprep.subr.mxu0 0.0
  %1083 = vmatpush1.msra.mxu0 0.0
  %1084 = vmatprep.subr.mxu0 0.0
  %1085 = vmatpush1.msra.mxu0 0.0
  %1086 = vmatprep.subr.mxu0 0.0
  %1087 = vmatpush1.msra.mxu0 0.0
  %1088 = vmatprep.subr.mxu0 0.0
  %1089 = vmatpush1.msra.mxu0 0.0
  %1090 = vmatprep.subr.mxu0 0.0
  %1091 = vmatpush1.msra.mxu0 0.0
  %1092 = vmatprep.subr.mxu0 0.0
  %1093 = vmatpush1.msra.mxu0 0.0
  %1094 = vmatprep.subr.mxu0 0.0
  %1095 = vmatpush1.msra.mxu0 0.0
  %1096 = vmatprep.subr.mxu0 0.0
  %1097 = vmatpush1.msra.mxu0 0.0
  %1098 = vmatprep.subr.mxu0 0.0
  %1099 = vmatpush1.msra.mxu0 0.0
  %1100 = vmatprep.subr.mxu0 0.0
  %1101 = vmatpush1.msra.mxu0 0.0
  %1102 = vmatprep.mubr.f32.mxu0 0.0
  %1103 = vmatmul.mubr.f32.gmra.mrb[0].mxu0 %v1036
  %v1104 = vpop.f32.mrb[0].mxu0
  %v1105 = vadd.f32 0.0, %v1104
  %v1106 = vpop.f32.mrb[0].mxu0
  %1107 = vdwg.mxu0
  %v1108 = vmul.f32 %v1105, %v931
  %v1109 = vsel %vm286, %v1108, 0.0
  %v1110 = vrot.slane %v1109, 4
  %v1111 = vadd.f32 %v1109, %v1110
  %v1112 = vrot.slane %v1111, 2
  %v1113 = vadd.f32 %v1111, %v1112
  %v1114 = vrot.slane %v1113, 1
  %v1115 = vadd.f32 %v1113, %v1114
  %1116 = vst.msk [vmem:[#allocation2] sm:$0x1] %vm374, %v1115
  %v1117 = vlaneseq
  %v1118 = vshrl.u32 %v1117, 7
  %v1119 = vsub.s32 1, %v1118
  %v1120 = vrot.slane %v926, %v1119
  %v1121 = vmul.f32 %v930, %v1120
  %1122 = vset.pattern.permute.xlu0 1
  %1123 = vperm.xlu0 %1122, %v251
  %v1124 = vpop.permute.xlu0 %1123
  %v1127 = vsel %vm286, %v1121, 0
  %1129 = vmatprep.subr.mxu0 0.0
  %1130 = vmatpush1.msra.mxu0 %v121
  %1131 = vmatprep.subr.mxu0 0.0
  %1132 = vmatpush1.msra.mxu0 %v122
  %1133 = vmatprep.subr.mxu0 0.0
  %1134 = vmatpush1.msra.mxu0 %v123
  %1135 = vmatprep.subr.mxu0 0.0
  %1136 = vmatpush1.msra.mxu0 %v124
  %1137 = vmatprep.subr.mxu0 0.0
  %1138 = vmatpush1.msra.mxu0 %v125
  %1139 = vmatprep.subr.mxu0 0.0
  %1140 = vmatpush1.msra.mxu0 %v126
  %1141 = vmatprep.subr.mxu0 0.0
  %1142 = vmatpush1.msra.mxu0 %v127
  %1143 = vmatprep.subr.mxu0 0.0
  %1144 = vmatpush1.msra.mxu0 %v128
  %1145 = vmatprep.subr.mxu0 0.0
  %1146 = vmatpush1.msra.mxu0 0.0
  %1147 = vmatprep.subr.mxu0 0.0
  %1148 = vmatpush1.msra.mxu0 0.0
  %1149 = vmatprep.subr.mxu0 0.0
  %1150 = vmatpush1.msra.mxu0 0.0
  %1151 = vmatprep.subr.mxu0 0.0
  %1152 = vmatpush1.msra.mxu0 0.0
  %1153 = vmatprep.subr.mxu0 0.0
  %1154 = vmatpush1.msra.mxu0 0.0
  %1155 = vmatprep.subr.mxu0 0.0
  %1156 = vmatpush1.msra.mxu0 0.0
  %1157 = vmatprep.subr.mxu0 0.0
  %1158 = vmatpush1.msra.mxu0 0.0
  %1159 = vmatprep.subr.mxu0 0.0
  %1160 = vmatpush1.msra.mxu0 0.0
  %1161 = vmatprep.subr.mxu0 0.0
  %1162 = vmatpush1.msra.mxu0 0.0
  %1163 = vmatprep.subr.mxu0 0.0
  %1164 = vmatpush1.msra.mxu0 0.0
  %1165 = vmatprep.subr.mxu0 0.0
  %1166 = vmatpush1.msra.mxu0 0.0
  %1167 = vmatprep.subr.mxu0 0.0
  %1168 = vmatpush1.msra.mxu0 0.0
  %1169 = vmatprep.subr.mxu0 0.0
  %1170 = vmatpush1.msra.mxu0 0.0
  %1171 = vmatprep.subr.mxu0 0.0
  %1172 = vmatpush1.msra.mxu0 0.0
  %1173 = vmatprep.subr.mxu0 0.0
  %1174 = vmatpush1.msra.mxu0 0.0
  %1175 = vmatprep.subr.mxu0 0.0
  %1176 = vmatpush1.msra.mxu0 0.0
  %1177 = vmatprep.subr.mxu0 0.0
  %1178 = vmatpush1.msra.mxu0 0.0
  %1179 = vmatprep.subr.mxu0 0.0
  %1180 = vmatpush1.msra.mxu0 0.0
  %1181 = vmatprep.subr.mxu0 0.0
  %1182 = vmatpush1.msra.mxu0 0.0
  %1183 = vmatprep.subr.mxu0 0.0
  %1184 = vmatpush1.msra.mxu0 0.0
  %1185 = vmatprep.subr.mxu0 0.0
  %1186 = vmatpush1.msra.mxu0 0.0
  %1187 = vmatprep.subr.mxu0 0.0
  %1188 = vmatpush1.msra.mxu0 0.0
  %1189 = vmatprep.subr.mxu0 0.0
  %1190 = vmatpush1.msra.mxu0 0.0
  %1191 = vmatprep.subr.mxu0 0.0
  %1192 = vmatpush1.msra.mxu0 0.0
  %1193 = vmatprep.mubr.f32.mxu0 0.0
  %1194 = vmatmul.mubr.f32.gmra.mrb[0].mxu0 %v1127
  %v1195 = vpop.f32.mrb[0].mxu0
  %v1196 = vadd.f32 %v1124, %v1195
  %v1197 = vpop.f32.mrb[0].mxu0
  %1198 = vdwg.mxu0
  %v1199 = vsel %vm464, %v1196, -inf
  %v1200 = vrot.slane %v1199, 4
  %v1201 = vmax.f32 %v1199, %v1200
  %v1202 = vrot.slane %v1201, 2
  %v1203 = vmax.f32 %v1201, %v1202
  %v1204 = vrot.slane %v1203, 1
  %v1205 = vmax.f32 %v1203, %v1204
  %v1206 = vsub.f32 %v1196, %v1205
  %v1207 = vmul.f32 %v1206, 1.442695
  %v1208 = vpow.pop %v1207
  %v1209 = vsel %vm464, %v1208, 0.0
  %v1210 = vrot.slane %v1209, 4
  %v1211 = vadd.f32 %v1209, %v1210
  %v1212 = vrot.slane %v1211, 2
  %v1213 = vadd.f32 %v1211, %v1212
  %v1214 = vrot.slane %v1213, 1
  %v1215 = vadd.f32 %v1213, %v1214
  %v1216 = vrcp.pop %v1215
  %v1217 = vmul.f32 %v1208, %v1216
  %v1219 = vsel %vm464, %v1217, 0
  %1221 = vmatprep.subr.mxu0 0.0
  %1222 = vmatpush1.msra.mxu0 %v489
  %1223 = vmatprep.subr.mxu0 0.0
  %1224 = vmatpush1.msra.mxu0 0.0
  %1225 = vmatprep.subr.mxu0 0.0
  %1226 = vmatpush1.msra.mxu0 0.0
  %1227 = vmatprep.subr.mxu0 0.0
  %1228 = vmatpush1.msra.mxu0 0.0
  %1229 = vmatprep.subr.mxu0 0.0
  %1230 = vmatpush1.msra.mxu0 0.0
  %1231 = vmatprep.subr.mxu0 0.0
  %1232 = vmatpush1.msra.mxu0 0.0
  %1233 = vmatprep.subr.mxu0 0.0
  %1234 = vmatpush1.msra.mxu0 0.0
  %1235 = vmatprep.subr.mxu0 0.0
  %1236 = vmatpush1.msra.mxu0 0.0
  %1237 = vmatprep.subr.mxu0 0.0
  %1238 = vmatpush1.msra.mxu0 0.0
  %1239 = vmatprep.subr.mxu0 0.0
  %1240 = vmatpush1.msra.mxu0 0.0
  %1241 = vmatprep.subr.mxu0 0.0
  %1242 = vmatpush1.msra.mxu0 0.0
  %1243 = vmatprep.subr.mxu0 0.0
  %1244 = vmatpush1.msra.mxu0 0.0
  %1245 = vmatprep.subr.mxu0 0.0
  %1246 = vmatpush1.msra.mxu0 0.0
  %1247 = vmatprep.subr.mxu0 0.0
  %1248 = vmatpush1.msra.mxu0 0.0
  %1249 = vmatprep.subr.mxu0 0.0
  %1250 = vmatpush1.msra.mxu0 0.0
  %1251 = vmatprep.subr.mxu0 0.0
  %1252 = vmatpush1.msra.mxu0 0.0
  %1253 = vmatprep.subr.mxu0 0.0
  %1254 = vmatpush1.msra.mxu0 0.0
  %1255 = vmatprep.subr.mxu0 0.0
  %1256 = vmatpush1.msra.mxu0 0.0
  %1257 = vmatprep.subr.mxu0 0.0
  %1258 = vmatpush1.msra.mxu0 0.0
  %1259 = vmatprep.subr.mxu0 0.0
  %1260 = vmatpush1.msra.mxu0 0.0
  %1261 = vmatprep.subr.mxu0 0.0
  %1262 = vmatpush1.msra.mxu0 0.0
  %1263 = vmatprep.subr.mxu0 0.0
  %1264 = vmatpush1.msra.mxu0 0.0
  %1265 = vmatprep.subr.mxu0 0.0
  %1266 = vmatpush1.msra.mxu0 0.0
  %1267 = vmatprep.subr.mxu0 0.0
  %1268 = vmatpush1.msra.mxu0 0.0
  %1269 = vmatprep.subr.mxu0 0.0
  %1270 = vmatpush1.msra.mxu0 0.0
  %1271 = vmatprep.subr.mxu0 0.0
  %1272 = vmatpush1.msra.mxu0 0.0
  %1273 = vmatprep.subr.mxu0 0.0
  %1274 = vmatpush1.msra.mxu0 0.0
  %1275 = vmatprep.subr.mxu0 0.0
  %1276 = vmatpush1.msra.mxu0 0.0
  %1277 = vmatprep.subr.mxu0 0.0
  %1278 = vmatpush1.msra.mxu0 0.0
  %1279 = vmatprep.subr.mxu0 0.0
  %1280 = vmatpush1.msra.mxu0 0.0
  %1281 = vmatprep.subr.mxu0 0.0
  %1282 = vmatpush1.msra.mxu0 0.0
  %1283 = vmatprep.subr.mxu0 0.0
  %1284 = vmatpush1.msra.mxu0 0.0
  %1285 = vmatprep.mubr.f32.mxu0 0.0
  %1286 = vmatmul.mubr.f32.gmra.mrb[0].mxu0 %v1219
  %v1287 = vpop.f32.mrb[0].mxu0
  %v1288 = vadd.f32 0.0, %v1287
  %v1289 = vpop.f32.mrb[0].mxu0
  %1290 = vdwg.mxu0
  %v1291 = vmul.f32 %v1288, %v932
  %v1292 = vsel %vm286, %v1291, 0.0
  %v1293 = vrot.slane %v1292, 4
  %v1294 = vadd.f32 %v1292, %v1293
  %v1295 = vrot.slane %v1294, 2
  %v1296 = vadd.f32 %v1294, %v1295
  %v1297 = vrot.slane %v1296, 1
  %v1298 = vadd.f32 %v1296, %v1297
  %1299 = vst.msk [vmem:[#allocation2 + $0x1] sm:$0x1] %vm374, %v1298
  %v1300 = vld [vmem:[#allocation2] sm:$0x3]
  %v1301 = vld [vmem:[%s9] sm:$0xff]
  %v1302 = vld [vmem:[%s9 + $0x8] sm:$0xff]
  %v1303 = vld [vmem:[%s9 + $0x10] sm:$0xff]
  %v1304 = vld [vmem:[%s9 + $0x18] sm:$0xff]
  %v1305 = vld [vmem:[%s9 + $0x20] sm:$0xff]
  %v1306 = vld [vmem:[%s9 + $0x28] sm:$0xff]
  %v1307 = vld [vmem:[%s9 + $0x30] sm:$0xff]
  %v1308 = vld [vmem:[%s9 + $0x38] sm:$0xff]
  %v1310 = vsel %vm286, %v1300, 0
  %1312 = vmatprep.subr.mxu0 0.0
  %1313 = vmatpush1.msra.mxu0 %v1301
  %1314 = vmatprep.subr.mxu0 0.0
  %1315 = vmatpush1.msra.mxu0 %v1302
  %1316 = vmatprep.subr.mxu0 0.0
  %1317 = vmatpush1.msra.mxu0 %v1303
  %1318 = vmatprep.subr.mxu0 0.0
  %1319 = vmatpush1.msra.mxu0 %v1304
  %1320 = vmatprep.subr.mxu0 0.0
  %1321 = vmatpush1.msra.mxu0 %v1305
  %1322 = vmatprep.subr.mxu0 0.0
  %1323 = vmatpush1.msra.mxu0 %v1306
  %1324 = vmatprep.subr.mxu0 0.0
  %1325 = vmatpush1.msra.mxu0 %v1307
  %1326 = vmatprep.subr.mxu0 0.0
  %1327 = vmatpush1.msra.mxu0 %v1308
  %1328 = vmatprep.subr.mxu0 0.0
  %1329 = vmatpush1.msra.mxu0 0.0
  %1330 = vmatprep.subr.mxu0 0.0
  %1331 = vmatpush1.msra.mxu0 0.0
  %1332 = vmatprep.subr.mxu0 0.0
  %1333 = vmatpush1.msra.mxu0 0.0
  %1334 = vmatprep.subr.mxu0 0.0
  %1335 = vmatpush1.msra.mxu0 0.0
  %1336 = vmatprep.subr.mxu0 0.0
  %1337 = vmatpush1.msra.mxu0 0.0
  %1338 = vmatprep.subr.mxu0 0.0
  %1339 = vmatpush1.msra.mxu0 0.0
  %1340 = vmatprep.subr.mxu0 0.0
  %1341 = vmatpush1.msra.mxu0 0.0
  %1342 = vmatprep.subr.mxu0 0.0
  %1343 = vmatpush1.msra.mxu0 0.0
  %1344 = vmatprep.subr.mxu0 0.0
  %1345 = vmatpush1.msra.mxu0 0.0
  %1346 = vmatprep.subr.mxu0 0.0
  %1347 = vmatpush1.msra.mxu0 0.0
  %1348 = vmatprep.subr.mxu0 0.0
  %1349 = vmatpush1.msra.mxu0 0.0
  %1350 = vmatprep.subr.mxu0 0.0
  %1351 = vmatpush1.msra.mxu0 0.0
  %1352 = vmatprep.subr.mxu0 0.0
  %1353 = vmatpush1.msra.mxu0 0.0
  %1354 = vmatprep.subr.mxu0 0.0
  %1355 = vmatpush1.msra.mxu0 0.0
  %1356 = vmatprep.subr.mxu0 0.0
  %1357 = vmatpush1.msra.mxu0 0.0
  %1358 = vmatprep.subr.mxu0 0.0
  %1359 = vmatpush1.msra.mxu0 0.0
  %1360 = vmatprep.subr.mxu0 0.0
  %1361 = vmatpush1.msra.mxu0 0.0
  %1362 = vmatprep.subr.mxu0 0.0
  %1363 = vmatpush1.msra.mxu0 0.0
  %1364 = vmatprep.subr.mxu0 0.0
  %1365 = vmatpush1.msra.mxu0 0.0
  %1366 = vmatprep.subr.mxu0 0.0
  %1367 = vmatpush1.msra.mxu0 0.0
  %1368 = vmatprep.subr.mxu0 0.0
  %1369 = vmatpush1.msra.mxu0 0.0
  %1370 = vmatprep.subr.mxu0 0.0
  %1371 = vmatpush1.msra.mxu0 0.0
  %1372 = vmatprep.subr.mxu0 0.0
  %1373 = vmatpush1.msra.mxu0 0.0
  %1374 = vmatprep.subr.mxu0 0.0
  %1375 = vmatpush1.msra.mxu0 0.0
  %1376 = vmatprep.mubr.f32.mxu0 0.0
  %1377 = vmatmul.mubr.f32.gmra.mrb[0].mxu0 %v1310
  %v1378 = vpop.f32.mrb[0].mxu0
  %v1379 = vadd.f32 0.0, %v1378
  %v1380 = vpop.f32.mrb[0].mxu0
  %1381 = vdwg.mxu0
  %v1382 = vadd.f32 %v831, %v1379
  %v1383 = vld [vmem:[%s5] sm:$0x1]
  %v1384 = vmul.f32 %v1382, %v1382
  %v1385 = vsel %vm254, %v1384, 0.0
  %1386 = vadd.xlane.f32.xlu0 %v1385
  %v1387 = vpop.xlane.xlu0 %1386
  %v1388 = vmul.f32 %v1387, %v258
  %v1389 = vadd.f32 %v1388, 1e-06
  %v1390 = vrsqrt.pop %v1389
  %v1391 = vmul.f32 %v1382, %v1390
  %v1393 = vlaneseq
  %v1394 = vshrl.u32 %v1393, 7
  %v1395 = vsub.s32 0, %v1394
  %v1396 = vrot.slane %v1383, %v1395
  %v1398 = vmul.f32 %v1391, %v1396
  %v1399 = vld [vmem:[%s10] sm:$0xff]
  %v1400 = vld [vmem:[%s10 + $0x8] sm:$0xff]
  %v1401 = vld [vmem:[%s10 + $0x10] sm:$0xff]
  %v1402 = vld [vmem:[%s10 + $0x18] sm:$0xff]
  %v1403 = vld [vmem:[%s10 + $0x20] sm:$0xff]
  %v1404 = vld [vmem:[%s10 + $0x28] sm:$0xff]
  %v1405 = vld [vmem:[%s10 + $0x30] sm:$0xff]
  %v1406 = vld [vmem:[%s10 + $0x38] sm:$0xff]
  %v1408 = vsel %vm286, %v1398, 0
  %1410 = vmatprep.subr.mxu0 0.0
  %1411 = vmatpush1.msra.mxu0 %v1399
  %1412 = vmatprep.subr.mxu0 0.0
  %1413 = vmatpush1.msra.mxu0 %v1400
  %1414 = vmatprep.subr.mxu0 0.0
  %1415 = vmatpush1.msra.mxu0 %v1401
  %1416 = vmatprep.subr.mxu0 0.0
  %1417 = vmatpush1.msra.mxu0 %v1402
  %1418 = vmatprep.subr.mxu0 0.0
  %1419 = vmatpush1.msra.mxu0 %v1403
  %1420 = vmatprep.subr.mxu0 0.0
  %1421 = vmatpush1.msra.mxu0 %v1404
  %1422 = vmatprep.subr.mxu0 0.0
  %1423 = vmatpush1.msra.mxu0 %v1405
  %1424 = vmatprep.subr.mxu0 0.0
  %1425 = vmatpush1.msra.mxu0 %v1406
  %1426 = vmatprep.subr.mxu0 0.0
  %1427 = vmatpush1.msra.mxu0 0.0
  %1428 = vmatprep.subr.mxu0 0.0
  %1429 = vmatpush1.msra.mxu0 0.0
  %1430 = vmatprep.subr.mxu0 0.0
  %1431 = vmatpush1.msra.mxu0 0.0
  %1432 = vmatprep.subr.mxu0 0.0
  %1433 = vmatpush1.msra.mxu0 0.0
  %1434 = vmatprep.subr.mxu0 0.0
  %1435 = vmatpush1.msra.mxu0 0.0
  %1436 = vmatprep.subr.mxu0 0.0
  %1437 = vmatpush1.msra.mxu0 0.0
  %1438 = vmatprep.subr.mxu0 0.0
  %1439 = vmatpush1.msra.mxu0 0.0
  %1440 = vmatprep.subr.mxu0 0.0
  %1441 = vmatpush1.msra.mxu0 0.0
  %1442 = vmatprep.subr.mxu0 0.0
  %1443 = vmatpush1.msra.mxu0 0.0
  %1444 = vmatprep.subr.mxu0 0.0
  %1445 = vmatpush1.msra.mxu0 0.0
  %1446 = vmatprep.subr.mxu0 0.0
  %1447 = vmatpush1.msra.mxu0 0.0
  %1448 = vmatprep.subr.mxu0 0.0
  %1449 = vmatpush1.msra.mxu0 0.0
  %1450 = vmatprep.subr.mxu0 0.0
  %1451 = vmatpush1.msra.mxu0 0.0
  %1452 = vmatprep.subr.mxu0 0.0
  %1453 = vmatpush1.msra.mxu0 0.0
  %1454 = vmatprep.subr.mxu0 0.0
  %1455 = vmatpush1.msra.mxu0 0.0
  %1456 = vmatprep.subr.mxu0 0.0
  %1457 = vmatpush1.msra.mxu0 0.0
  %1458 = vmatprep.subr.mxu0 0.0
  %1459 = vmatpush1.msra.mxu0 0.0
  %1460 = vmatprep.subr.mxu0 0.0
  %1461 = vmatpush1.msra.mxu0 0.0
  %1462 = vmatprep.subr.mxu0 0.0
  %1463 = vmatpush1.msra.mxu0 0.0
  %1464 = vmatprep.subr.mxu0 0.0
  %1465 = vmatpush1.msra.mxu0 0.0
  %1466 = vmatprep.subr.mxu0 0.0
  %1467 = vmatpush1.msra.mxu0 0.0
  %1468 = vmatprep.subr.mxu0 0.0
  %1469 = vmatpush1.msra.mxu0 0.0
  %1470 = vmatprep.subr.mxu0 0.0
  %1471 = vmatpush1.msra.mxu0 0.0
  %1472 = vmatprep.subr.mxu0 0.0
  %1473 = vmatpush1.msra.mxu0 0.0
  %1474 = vmatprep.mubr.f32.mxu0 0.0
  %1475 = vmatmul.mubr.f32.gmra.mrb[0].mxu0 %v1408
  %v1476 = vpop.f32.mrb[0].mxu0
  %v1477 = vadd.f32 0.0, %v1476
  %v1478 = vpop.f32.mrb[0].mxu0
  %1479 = vdwg.mxu0
  %v1480 = vmax.f32 %v1477, 0.0
  %v1481 = vld [vmem:[%s11] sm:$0xff]
  %v1482 = vld [vmem:[%s11 + $0x8] sm:$0xff]
  %v1483 = vld [vmem:[%s11 + $0x10] sm:$0xff]
  %v1484 = vld [vmem:[%s11 + $0x18] sm:$0xff]
  %v1485 = vld [vmem:[%s11 + $0x20] sm:$0xff]
  %v1486 = vld [vmem:[%s11 + $0x28] sm:$0xff]
  %v1487 = vld [vmem:[%s11 + $0x30] sm:$0xff]
  %v1488 = vld [vmem:[%s11 + $0x38] sm:$0xff]
  %v1489 = vld [vmem:[%s11 + $0x40] sm:$0xff]
  %v1490 = vld [vmem:[%s11 + $0x48] sm:$0xff]
  %v1491 = vld [vmem:[%s11 + $0x50] sm:$0xff]
  %v1492 = vld [vmem:[%s11 + $0x58] sm:$0xff]
  %v1493 = vld [vmem:[%s11 + $0x60] sm:$0xff]
  %v1494 = vld [vmem:[%s11 + $0x68] sm:$0xff]
  %v1495 = vld [vmem:[%s11 + $0x70] sm:$0xff]
  %v1496 = vld [vmem:[%s11 + $0x78] sm:$0xff]
  %1497 = vmatprep.subr.mxu0 0.0
  %1498 = vmatpush1.msra.mxu0 %v1481
  %1499 = vmatprep.subr.mxu0 0.0
  %1500 = vmatpush1.msra.mxu0 %v1482
  %1501 = vmatprep.subr.mxu0 0.0
  %1502 = vmatpush1.msra.mxu0 %v1483
  %1503 = vmatprep.subr.mxu0 0.0
  %1504 = vmatpush1.msra.mxu0 %v1484
  %1505 = vmatprep.subr.mxu0 0.0
  %1506 = vmatpush1.msra.mxu0 %v1485
  %1507 = vmatprep.subr.mxu0 0.0
  %1508 = vmatpush1.msra.mxu0 %v1486
  %1509 = vmatprep.subr.mxu0 0.0
  %1510 = vmatpush1.msra.mxu0 %v1487
  %1511 = vmatprep.subr.mxu0 0.0
  %1512 = vmatpush1.msra.mxu0 %v1488
  %1513 = vmatprep.subr.mxu0 0.0
  %1514 = vmatpush1.msra.mxu0 %v1489
  %1515 = vmatprep.subr.mxu0 0.0
  %1516 = vmatpush1.msra.mxu0 %v1490
  %1517 = vmatprep.subr.mxu0 0.0
  %1518 = vmatpush1.msra.mxu0 %v1491
  %1519 = vmatprep.subr.mxu0 0.0
  %1520 = vmatpush1.msra.mxu0 %v1492
  %1521 = vmatprep.subr.mxu0 0.0
  %1522 = vmatpush1.msra.mxu0 %v1493
  %1523 = vmatprep.subr.mxu0 0.0
  %1524 = vmatpush1.msra.mxu0 %v1494
  %1525 = vmatprep.subr.mxu0 0.0
  %1526 = vmatpush1.msra.mxu0 %v1495
  %1527 = vmatprep.subr.mxu0 0.0
  %1528 = vmatpush1.msra.mxu0 %v1496
  %1529 = vmatprep.subr.mxu0 0.0
  %1530 = vmatpush1.msra.mxu0 0.0
  %1531 = vmatprep.subr.mxu0 0.0
  %1532 = vmatpush1.msra.mxu0 0.0
  %1533 = vmatprep.subr.mxu0 0.0
  %1534 = vmatpush1.msra.mxu0 0.0
  %1535 = vmatprep.subr.mxu0 0.0
  %1536 = vmatpush1.msra.mxu0 0.0
  %1537 = vmatprep.subr.mxu0 0.0
  %1538 = vmatpush1.msra.mxu0 0.0
  %1539 = vmatprep.subr.mxu0 0.0
  %1540 = vmatpush1.msra.mxu0 0.0
  %1541 = vmatprep.subr.mxu0 0.0
  %1542 = vmatpush1.msra.mxu0 0.0
  %1543 = vmatprep.subr.mxu0 0.0
  %1544 = vmatpush1.msra.mxu0 0.0
  %1545 = vmatprep.subr.mxu0 0.0
  %1546 = vmatpush1.msra.mxu0 0.0
  %1547 = vmatprep.subr.mxu0 0.0
  %1548 = vmatpush1.msra.mxu0 0.0
  %1549 = vmatprep.subr.mxu0 0.0
  %1550 = vmatpush1.msra.mxu0 0.0
  %1551 = vmatprep.subr.mxu0 0.0
  %1552 = vmatpush1.msra.mxu0 0.0
  %1553 = vmatprep.subr.mxu0 0.0
  %1554 = vmatpush1.msra.mxu0 0.0
  %1555 = vmatprep.subr.mxu0 0.0
  %1556 = vmatpush1.msra.mxu0 0.0
  %1557 = vmatprep.subr.mxu0 0.0
  %1558 = vmatpush1.msra.mxu0 0.0
  %1559 = vmatprep.subr.mxu0 0.0
  %1560 = vmatpush1.msra.mxu0 0.0
  %1561 = vmatprep.mubr.f32.mxu0 0.0
  %1562 = vmatmul.mubr.f32.gmra.mrb[0].mxu0 %v1480
  %v1563 = vpop.f32.mrb[0].mxu0
  %v1564 = vadd.f32 0.0, %v1563
  %v1565 = vpop.f32.mrb[0].mxu0
  %1566 = vdwg.mxu0
  %v1567 = vadd.f32 %v1382, %v1564
  %s1568 = scalar_lea.vmem %s3, 1
  %v1569 = vld [vmem:[%s1568] sm:$0x1]
  %v1570 = vmul.f32 %v1567, %v1567
  %v1571 = vsel %vm254, %v1570, 0.0
  %1572 = vadd.xlane.f32.xlu0 %v1571
  %v1573 = vpop.xlane.xlu0 %1572
  %v1574 = vmul.f32 %v1573, %v258
  %v1575 = vadd.f32 %v1574, 1e-06
  %v1576 = vrsqrt.pop %v1575
  %v1577 = vmul.f32 %v1567, %v1576
  %v1579 = vlaneseq
  %v1580 = vshrl.u32 %v1579, 7
  %v1581 = vsub.s32 0, %v1580
  %v1582 = vrot.slane %v1569, %v1581
  %v1584 = vmul.f32 %v1577, %v1582
  %s1585 = scalar_lea.vmem %s6, 128
  %v1586 = vld [vmem:[%s1585] sm:$0xff]
  %v1587 = vld [vmem:[%s1585 + $0x8] sm:$0xff]
  %v1588 = vld [vmem:[%s1585 + $0x10] sm:$0xff]
  %v1589 = vld [vmem:[%s1585 + $0x18] sm:$0xff]
  %v1590 = vld [vmem:[%s1585 + $0x20] sm:$0xff]
  %v1591 = vld [vmem:[%s1585 + $0x28] sm:$0xff]
  %v1592 = vld [vmem:[%s1585 + $0x30] sm:$0xff]
  %v1593 = vld [vmem:[%s1585 + $0x38] sm:$0xff]
  %v1594 = vld [vmem:[%s1585 + $0x40] sm:$0xff]
  %v1595 = vld [vmem:[%s1585 + $0x48] sm:$0xff]
  %v1596 = vld [vmem:[%s1585 + $0x50] sm:$0xff]
  %v1597 = vld [vmem:[%s1585 + $0x58] sm:$0xff]
  %v1598 = vld [vmem:[%s1585 + $0x60] sm:$0xff]
  %v1599 = vld [vmem:[%s1585 + $0x68] sm:$0xff]
  %v1600 = vld [vmem:[%s1585 + $0x70] sm:$0xff]
  %v1601 = vld [vmem:[%s1585 + $0x78] sm:$0xff]
  %v1603 = vsel %vm286, %v1584, 0
  %1605 = vmatprep.subr.mxu0 %v1587
  %1606 = vmatpush1.msra.mxu0 %v1586
  %1607 = vmatprep.subr.mxu0 %v1589
  %1608 = vmatpush1.msra.mxu0 %v1588
  %1609 = vmatprep.subr.mxu0 %v1591
  %1610 = vmatpush1.msra.mxu0 %v1590
  %1611 = vmatprep.subr.mxu0 %v1593
  %1612 = vmatpush1.msra.mxu0 %v1592
  %1613 = vmatprep.subr.mxu0 %v1595
  %1614 = vmatpush1.msra.mxu0 %v1594
  %1615 = vmatprep.subr.mxu0 %v1597
  %1616 = vmatpush1.msra.mxu0 %v1596
  %1617 = vmatprep.subr.mxu0 %v1599
  %1618 = vmatpush1.msra.mxu0 %v1598
  %1619 = vmatprep.subr.mxu0 %v1601
  %1620 = vmatpush1.msra.mxu0 %v1600
  %1621 = vmatprep.subr.mxu0 0.0
  %1622 = vmatpush1.msra.mxu0 0.0
  %1623 = vmatprep.subr.mxu0 0.0
  %1624 = vmatpush1.msra.mxu0 0.0
  %1625 = vmatprep.subr.mxu0 0.0
  %1626 = vmatpush1.msra.mxu0 0.0
  %1627 = vmatprep.subr.mxu0 0.0
  %1628 = vmatpush1.msra.mxu0 0.0
  %1629 = vmatprep.subr.mxu0 0.0
  %1630 = vmatpush1.msra.mxu0 0.0
  %1631 = vmatprep.subr.mxu0 0.0
  %1632 = vmatpush1.msra.mxu0 0.0
  %1633 = vmatprep.subr.mxu0 0.0
  %1634 = vmatpush1.msra.mxu0 0.0
  %1635 = vmatprep.subr.mxu0 0.0
  %1636 = vmatpush1.msra.mxu0 0.0
  %1637 = vmatprep.subr.mxu0 0.0
  %1638 = vmatpush1.msra.mxu0 0.0
  %1639 = vmatprep.subr.mxu0 0.0
  %1640 = vmatpush1.msra.mxu0 0.0
  %1641 = vmatprep.subr.mxu0 0.0
  %1642 = vmatpush1.msra.mxu0 0.0
  %1643 = vmatprep.subr.mxu0 0.0
  %1644 = vmatpush1.msra.mxu0 0.0
  %1645 = vmatprep.subr.mxu0 0.0
  %1646 = vmatpush1.msra.mxu0 0.0
  %1647 = vmatprep.subr.mxu0 0.0
  %1648 = vmatpush1.msra.mxu0 0.0
  %1649 = vmatprep.subr.mxu0 0.0
  %1650 = vmatpush1.msra.mxu0 0.0
  %1651 = vmatprep.subr.mxu0 0.0
  %1652 = vmatpush1.msra.mxu0 0.0
  %1653 = vmatprep.subr.mxu0 0.0
  %1654 = vmatpush1.msra.mxu0 0.0
  %1655 = vmatprep.subr.mxu0 0.0
  %1656 = vmatpush1.msra.mxu0 0.0
  %1657 = vmatprep.subr.mxu0 0.0
  %1658 = vmatpush1.msra.mxu0 0.0
  %1659 = vmatprep.subr.mxu0 0.0
  %1660 = vmatpush1.msra.mxu0 0.0
  %1661 = vmatprep.subr.mxu0 0.0
  %1662 = vmatpush1.msra.mxu0 0.0
  %1663 = vmatprep.subr.mxu0 0.0
  %1664 = vmatpush1.msra.mxu0 0.0
  %1665 = vmatprep.subr.mxu0 0.0
  %1666 = vmatpush1.msra.mxu0 0.0
  %1667 = vmatprep.subr.mxu0 0.0
  %1668 = vmatpush1.msra.mxu0 0.0
  %1669 = vmatprep.mubr.f32.mxu0 0.0
  %1670 = vmatmul.mubr.f32.gmra.mrb[0].mxu0 %v1603
  %v1671 = vpop.f32.mrb[0].mxu0
  %v1672 = vadd.f32 0.0, %v1671
  %v1673 = vpop.f32.mrb[0].mxu0
  %v1674 = vadd.f32 0.0, %v1673
  %1675 = vdwg.mxu0
  %v1676 = vld [vmem:[%s18] sm:$0x7f]
  %v1677 = vld [vmem:[%s18 + $0x8] sm:$0x7f]
  %1678 = vst.msk [vmem:[%s25] sm:$0x7f] %vm363, %v1676
  %1679 = vst.msk [vmem:[%s25 + $0x8] sm:$0x7f] %vm363, %v1677
  %v1680 = vld [vmem:[%s19] sm:$0x7f]
  %v1681 = vld [vmem:[%s19 + $0x8] sm:$0x7f]
  %1682 = vst.msk [vmem:[%s26] sm:$0x7f] %vm363, %v1680
  %1683 = vst.msk [vmem:[%s26 + $0x8] sm:$0x7f] %vm363, %v1681
  %1685 = vrot.lane.b32.xlu0 %v1672, 64
  %v1686 = vpop.permute.xlu0 %1685
  %1688 = vst.msk [vmem:[%s25 + $0x7] sm:$0x1] %vm374, %v1686
  %1689 = vst.msk [vmem:[%s26 + $0x7] sm:$0x1] %vm374, %v1674
  %s1690 = scalar_lea.vmem %s25, 8
  %1691 = vst.msk [vmem:[%s1690 + $0x6] sm:$0x2] %vm378, %v1686
  %s1692 = scalar_lea.vmem %s26, 8
  %1693 = vst.msk [vmem:[%s1692 + $0x6] sm:$0x2] %vm378, %v1674
  %v1694 = vld [vmem:[%s25] sm:$0xff]
  %v1695 = vld [vmem:[%s25 + $0x8] sm:$0xff]
  %v1696 = vld [vmem:[%s26] sm:$0xff]
  %v1697 = vld [vmem:[%s26 + $0x8] sm:$0xff]
  %v1698 = vlaneseq
  %v1699 = vshrl.u32 %v1698, 7
  %v1700 = vsub.s32 0, %v1699
  %v1701 = vrot.slane %v1672, %v1700
  %v1702 = vmul.f32 %v1694, %v1701
  %v1704 = vsel %vm286, %v1702, 0
  %1706 = vmatprep.subr.mxu0 0.0
  %1707 = vmatpush1.msra.mxu0 %v121
  %1708 = vmatprep.subr.mxu0 0.0
  %1709 = vmatpush1.msra.mxu0 %v122
  %1710 = vmatprep.subr.mxu0 0.0
  %1711 = vmatpush1.msra.mxu0 %v123
  %1712 = vmatprep.subr.mxu0 0.0
  %1713 = vmatpush1.msra.mxu0 %v124
  %1714 = vmatprep.subr.mxu0 0.0
  %1715 = vmatpush1.msra.mxu0 %v125
  %1716 = vmatprep.subr.mxu0 0.0
  %1717 = vmatpush1.msra.mxu0 %v126
  %1718 = vmatprep.subr.mxu0 0.0
  %1719 = vmatpush1.msra.mxu0 %v127
  %1720 = vmatprep.subr.mxu0 0.0
  %1721 = vmatpush1.msra.mxu0 %v128
  %1722 = vmatprep.subr.mxu0 0.0
  %1723 = vmatpush1.msra.mxu0 0.0
  %1724 = vmatprep.subr.mxu0 0.0
  %1725 = vmatpush1.msra.mxu0 0.0
  %1726 = vmatprep.subr.mxu0 0.0
  %1727 = vmatpush1.msra.mxu0 0.0
  %1728 = vmatprep.subr.mxu0 0.0
  %1729 = vmatpush1.msra.mxu0 0.0
  %1730 = vmatprep.subr.mxu0 0.0
  %1731 = vmatpush1.msra.mxu0 0.0
  %1732 = vmatprep.subr.mxu0 0.0
  %1733 = vmatpush1.msra.mxu0 0.0
  %1734 = vmatprep.subr.mxu0 0.0
  %1735 = vmatpush1.msra.mxu0 0.0
  %1736 = vmatprep.subr.mxu0 0.0
  %1737 = vmatpush1.msra.mxu0 0.0
  %1738 = vmatprep.subr.mxu0 0.0
  %1739 = vmatpush1.msra.mxu0 0.0
  %1740 = vmatprep.subr.mxu0 0.0
  %1741 = vmatpush1.msra.mxu0 0.0
  %1742 = vmatprep.subr.mxu0 0.0
  %1743 = vmatpush1.msra.mxu0 0.0
  %1744 = vmatprep.subr.mxu0 0.0
  %1745 = vmatpush1.msra.mxu0 0.0
  %1746 = vmatprep.subr.mxu0 0.0
  %1747 = vmatpush1.msra.mxu0 0.0
  %1748 = vmatprep.subr.mxu0 0.0
  %1749 = vmatpush1.msra.mxu0 0.0
  %1750 = vmatprep.subr.mxu0 0.0
  %1751 = vmatpush1.msra.mxu0 0.0
  %1752 = vmatprep.subr.mxu0 0.0
  %1753 = vmatpush1.msra.mxu0 0.0
  %1754 = vmatprep.subr.mxu0 0.0
  %1755 = vmatpush1.msra.mxu0 0.0
  %1756 = vmatprep.subr.mxu0 0.0
  %1757 = vmatpush1.msra.mxu0 0.0
  %1758 = vmatprep.subr.mxu0 0.0
  %1759 = vmatpush1.msra.mxu0 0.0
  %1760 = vmatprep.subr.mxu0 0.0
  %1761 = vmatpush1.msra.mxu0 0.0
  %1762 = vmatprep.subr.mxu0 0.0
  %1763 = vmatpush1.msra.mxu0 0.0
  %1764 = vmatprep.subr.mxu0 0.0
  %1765 = vmatpush1.msra.mxu0 0.0
  %1766 = vmatprep.subr.mxu0 0.0
  %1767 = vmatpush1.msra.mxu0 0.0
  %1768 = vmatprep.subr.mxu0 0.0
  %1769 = vmatpush1.msra.mxu0 0.0
  %1770 = vmatprep.mubr.f32.mxu0 0.0
  %1771 = vmatmul.mubr.f32.gmra.mrb[0].mxu0 %v1704
  %v1772 = vpop.f32.mrb[0].mxu0
  %v1773 = vadd.f32 0.0, %v1772
  %v1774 = vpop.f32.mrb[0].mxu0
  %1775 = vdwg.mxu0
  %v1776 = vsel %vm464, %v1773, -inf
  %v1777 = vrot.slane %v1776, 4
  %v1778 = vmax.f32 %v1776, %v1777
  %v1779 = vrot.slane %v1778, 2
  %v1780 = vmax.f32 %v1778, %v1779
  %v1781 = vrot.slane %v1780, 1
  %v1782 = vmax.f32 %v1780, %v1781
  %v1783 = vsub.f32 %v1773, %v1782
  %v1784 = vmul.f32 %v1783, 1.442695
  %v1785 = vpow.pop %v1784
  %v1786 = vsel %vm464, %v1785, 0.0
  %v1787 = vrot.slane %v1786, 4
  %v1788 = vadd.f32 %v1786, %v1787
  %v1789 = vrot.slane %v1788, 2
  %v1790 = vadd.f32 %v1788, %v1789
  %v1791 = vrot.slane %v1790, 1
  %v1792 = vadd.f32 %v1790, %v1791
  %v1793 = vrcp.pop %v1792
  %v1794 = vmul.f32 %v1785, %v1793
  %v1796 = vsel %vm464, %v1794, 0
  %1798 = vmatprep.subr.mxu0 0.0
  %1799 = vmatpush1.msra.mxu0 %v489
  %1800 = vmatprep.subr.mxu0 0.0
  %1801 = vmatpush1.msra.mxu0 0.0
  %1802 = vmatprep.subr.mxu0 0.0
  %1803 = vmatpush1.msra.mxu0 0.0
  %1804 = vmatprep.subr.mxu0 0.0
  %1805 = vmatpush1.msra.mxu0 0.0
  %1806 = vmatprep.subr.mxu0 0.0
  %1807 = vmatpush1.msra.mxu0 0.0
  %1808 = vmatprep.subr.mxu0 0.0
  %1809 = vmatpush1.msra.mxu0 0.0
  %1810 = vmatprep.subr.mxu0 0.0
  %1811 = vmatpush1.msra.mxu0 0.0
  %1812 = vmatprep.subr.mxu0 0.0
  %1813 = vmatpush1.msra.mxu0 0.0
  %1814 = vmatprep.subr.mxu0 0.0
  %1815 = vmatpush1.msra.mxu0 0.0
  %1816 = vmatprep.subr.mxu0 0.0
  %1817 = vmatpush1.msra.mxu0 0.0
  %1818 = vmatprep.subr.mxu0 0.0
  %1819 = vmatpush1.msra.mxu0 0.0
  %1820 = vmatprep.subr.mxu0 0.0
  %1821 = vmatpush1.msra.mxu0 0.0
  %1822 = vmatprep.subr.mxu0 0.0
  %1823 = vmatpush1.msra.mxu0 0.0
  %1824 = vmatprep.subr.mxu0 0.0
  %1825 = vmatpush1.msra.mxu0 0.0
  %1826 = vmatprep.subr.mxu0 0.0
  %1827 = vmatpush1.msra.mxu0 0.0
  %1828 = vmatprep.subr.mxu0 0.0
  %1829 = vmatpush1.msra.mxu0 0.0
  %1830 = vmatprep.subr.mxu0 0.0
  %1831 = vmatpush1.msra.mxu0 0.0
  %1832 = vmatprep.subr.mxu0 0.0
  %1833 = vmatpush1.msra.mxu0 0.0
  %1834 = vmatprep.subr.mxu0 0.0
  %1835 = vmatpush1.msra.mxu0 0.0
  %1836 = vmatprep.subr.mxu0 0.0
  %1837 = vmatpush1.msra.mxu0 0.0
  %1838 = vmatprep.subr.mxu0 0.0
  %1839 = vmatpush1.msra.mxu0 0.0
  %1840 = vmatprep.subr.mxu0 0.0
  %1841 = vmatpush1.msra.mxu0 0.0
  %1842 = vmatprep.subr.mxu0 0.0
  %1843 = vmatpush1.msra.mxu0 0.0
  %1844 = vmatprep.subr.mxu0 0.0
  %1845 = vmatpush1.msra.mxu0 0.0
  %1846 = vmatprep.subr.mxu0 0.0
  %1847 = vmatpush1.msra.mxu0 0.0
  %1848 = vmatprep.subr.mxu0 0.0
  %1849 = vmatpush1.msra.mxu0 0.0
  %1850 = vmatprep.subr.mxu0 0.0
  %1851 = vmatpush1.msra.mxu0 0.0
  %1852 = vmatprep.subr.mxu0 0.0
  %1853 = vmatpush1.msra.mxu0 0.0
  %1854 = vmatprep.subr.mxu0 0.0
  %1855 = vmatpush1.msra.mxu0 0.0
  %1856 = vmatprep.subr.mxu0 0.0
  %1857 = vmatpush1.msra.mxu0 0.0
  %1858 = vmatprep.subr.mxu0 0.0
  %1859 = vmatpush1.msra.mxu0 0.0
  %1860 = vmatprep.subr.mxu0 0.0
  %1861 = vmatpush1.msra.mxu0 0.0
  %1862 = vmatprep.mubr.f32.mxu0 0.0
  %1863 = vmatmul.mubr.f32.gmra.mrb[0].mxu0 %v1796
  %v1864 = vpop.f32.mrb[0].mxu0
  %v1865 = vadd.f32 0.0, %v1864
  %v1866 = vpop.f32.mrb[0].mxu0
  %1867 = vdwg.mxu0
  %v1868 = vmul.f32 %v1865, %v1696
  %v1869 = vsel %vm286, %v1868, 0.0
  %v1870 = vrot.slane %v1869, 4
  %v1871 = vadd.f32 %v1869, %v1870
  %v1872 = vrot.slane %v1871, 2
  %v1873 = vadd.f32 %v1871, %v1872
  %v1874 = vrot.slane %v1873, 1
  %v1875 = vadd.f32 %v1873, %v1874
  %1876 = vst.msk [vmem:[#allocation2] sm:$0x1] %vm374, %v1875
  %v1877 = vlaneseq
  %v1878 = vshrl.u32 %v1877, 7
  %v1879 = vsub.s32 1, %v1878
  %v1880 = vrot.slane %v1672, %v1879
  %v1881 = vmul.f32 %v1695, %v1880
  %v1883 = vsel %vm286, %v1881, 0
  %1885 = vmatprep.subr.mxu0 0.0
  %1886 = vmatpush1.msra.mxu0 %v121
  %1887 = vmatprep.subr.mxu0 0.0
  %1888 = vmatpush1.msra.mxu0 %v122
  %1889 = vmatprep.subr.mxu0 0.0
  %1890 = vmatpush1.msra.mxu0 %v123
  %1891 = vmatprep.subr.mxu0 0.0
  %1892 = vmatpush1.msra.mxu0 %v124
  %1893 = vmatprep.subr.mxu0 0.0
  %1894 = vmatpush1.msra.mxu0 %v125
  %1895 = vmatprep.subr.mxu0 0.0
  %1896 = vmatpush1.msra.mxu0 %v126
  %1897 = vmatprep.subr.mxu0 0.0
  %1898 = vmatpush1.msra.mxu0 %v127
  %1899 = vmatprep.subr.mxu0 0.0
  %1900 = vmatpush1.msra.mxu0 %v128
  %1901 = vmatprep.subr.mxu0 0.0
  %1902 = vmatpush1.msra.mxu0 0.0
  %1903 = vmatprep.subr.mxu0 0.0
  %1904 = vmatpush1.msra.mxu0 0.0
  %1905 = vmatprep.subr.mxu0 0.0
  %1906 = vmatpush1.msra.mxu0 0.0
  %1907 = vmatprep.subr.mxu0 0.0
  %1908 = vmatpush1.msra.mxu0 0.0
  %1909 = vmatprep.subr.mxu0 0.0
  %1910 = vmatpush1.msra.mxu0 0.0
  %1911 = vmatprep.subr.mxu0 0.0
  %1912 = vmatpush1.msra.mxu0 0.0
  %1913 = vmatprep.subr.mxu0 0.0
  %1914 = vmatpush1.msra.mxu0 0.0
  %1915 = vmatprep.subr.mxu0 0.0
  %1916 = vmatpush1.msra.mxu0 0.0
  %1917 = vmatprep.subr.mxu0 0.0
  %1918 = vmatpush1.msra.mxu0 0.0
  %1919 = vmatprep.subr.mxu0 0.0
  %1920 = vmatpush1.msra.mxu0 0.0
  %1921 = vmatprep.subr.mxu0 0.0
  %1922 = vmatpush1.msra.mxu0 0.0
  %1923 = vmatprep.subr.mxu0 0.0
  %1924 = vmatpush1.msra.mxu0 0.0
  %1925 = vmatprep.subr.mxu0 0.0
  %1926 = vmatpush1.msra.mxu0 0.0
  %1927 = vmatprep.subr.mxu0 0.0
  %1928 = vmatpush1.msra.mxu0 0.0
  %1929 = vmatprep.subr.mxu0 0.0
  %1930 = vmatpush1.msra.mxu0 0.0
  %1931 = vmatprep.subr.mxu0 0.0
  %1932 = vmatpush1.msra.mxu0 0.0
  %1933 = vmatprep.subr.mxu0 0.0
  %1934 = vmatpush1.msra.mxu0 0.0
  %1935 = vmatprep.subr.mxu0 0.0
  %1936 = vmatpush1.msra.mxu0 0.0
  %1937 = vmatprep.subr.mxu0 0.0
  %1938 = vmatpush1.msra.mxu0 0.0
  %1939 = vmatprep.subr.mxu0 0.0
  %1940 = vmatpush1.msra.mxu0 0.0
  %1941 = vmatprep.subr.mxu0 0.0
  %1942 = vmatpush1.msra.mxu0 0.0
  %1943 = vmatprep.subr.mxu0 0.0
  %1944 = vmatpush1.msra.mxu0 0.0
  %1945 = vmatprep.subr.mxu0 0.0
  %1946 = vmatpush1.msra.mxu0 0.0
  %1947 = vmatprep.subr.mxu0 0.0
  %1948 = vmatpush1.msra.mxu0 0.0
  %1949 = vmatprep.mubr.f32.mxu0 0.0
  %1950 = vmatmul.mubr.f32.gmra.mrb[0].mxu0 %v1883
  %v1951 = vpop.f32.mrb[0].mxu0
  %v1952 = vadd.f32 0.0, %v1951
  %v1953 = vpop.f32.mrb[0].mxu0
  %1954 = vdwg.mxu0
  %v1955 = vsel %vm464, %v1952, -inf
  %v1956 = vrot.slane %v1955, 4
  %v1957 = vmax.f32 %v1955, %v1956
  %v1958 = vrot.slane %v1957, 2
  %v1959 = vmax.f32 %v1957, %v1958
  %v1960 = vrot.slane %v1959, 1
  %v1961 = vmax.f32 %v1959, %v1960
  %v1962 = vsub.f32 %v1952, %v1961
  %v1963 = vmul.f32 %v1962, 1.442695
  %v1964 = vpow.pop %v1963
  %v1965 = vsel %vm464, %v1964, 0.0
  %v1966 = vrot.slane %v1965, 4
  %v1967 = vadd.f32 %v1965, %v1966
  %v1968 = vrot.slane %v1967, 2
  %v1969 = vadd.f32 %v1967, %v1968
  %v1970 = vrot.slane %v1969, 1
  %v1971 = vadd.f32 %v1969, %v1970
  %v1972 = vrcp.pop %v1971
  %v1973 = vmul.f32 %v1964, %v1972
  %v1975 = vsel %vm464, %v1973, 0
  %1977 = vmatprep.subr.mxu0 0.0
  %1978 = vmatpush1.msra.mxu0 %v489
  %1979 = vmatprep.subr.mxu0 0.0
  %1980 = vmatpush1.msra.mxu0 0.0
  %1981 = vmatprep.subr.mxu0 0.0
  %1982 = vmatpush1.msra.mxu0 0.0
  %1983 = vmatprep.subr.mxu0 0.0
  %1984 = vmatpush1.msra.mxu0 0.0
  %1985 = vmatprep.subr.mxu0 0.0
  %1986 = vmatpush1.msra.mxu0 0.0
  %1987 = vmatprep.subr.mxu0 0.0
  %1988 = vmatpush1.msra.mxu0 0.0
  %1989 = vmatprep.subr.mxu0 0.0
  %1990 = vmatpush1.msra.mxu0 0.0
  %1991 = vmatprep.subr.mxu0 0.0
  %1992 = vmatpush1.msra.mxu0 0.0
  %1993 = vmatprep.subr.mxu0 0.0
  %1994 = vmatpush1.msra.mxu0 0.0
  %1995 = vmatprep.subr.mxu0 0.0
  %1996 = vmatpush1.msra.mxu0 0.0
  %1997 = vmatprep.subr.mxu0 0.0
  %1998 = vmatpush1.msra.mxu0 0.0
  %1999 = vmatprep.subr.mxu0 0.0
  %2000 = vmatpush1.msra.mxu0 0.0
  %2001 = vmatprep.subr.mxu0 0.0
  %2002 = vmatpush1.msra.mxu0 0.0
  %2003 = vmatprep.subr.mxu0 0.0
  %2004 = vmatpush1.msra.mxu0 0.0
  %2005 = vmatprep.subr.mxu0 0.0
  %2006 = vmatpush1.msra.mxu0 0.0
  %2007 = vmatprep.subr.mxu0 0.0
  %2008 = vmatpush1.msra.mxu0 0.0
  %2009 = vmatprep.subr.mxu0 0.0
  %2010 = vmatpush1.msra.mxu0 0.0
  %2011 = vmatprep.subr.mxu0 0.0
  %2012 = vmatpush1.msra.mxu0 0.0
  %2013 = vmatprep.subr.mxu0 0.0
  %2014 = vmatpush1.msra.mxu0 0.0
  %2015 = vmatprep.subr.mxu0 0.0
  %2016 = vmatpush1.msra.mxu0 0.0
  %2017 = vmatprep.subr.mxu0 0.0
  %2018 = vmatpush1.msra.mxu0 0.0
  %2019 = vmatprep.subr.mxu0 0.0
  %2020 = vmatpush1.msra.mxu0 0.0
  %2021 = vmatprep.subr.mxu0 0.0
  %2022 = vmatpush1.msra.mxu0 0.0
  %2023 = vmatprep.subr.mxu0 0.0
  %2024 = vmatpush1.msra.mxu0 0.0
  %2025 = vmatprep.subr.mxu0 0.0
  %2026 = vmatpush1.msra.mxu0 0.0
  %2027 = vmatprep.subr.mxu0 0.0
  %2028 = vmatpush1.msra.mxu0 0.0
  %2029 = vmatprep.subr.mxu0 0.0
  %2030 = vmatpush1.msra.mxu0 0.0
  %2031 = vmatprep.subr.mxu0 0.0
  %2032 = vmatpush1.msra.mxu0 0.0
  %2033 = vmatprep.subr.mxu0 0.0
  %2034 = vmatpush1.msra.mxu0 0.0
  %2035 = vmatprep.subr.mxu0 0.0
  %2036 = vmatpush1.msra.mxu0 0.0
  %2037 = vmatprep.subr.mxu0 0.0
  %2038 = vmatpush1.msra.mxu0 0.0
  %2039 = vmatprep.subr.mxu0 0.0
  %2040 = vmatpush1.msra.mxu0 0.0
  %2041 = vmatprep.mubr.f32.mxu0 0.0
  %2042 = vmatmul.mubr.f32.gmra.mrb[0].mxu0 %v1975
  %v2043 = vpop.f32.mrb[0].mxu0
  %v2044 = vadd.f32 0.0, %v2043
  %v2045 = vpop.f32.mrb[0].mxu0
  %2046 = vdwg.mxu0
  %v2047 = vmul.f32 %v2044, %v1697
  %v2048 = vsel %vm286, %v2047, 0.0
  %v2049 = vrot.slane %v2048, 4
  %v2050 = vadd.f32 %v2048, %v2049
  %v2051 = vrot.slane %v2050, 2
  %v2052 = vadd.f32 %v2050, %v2051
  %v2053 = vrot.slane %v2052, 1
  %v2054 = vadd.f32 %v2052, %v2053
  %2055 = vst.msk [vmem:[#allocation2 + $0x1] sm:$0x1] %vm374, %v2054
  %v2056 = vld [vmem:[#allocation2] sm:$0x3]
  %s2057 = scalar_lea.vmem %s7, 64
  %v2058 = vld [vmem:[%s2057] sm:$0xff]
  %v2059 = vld [vmem:[%s2057 + $0x8] sm:$0xff]
  %v2060 = vld [vmem:[%s2057 + $0x10] sm:$0xff]
  %v2061 = vld [vmem:[%s2057 + $0x18] sm:$0xff]
  %v2062 = vld [vmem:[%s2057 + $0x20] sm:$0xff]
  %v2063 = vld [vmem:[%s2057 + $0x28] sm:$0xff]
  %v2064 = vld [vmem:[%s2057 + $0x30] sm:$0xff]
  %v2065 = vld [vmem:[%s2057 + $0x38] sm:$0xff]
  %v2067 = vsel %vm286, %v2056, 0
  %2069 = vmatprep.subr.mxu0 0.0
  %2070 = vmatpush1.msra.mxu0 %v2058
  %2071 = vmatprep.subr.mxu0 0.0
  %2072 = vmatpush1.msra.mxu0 %v2059
  %2073 = vmatprep.subr.mxu0 0.0
  %2074 = vmatpush1.msra.mxu0 %v2060
  %2075 = vmatprep.subr.mxu0 0.0
  %2076 = vmatpush1.msra.mxu0 %v2061
  %2077 = vmatprep.subr.mxu0 0.0
  %2078 = vmatpush1.msra.mxu0 %v2062
  %2079 = vmatprep.subr.mxu0 0.0
  %2080 = vmatpush1.msra.mxu0 %v2063
  %2081 = vmatprep.subr.mxu0 0.0
  %2082 = vmatpush1.msra.mxu0 %v2064
  %2083 = vmatprep.subr.mxu0 0.0
  %2084 = vmatpush1.msra.mxu0 %v2065
  %2085 = vmatprep.subr.mxu0 0.0
  %2086 = vmatpush1.msra.mxu0 0.0
  %2087 = vmatprep.subr.mxu0 0.0
  %2088 = vmatpush1.msra.mxu0 0.0
  %2089 = vmatprep.subr.mxu0 0.0
  %2090 = vmatpush1.msra.mxu0 0.0
  %2091 = vmatprep.subr.mxu0 0.0
  %2092 = vmatpush1.msra.mxu0 0.0
  %2093 = vmatprep.subr.mxu0 0.0
  %2094 = vmatpush1.msra.mxu0 0.0
  %2095 = vmatprep.subr.mxu0 0.0
  %2096 = vmatpush1.msra.mxu0 0.0
  %2097 = vmatprep.subr.mxu0 0.0
  %2098 = vmatpush1.msra.mxu0 0.0
  %2099 = vmatprep.subr.mxu0 0.0
  %2100 = vmatpush1.msra.mxu0 0.0
  %2101 = vmatprep.subr.mxu0 0.0
  %2102 = vmatpush1.msra.mxu0 0.0
  %2103 = vmatprep.subr.mxu0 0.0
  %2104 = vmatpush1.msra.mxu0 0.0
  %2105 = vmatprep.subr.mxu0 0.0
  %2106 = vmatpush1.msra.mxu0 0.0
  %2107 = vmatprep.subr.mxu0 0.0
  %2108 = vmatpush1.msra.mxu0 0.0
  %2109 = vmatprep.subr.mxu0 0.0
  %2110 = vmatpush1.msra.mxu0 0.0
  %2111 = vmatprep.subr.mxu0 0.0
  %2112 = vmatpush1.msra.mxu0 0.0
  %2113 = vmatprep.subr.mxu0 0.0
  %2114 = vmatpush1.msra.mxu0 0.0
  %2115 = vmatprep.subr.mxu0 0.0
  %2116 = vmatpush1.msra.mxu0 0.0
  %2117 = vmatprep.subr.mxu0 0.0
  %2118 = vmatpush1.msra.mxu0 0.0
  %2119 = vmatprep.subr.mxu0 0.0
  %2120 = vmatpush1.msra.mxu0 0.0
  %2121 = vmatprep.subr.mxu0 0.0
  %2122 = vmatpush1.msra.mxu0 0.0
  %2123 = vmatprep.subr.mxu0 0.0
  %2124 = vmatpush1.msra.mxu0 0.0
  %2125 = vmatprep.subr.mxu0 0.0
  %2126 = vmatpush1.msra.mxu0 0.0
  %2127 = vmatprep.subr.mxu0 0.0
  %2128 = vmatpush1.msra.mxu0 0.0
  %2129 = vmatprep.subr.mxu0 0.0
  %2130 = vmatpush1.msra.mxu0 0.0
  %2131 = vmatprep.subr.mxu0 0.0
  %2132 = vmatpush1.msra.mxu0 0.0
  %2133 = vmatprep.mubr.f32.mxu0 0.0
  %2134 = vmatmul.mubr.f32.gmra.mrb[0].mxu0 %v2067
  %v2135 = vpop.f32.mrb[0].mxu0
  %v2136 = vadd.f32 0.0, %v2135
  %v2137 = vpop.f32.mrb[0].mxu0
  %2138 = vdwg.mxu0
  %v2139 = vadd.f32 %v1567, %v2136
  %s2140 = scalar_lea.vmem %s4, 1
  %v2141 = vld [vmem:[%s2140] sm:$0x1]
  %v2142 = vmul.f32 %v2139, %v2139
  %v2143 = vsel %vm254, %v2142, 0.0
  %2144 = vadd.xlane.f32.xlu0 %v2143
  %v2145 = vpop.xlane.xlu0 %2144
  %v2146 = vmul.f32 %v2145, %v258
  %v2147 = vadd.f32 %v2146, 1e-06
  %v2148 = vrsqrt.pop %v2147
  %v2149 = vmul.f32 %v2139, %v2148
  %v2151 = vlaneseq
  %v2152 = vshrl.u32 %v2151, 7
  %v2153 = vsub.s32 0, %v2152
  %v2154 = vrot.slane %v2141, %v2153
  %v2156 = vmul.f32 %v2149, %v2154
  %s2157 = scalar_lea.vmem %s8, 64
  %v2158 = vld [vmem:[%s2157] sm:$0xff]
  %v2159 = vld [vmem:[%s2157 + $0x8] sm:$0xff]
  %v2160 = vld [vmem:[%s2157 + $0x10] sm:$0xff]
  %v2161 = vld [vmem:[%s2157 + $0x18] sm:$0xff]
  %v2162 = vld [vmem:[%s2157 + $0x20] sm:$0xff]
  %v2163 = vld [vmem:[%s2157 + $0x28] sm:$0xff]
  %v2164 = vld [vmem:[%s2157 + $0x30] sm:$0xff]
  %v2165 = vld [vmem:[%s2157 + $0x38] sm:$0xff]
  %v2167 = vsel %vm286, %v2156, 0
  %2169 = vmatprep.subr.mxu0 0.0
  %2170 = vmatpush1.msra.mxu0 %v2158
  %2171 = vmatprep.subr.mxu0 0.0
  %2172 = vmatpush1.msra.mxu0 %v2159
  %2173 = vmatprep.subr.mxu0 0.0
  %2174 = vmatpush1.msra.mxu0 %v2160
  %2175 = vmatprep.subr.mxu0 0.0
  %2176 = vmatpush1.msra.mxu0 %v2161
  %2177 = vmatprep.subr.mxu0 0.0
  %2178 = vmatpush1.msra.mxu0 %v2162
  %2179 = vmatprep.subr.mxu0 0.0
  %2180 = vmatpush1.msra.mxu0 %v2163
  %2181 = vmatprep.subr.mxu0 0.0
  %2182 = vmatpush1.msra.mxu0 %v2164
  %2183 = vmatprep.subr.mxu0 0.0
  %2184 = vmatpush1.msra.mxu0 %v2165
  %2185 = vmatprep.subr.mxu0 0.0
  %2186 = vmatpush1.msra.mxu0 0.0
  %2187 = vmatprep.subr.mxu0 0.0
  %2188 = vmatpush1.msra.mxu0 0.0
  %2189 = vmatprep.subr.mxu0 0.0
  %2190 = vmatpush1.msra.mxu0 0.0
  %2191 = vmatprep.subr.mxu0 0.0
  %2192 = vmatpush1.msra.mxu0 0.0
  %2193 = vmatprep.subr.mxu0 0.0
  %2194 = vmatpush1.msra.mxu0 0.0
  %2195 = vmatprep.subr.mxu0 0.0
  %2196 = vmatpush1.msra.mxu0 0.0
  %2197 = vmatprep.subr.mxu0 0.0
  %2198 = vmatpush1.msra.mxu0 0.0
  %2199 = vmatprep.subr.mxu0 0.0
  %2200 = vmatpush1.msra.mxu0 0.0
  %2201 = vmatprep.subr.mxu0 0.0
  %2202 = vmatpush1.msra.mxu0 0.0
  %2203 = vmatprep.subr.mxu0 0.0
  %2204 = vmatpush1.msra.mxu0 0.0
  %2205 = vmatprep.subr.mxu0 0.0
  %2206 = vmatpush1.msra.mxu0 0.0
  %2207 = vmatprep.subr.mxu0 0.0
  %2208 = vmatpush1.msra.mxu0 0.0
  %2209 = vmatprep.subr.mxu0 0.0
  %2210 = vmatpush1.msra.mxu0 0.0
  %2211 = vmatprep.subr.mxu0 0.0
  %2212 = vmatpush1.msra.mxu0 0.0
  %2213 = vmatprep.subr.mxu0 0.0
  %2214 = vmatpush1.msra.mxu0 0.0
  %2215 = vmatprep.subr.mxu0 0.0
  %2216 = vmatpush1.msra.mxu0 0.0
  %2217 = vmatprep.subr.mxu0 0.0
  %2218 = vmatpush1.msra.mxu0 0.0
  %2219 = vmatprep.subr.mxu0 0.0
  %2220 = vmatpush1.msra.mxu0 0.0
  %2221 = vmatprep.subr.mxu0 0.0
  %2222 = vmatpush1.msra.mxu0 0.0
  %2223 = vmatprep.subr.mxu0 0.0
  %2224 = vmatpush1.msra.mxu0 0.0
  %2225 = vmatprep.subr.mxu0 0.0
  %2226 = vmatpush1.msra.mxu0 0.0
  %2227 = vmatprep.subr.mxu0 0.0
  %2228 = vmatpush1.msra.mxu0 0.0
  %2229 = vmatprep.subr.mxu0 0.0
  %2230 = vmatpush1.msra.mxu0 0.0
  %2231 = vmatprep.subr.mxu0 0.0
  %2232 = vmatpush1.msra.mxu0 0.0
  %2233 = vmatprep.mubr.f32.mxu0 0.0
  %2234 = vmatmul.mubr.f32.gmra.mrb[0].mxu0 %v2167
  %v2235 = vpop.f32.mrb[0].mxu0
  %v2236 = vadd.f32 0.0, %v2235
  %v2237 = vpop.f32.mrb[0].mxu0
  %2238 = vdwg.mxu0
  %v2239 = vld [vmem:[%s20] sm:$0xff]
  %v2240 = vld [vmem:[%s20 + $0x8] sm:$0xff]
  %v2241 = vld [vmem:[%s21] sm:$0xff]
  %v2242 = vld [vmem:[%s21 + $0x8] sm:$0xff]
  %v2243 = vlaneseq
  %v2244 = vshrl.u32 %v2243, 7
  %v2245 = vsub.s32 0, %v2244
  %v2246 = vrot.slane %v2236, %v2245
  %v2247 = vmul.f32 %v2239, %v2246
  %v2249 = vsel %vm286, %v2247, 0
  %2251 = vmatprep.subr.mxu0 0.0
  %2252 = vmatpush1.msra.mxu0 %v121
  %2253 = vmatprep.subr.mxu0 0.0
  %2254 = vmatpush1.msra.mxu0 %v122
  %2255 = vmatprep.subr.mxu0 0.0
  %2256 = vmatpush1.msra.mxu0 %v123
  %2257 = vmatprep.subr.mxu0 0.0
  %2258 = vmatpush1.msra.mxu0 %v124
  %2259 = vmatprep.subr.mxu0 0.0
  %2260 = vmatpush1.msra.mxu0 %v125
  %2261 = vmatprep.subr.mxu0 0.0
  %2262 = vmatpush1.msra.mxu0 %v126
  %2263 = vmatprep.subr.mxu0 0.0
  %2264 = vmatpush1.msra.mxu0 %v127
  %2265 = vmatprep.subr.mxu0 0.0
  %2266 = vmatpush1.msra.mxu0 %v128
  %2267 = vmatprep.subr.mxu0 0.0
  %2268 = vmatpush1.msra.mxu0 0.0
  %2269 = vmatprep.subr.mxu0 0.0
  %2270 = vmatpush1.msra.mxu0 0.0
  %2271 = vmatprep.subr.mxu0 0.0
  %2272 = vmatpush1.msra.mxu0 0.0
  %2273 = vmatprep.subr.mxu0 0.0
  %2274 = vmatpush1.msra.mxu0 0.0
  %2275 = vmatprep.subr.mxu0 0.0
  %2276 = vmatpush1.msra.mxu0 0.0
  %2277 = vmatprep.subr.mxu0 0.0
  %2278 = vmatpush1.msra.mxu0 0.0
  %2279 = vmatprep.subr.mxu0 0.0
  %2280 = vmatpush1.msra.mxu0 0.0
  %2281 = vmatprep.subr.mxu0 0.0
  %2282 = vmatpush1.msra.mxu0 0.0
  %2283 = vmatprep.subr.mxu0 0.0
  %2284 = vmatpush1.msra.mxu0 0.0
  %2285 = vmatprep.subr.mxu0 0.0
  %2286 = vmatpush1.msra.mxu0 0.0
  %2287 = vmatprep.subr.mxu0 0.0
  %2288 = vmatpush1.msra.mxu0 0.0
  %2289 = vmatprep.subr.mxu0 0.0
  %2290 = vmatpush1.msra.mxu0 0.0
  %2291 = vmatprep.subr.mxu0 0.0
  %2292 = vmatpush1.msra.mxu0 0.0
  %2293 = vmatprep.subr.mxu0 0.0
  %2294 = vmatpush1.msra.mxu0 0.0
  %2295 = vmatprep.subr.mxu0 0.0
  %2296 = vmatpush1.msra.mxu0 0.0
  %2297 = vmatprep.subr.mxu0 0.0
  %2298 = vmatpush1.msra.mxu0 0.0
  %2299 = vmatprep.subr.mxu0 0.0
  %2300 = vmatpush1.msra.mxu0 0.0
  %2301 = vmatprep.subr.mxu0 0.0
  %2302 = vmatpush1.msra.mxu0 0.0
  %2303 = vmatprep.subr.mxu0 0.0
  %2304 = vmatpush1.msra.mxu0 0.0
  %2305 = vmatprep.subr.mxu0 0.0
  %2306 = vmatpush1.msra.mxu0 0.0
  %2307 = vmatprep.subr.mxu0 0.0
  %2308 = vmatpush1.msra.mxu0 0.0
  %2309 = vmatprep.subr.mxu0 0.0
  %2310 = vmatpush1.msra.mxu0 0.0
  %2311 = vmatprep.subr.mxu0 0.0
  %2312 = vmatpush1.msra.mxu0 0.0
  %2313 = vmatprep.subr.mxu0 0.0
  %2314 = vmatpush1.msra.mxu0 0.0
  %2315 = vmatprep.mubr.f32.mxu0 0.0
  %2316 = vmatmul.mubr.f32.gmra.mrb[0].mxu0 %v2249
  %v2317 = vpop.f32.mrb[0].mxu0
  %v2318 = vadd.f32 %v941, %v2317
  %v2319 = vpop.f32.mrb[0].mxu0
  %2320 = vdwg.mxu0
  %v2321 = vsel %vm464, %v2318, -inf
  %v2322 = vrot.slane %v2321, 4
  %v2323 = vmax.f32 %v2321, %v2322
  %v2324 = vrot.slane %v2323, 2
  %v2325 = vmax.f32 %v2323, %v2324
  %v2326 = vrot.slane %v2325, 1
  %v2327 = vmax.f32 %v2325, %v2326
  %v2328 = vsub.f32 %v2318, %v2327
  %v2329 = vmul.f32 %v2328, 1.442695
  %v2330 = vpow.pop %v2329
  %v2331 = vsel %vm464, %v2330, 0.0
  %v2332 = vrot.slane %v2331, 4
  %v2333 = vadd.f32 %v2331, %v2332
  %v2334 = vrot.slane %v2333, 2
  %v2335 = vadd.f32 %v2333, %v2334
  %v2336 = vrot.slane %v2335, 1
  %v2337 = vadd.f32 %v2335, %v2336
  %v2338 = vrcp.pop %v2337
  %v2339 = vmul.f32 %v2330, %v2338
  %v2341 = vsel %vm464, %v2339, 0
  %2343 = vmatprep.subr.mxu0 0.0
  %2344 = vmatpush1.msra.mxu0 %v489
  %2345 = vmatprep.subr.mxu0 0.0
  %2346 = vmatpush1.msra.mxu0 0.0
  %2347 = vmatprep.subr.mxu0 0.0
  %2348 = vmatpush1.msra.mxu0 0.0
  %2349 = vmatprep.subr.mxu0 0.0
  %2350 = vmatpush1.msra.mxu0 0.0
  %2351 = vmatprep.subr.mxu0 0.0
  %2352 = vmatpush1.msra.mxu0 0.0
  %2353 = vmatprep.subr.mxu0 0.0
  %2354 = vmatpush1.msra.mxu0 0.0
  %2355 = vmatprep.subr.mxu0 0.0
  %2356 = vmatpush1.msra.mxu0 0.0
  %2357 = vmatprep.subr.mxu0 0.0
  %2358 = vmatpush1.msra.mxu0 0.0
  %2359 = vmatprep.subr.mxu0 0.0
  %2360 = vmatpush1.msra.mxu0 0.0
  %2361 = vmatprep.subr.mxu0 0.0
  %2362 = vmatpush1.msra.mxu0 0.0
  %2363 = vmatprep.subr.mxu0 0.0
  %2364 = vmatpush1.msra.mxu0 0.0
  %2365 = vmatprep.subr.mxu0 0.0
  %2366 = vmatpush1.msra.mxu0 0.0
  %2367 = vmatprep.subr.mxu0 0.0
  %2368 = vmatpush1.msra.mxu0 0.0
  %2369 = vmatprep.subr.mxu0 0.0
  %2370 = vmatpush1.msra.mxu0 0.0
  %2371 = vmatprep.subr.mxu0 0.0
  %2372 = vmatpush1.msra.mxu0 0.0
  %2373 = vmatprep.subr.mxu0 0.0
  %2374 = vmatpush1.msra.mxu0 0.0
  %2375 = vmatprep.subr.mxu0 0.0
  %2376 = vmatpush1.msra.mxu0 0.0
  %2377 = vmatprep.subr.mxu0 0.0
  %2378 = vmatpush1.msra.mxu0 0.0
  %2379 = vmatprep.subr.mxu0 0.0
  %2380 = vmatpush1.msra.mxu0 0.0
  %2381 = vmatprep.subr.mxu0 0.0
  %2382 = vmatpush1.msra.mxu0 0.0
  %2383 = vmatprep.subr.mxu0 0.0
  %2384 = vmatpush1.msra.mxu0 0.0
  %2385 = vmatprep.subr.mxu0 0.0
  %2386 = vmatpush1.msra.mxu0 0.0
  %2387 = vmatprep.subr.mxu0 0.0
  %2388 = vmatpush1.msra.mxu0 0.0
  %2389 = vmatprep.subr.mxu0 0.0
  %2390 = vmatpush1.msra.mxu0 0.0
  %2391 = vmatprep.subr.mxu0 0.0
  %2392 = vmatpush1.msra.mxu0 0.0
  %2393 = vmatprep.subr.mxu0 0.0
  %2394 = vmatpush1.msra.mxu0 0.0
  %2395 = vmatprep.subr.mxu0 0.0
  %2396 = vmatpush1.msra.mxu0 0.0
  %2397 = vmatprep.subr.mxu0 0.0
  %2398 = vmatpush1.msra.mxu0 0.0
  %2399 = vmatprep.subr.mxu0 0.0
  %2400 = vmatpush1.msra.mxu0 0.0
  %2401 = vmatprep.subr.mxu0 0.0
  %2402 = vmatpush1.msra.mxu0 0.0
  %2403 = vmatprep.subr.mxu0 0.0
  %2404 = vmatpush1.msra.mxu0 0.0
  %2405 = vmatprep.subr.mxu0 0.0
  %2406 = vmatpush1.msra.mxu0 0.0
  %2407 = vmatprep.mubr.f32.mxu0 0.0
  %2408 = vmatmul.mubr.f32.gmra.mrb[0].mxu0 %v2341
  %v2409 = vpop.f32.mrb[0].mxu0
  %v2410 = vadd.f32 0.0, %v2409
  %v2411 = vpop.f32.mrb[0].mxu0
  %2412 = vdwg.mxu0
  %v2413 = vmul.f32 %v2410, %v2241
  %v2414 = vsel %vm286, %v2413, 0.0
  %v2415 = vrot.slane %v2414, 4
  %v2416 = vadd.f32 %v2414, %v2415
  %v2417 = vrot.slane %v2416, 2
  %v2418 = vadd.f32 %v2416, %v2417
  %v2419 = vrot.slane %v2418, 1
  %v2420 = vadd.f32 %v2418, %v2419
  %2421 = vst.msk [vmem:[#allocation2] sm:$0x1] %vm374, %v2420
  %v2422 = vlaneseq
  %v2423 = vshrl.u32 %v2422, 7
  %v2424 = vsub.s32 1, %v2423
  %v2425 = vrot.slane %v2236, %v2424
  %v2426 = vmul.f32 %v2240, %v2425
  %v2428 = vsel %vm286, %v2426, 0
  %2430 = vmatprep.subr.mxu0 0.0
  %2431 = vmatpush1.msra.mxu0 %v121
  %2432 = vmatprep.subr.mxu0 0.0
  %2433 = vmatpush1.msra.mxu0 %v122
  %2434 = vmatprep.subr.mxu0 0.0
  %2435 = vmatpush1.msra.mxu0 %v123
  %2436 = vmatprep.subr.mxu0 0.0
  %2437 = vmatpush1.msra.mxu0 %v124
  %2438 = vmatprep.subr.mxu0 0.0
  %2439 = vmatpush1.msra.mxu0 %v125
  %2440 = vmatprep.subr.mxu0 0.0
  %2441 = vmatpush1.msra.mxu0 %v126
  %2442 = vmatprep.subr.mxu0 0.0
  %2443 = vmatpush1.msra.mxu0 %v127
  %2444 = vmatprep.subr.mxu0 0.0
  %2445 = vmatpush1.msra.mxu0 %v128
  %2446 = vmatprep.subr.mxu0 0.0
  %2447 = vmatpush1.msra.mxu0 0.0
  %2448 = vmatprep.subr.mxu0 0.0
  %2449 = vmatpush1.msra.mxu0 0.0
  %2450 = vmatprep.subr.mxu0 0.0
  %2451 = vmatpush1.msra.mxu0 0.0
  %2452 = vmatprep.subr.mxu0 0.0
  %2453 = vmatpush1.msra.mxu0 0.0
  %2454 = vmatprep.subr.mxu0 0.0
  %2455 = vmatpush1.msra.mxu0 0.0
  %2456 = vmatprep.subr.mxu0 0.0
  %2457 = vmatpush1.msra.mxu0 0.0
  %2458 = vmatprep.subr.mxu0 0.0
  %2459 = vmatpush1.msra.mxu0 0.0
  %2460 = vmatprep.subr.mxu0 0.0
  %2461 = vmatpush1.msra.mxu0 0.0
  %2462 = vmatprep.subr.mxu0 0.0
  %2463 = vmatpush1.msra.mxu0 0.0
  %2464 = vmatprep.subr.mxu0 0.0
  %2465 = vmatpush1.msra.mxu0 0.0
  %2466 = vmatprep.subr.mxu0 0.0
  %2467 = vmatpush1.msra.mxu0 0.0
  %2468 = vmatprep.subr.mxu0 0.0
  %2469 = vmatpush1.msra.mxu0 0.0
  %2470 = vmatprep.subr.mxu0 0.0
  %2471 = vmatpush1.msra.mxu0 0.0
  %2472 = vmatprep.subr.mxu0 0.0
  %2473 = vmatpush1.msra.mxu0 0.0
  %2474 = vmatprep.subr.mxu0 0.0
  %2475 = vmatpush1.msra.mxu0 0.0
  %2476 = vmatprep.subr.mxu0 0.0
  %2477 = vmatpush1.msra.mxu0 0.0
  %2478 = vmatprep.subr.mxu0 0.0
  %2479 = vmatpush1.msra.mxu0 0.0
  %2480 = vmatprep.subr.mxu0 0.0
  %2481 = vmatpush1.msra.mxu0 0.0
  %2482 = vmatprep.subr.mxu0 0.0
  %2483 = vmatpush1.msra.mxu0 0.0
  %2484 = vmatprep.subr.mxu0 0.0
  %2485 = vmatpush1.msra.mxu0 0.0
  %2486 = vmatprep.subr.mxu0 0.0
  %2487 = vmatpush1.msra.mxu0 0.0
  %2488 = vmatprep.subr.mxu0 0.0
  %2489 = vmatpush1.msra.mxu0 0.0
  %2490 = vmatprep.subr.mxu0 0.0
  %2491 = vmatpush1.msra.mxu0 0.0
  %2492 = vmatprep.subr.mxu0 0.0
  %2493 = vmatpush1.msra.mxu0 0.0
  %2494 = vmatprep.mubr.f32.mxu0 0.0
  %2495 = vmatmul.mubr.f32.gmra.mrb[0].mxu0 %v2428
  %v2496 = vpop.f32.mrb[0].mxu0
  %v2497 = vadd.f32 %v1124, %v2496
  %v2498 = vpop.f32.mrb[0].mxu0
  %2499 = vdwg.mxu0
  %v2500 = vsel %vm464, %v2497, -inf
  %v2501 = vrot.slane %v2500, 4
  %v2502 = vmax.f32 %v2500, %v2501
  %v2503 = vrot.slane %v2502, 2
  %v2504 = vmax.f32 %v2502, %v2503
  %v2505 = vrot.slane %v2504, 1
  %v2506 = vmax.f32 %v2504, %v2505
  %v2507 = vsub.f32 %v2497, %v2506
  %v2508 = vmul.f32 %v2507, 1.442695
  %v2509 = vpow.pop %v2508
  %v2510 = vsel %vm464, %v2509, 0.0
  %v2511 = vrot.slane %v2510, 4
  %v2512 = vadd.f32 %v2510, %v2511
  %v2513 = vrot.slane %v2512, 2
  %v2514 = vadd.f32 %v2512, %v2513
  %v2515 = vrot.slane %v2514, 1
  %v2516 = vadd.f32 %v2514, %v2515
  %v2517 = vrcp.pop %v2516
  %v2518 = vmul.f32 %v2509, %v2517
  %v2520 = vsel %vm464, %v2518, 0
  %2522 = vmatprep.subr.mxu0 0.0
  %2523 = vmatpush1.msra.mxu0 %v489
  %2524 = vmatprep.subr.mxu0 0.0
  %2525 = vmatpush1.msra.mxu0 0.0
  %2526 = vmatprep.subr.mxu0 0.0
  %2527 = vmatpush1.msra.mxu0 0.0
  %2528 = vmatprep.subr.mxu0 0.0
  %2529 = vmatpush1.msra.mxu0 0.0
  %2530 = vmatprep.subr.mxu0 0.0
  %2531 = vmatpush1.msra.mxu0 0.0
  %2532 = vmatprep.subr.mxu0 0.0
  %2533 = vmatpush1.msra.mxu0 0.0
  %2534 = vmatprep.subr.mxu0 0.0
  %2535 = vmatpush1.msra.mxu0 0.0
  %2536 = vmatprep.subr.mxu0 0.0
  %2537 = vmatpush1.msra.mxu0 0.0
  %2538 = vmatprep.subr.mxu0 0.0
  %2539 = vmatpush1.msra.mxu0 0.0
  %2540 = vmatprep.subr.mxu0 0.0
  %2541 = vmatpush1.msra.mxu0 0.0
  %2542 = vmatprep.subr.mxu0 0.0
  %2543 = vmatpush1.msra.mxu0 0.0
  %2544 = vmatprep.subr.mxu0 0.0
  %2545 = vmatpush1.msra.mxu0 0.0
  %2546 = vmatprep.subr.mxu0 0.0
  %2547 = vmatpush1.msra.mxu0 0.0
  %2548 = vmatprep.subr.mxu0 0.0
  %2549 = vmatpush1.msra.mxu0 0.0
  %2550 = vmatprep.subr.mxu0 0.0
  %2551 = vmatpush1.msra.mxu0 0.0
  %2552 = vmatprep.subr.mxu0 0.0
  %2553 = vmatpush1.msra.mxu0 0.0
  %2554 = vmatprep.subr.mxu0 0.0
  %2555 = vmatpush1.msra.mxu0 0.0
  %2556 = vmatprep.subr.mxu0 0.0
  %2557 = vmatpush1.msra.mxu0 0.0
  %2558 = vmatprep.subr.mxu0 0.0
  %2559 = vmatpush1.msra.mxu0 0.0
  %2560 = vmatprep.subr.mxu0 0.0
  %2561 = vmatpush1.msra.mxu0 0.0
  %2562 = vmatprep.subr.mxu0 0.0
  %2563 = vmatpush1.msra.mxu0 0.0
  %2564 = vmatprep.subr.mxu0 0.0
  %2565 = vmatpush1.msra.mxu0 0.0
  %2566 = vmatprep.subr.mxu0 0.0
  %2567 = vmatpush1.msra.mxu0 0.0
  %2568 = vmatprep.subr.mxu0 0.0
  %2569 = vmatpush1.msra.mxu0 0.0
  %2570 = vmatprep.subr.mxu0 0.0
  %2571 = vmatpush1.msra.mxu0 0.0
  %2572 = vmatprep.subr.mxu0 0.0
  %2573 = vmatpush1.msra.mxu0 0.0
  %2574 = vmatprep.subr.mxu0 0.0
  %2575 = vmatpush1.msra.mxu0 0.0
  %2576 = vmatprep.subr.mxu0 0.0
  %2577 = vmatpush1.msra.mxu0 0.0
  %2578 = vmatprep.subr.mxu0 0.0
  %2579 = vmatpush1.msra.mxu0 0.0
  %2580 = vmatprep.subr.mxu0 0.0
  %2581 = vmatpush1.msra.mxu0 0.0
  %2582 = vmatprep.subr.mxu0 0.0
  %2583 = vmatpush1.msra.mxu0 0.0
  %2584 = vmatprep.subr.mxu0 0.0
  %2585 = vmatpush1.msra.mxu0 0.0
  %2586 = vmatprep.mubr.f32.mxu0 0.0
  %2587 = vmatmul.mubr.f32.gmra.mrb[0].mxu0 %v2520
  %v2588 = vpop.f32.mrb[0].mxu0
  %v2589 = vadd.f32 0.0, %v2588
  %v2590 = vpop.f32.mrb[0].mxu0
  %2591 = vdwg.mxu0
  %v2592 = vmul.f32 %v2589, %v2242
  %v2593 = vsel %vm286, %v2592, 0.0
  %v2594 = vrot.slane %v2593, 4
  %v2595 = vadd.f32 %v2593, %v2594
  %v2596 = vrot.slane %v2595, 2
  %v2597 = vadd.f32 %v2595, %v2596
  %v2598 = vrot.slane %v2597, 1
  %v2599 = vadd.f32 %v2597, %v2598
  %2600 = vst.msk [vmem:[#allocation2 + $0x1] sm:$0x1] %vm374, %v2599
  %v2601 = vld [vmem:[#allocation2] sm:$0x3]
  %s2602 = scalar_lea.vmem %s9, 64
  %v2603 = vld [vmem:[%s2602] sm:$0xff]
  %v2604 = vld [vmem:[%s2602 + $0x8] sm:$0xff]
  %v2605 = vld [vmem:[%s2602 + $0x10] sm:$0xff]
  %v2606 = vld [vmem:[%s2602 + $0x18] sm:$0xff]
  %v2607 = vld [vmem:[%s2602 + $0x20] sm:$0xff]
  %v2608 = vld [vmem:[%s2602 + $0x28] sm:$0xff]
  %v2609 = vld [vmem:[%s2602 + $0x30] sm:$0xff]
  %v2610 = vld [vmem:[%s2602 + $0x38] sm:$0xff]
  %v2612 = vsel %vm286, %v2601, 0
  %2614 = vmatprep.subr.mxu0 0.0
  %2615 = vmatpush1.msra.mxu0 %v2603
  %2616 = vmatprep.subr.mxu0 0.0
  %2617 = vmatpush1.msra.mxu0 %v2604
  %2618 = vmatprep.subr.mxu0 0.0
  %2619 = vmatpush1.msra.mxu0 %v2605
  %2620 = vmatprep.subr.mxu0 0.0
  %2621 = vmatpush1.msra.mxu0 %v2606
  %2622 = vmatprep.subr.mxu0 0.0
  %2623 = vmatpush1.msra.mxu0 %v2607
  %2624 = vmatprep.subr.mxu0 0.0
  %2625 = vmatpush1.msra.mxu0 %v2608
  %2626 = vmatprep.subr.mxu0 0.0
  %2627 = vmatpush1.msra.mxu0 %v2609
  %2628 = vmatprep.subr.mxu0 0.0
  %2629 = vmatpush1.msra.mxu0 %v2610
  %2630 = vmatprep.subr.mxu0 0.0
  %2631 = vmatpush1.msra.mxu0 0.0
  %2632 = vmatprep.subr.mxu0 0.0
  %2633 = vmatpush1.msra.mxu0 0.0
  %2634 = vmatprep.subr.mxu0 0.0
  %2635 = vmatpush1.msra.mxu0 0.0
  %2636 = vmatprep.subr.mxu0 0.0
  %2637 = vmatpush1.msra.mxu0 0.0
  %2638 = vmatprep.subr.mxu0 0.0
  %2639 = vmatpush1.msra.mxu0 0.0
  %2640 = vmatprep.subr.mxu0 0.0
  %2641 = vmatpush1.msra.mxu0 0.0
  %2642 = vmatprep.subr.mxu0 0.0
  %2643 = vmatpush1.msra.mxu0 0.0
  %2644 = vmatprep.subr.mxu0 0.0
  %2645 = vmatpush1.msra.mxu0 0.0
  %2646 = vmatprep.subr.mxu0 0.0
  %2647 = vmatpush1.msra.mxu0 0.0
  %2648 = vmatprep.subr.mxu0 0.0
  %2649 = vmatpush1.msra.mxu0 0.0
  %2650 = vmatprep.subr.mxu0 0.0
  %2651 = vmatpush1.msra.mxu0 0.0
  %2652 = vmatprep.subr.mxu0 0.0
  %2653 = vmatpush1.msra.mxu0 0.0
  %2654 = vmatprep.subr.mxu0 0.0
  %2655 = vmatpush1.msra.mxu0 0.0
  %2656 = vmatprep.subr.mxu0 0.0
  %2657 = vmatpush1.msra.mxu0 0.0
  %2658 = vmatprep.subr.mxu0 0.0
  %2659 = vmatpush1.msra.mxu0 0.0
  %2660 = vmatprep.subr.mxu0 0.0
  %2661 = vmatpush1.msra.mxu0 0.0
  %2662 = vmatprep.subr.mxu0 0.0
  %2663 = vmatpush1.msra.mxu0 0.0
  %2664 = vmatprep.subr.mxu0 0.0
  %2665 = vmatpush1.msra.mxu0 0.0
  %2666 = vmatprep.subr.mxu0 0.0
  %2667 = vmatpush1.msra.mxu0 0.0
  %2668 = vmatprep.subr.mxu0 0.0
  %2669 = vmatpush1.msra.mxu0 0.0
  %2670 = vmatprep.subr.mxu0 0.0
  %2671 = vmatpush1.msra.mxu0 0.0
  %2672 = vmatprep.subr.mxu0 0.0
  %2673 = vmatpush1.msra.mxu0 0.0
  %2674 = vmatprep.subr.mxu0 0.0
  %2675 = vmatpush1.msra.mxu0 0.0
  %2676 = vmatprep.subr.mxu0 0.0
  %2677 = vmatpush1.msra.mxu0 0.0
  %2678 = vmatprep.mubr.f32.mxu0 0.0
  %2679 = vmatmul.mubr.f32.gmra.mrb[0].mxu0 %v2612
  %v2680 = vpop.f32.mrb[0].mxu0
  %v2681 = vadd.f32 0.0, %v2680
  %v2682 = vpop.f32.mrb[0].mxu0
  %2683 = vdwg.mxu0
  %v2684 = vadd.f32 %v2139, %v2681
  %s2685 = scalar_lea.vmem %s5, 1
  %v2686 = vld [vmem:[%s2685] sm:$0x1]
  %v2687 = vmul.f32 %v2684, %v2684
  %v2688 = vsel %vm254, %v2687, 0.0
  %2689 = vadd.xlane.f32.xlu0 %v2688
  %v2690 = vpop.xlane.xlu0 %2689
  %v2691 = vmul.f32 %v2690, %v258
  %v2692 = vadd.f32 %v2691, 1e-06
  %v2693 = vrsqrt.pop %v2692
  %v2694 = vmul.f32 %v2684, %v2693
  %v2696 = vlaneseq
  %v2697 = vshrl.u32 %v2696, 7
  %v2698 = vsub.s32 0, %v2697
  %v2699 = vrot.slane %v2686, %v2698
  %v2701 = vmul.f32 %v2694, %v2699
  %s2702 = scalar_lea.vmem %s10, 64
  %v2703 = vld [vmem:[%s2702] sm:$0xff]
  %v2704 = vld [vmem:[%s2702 + $0x8] sm:$0xff]
  %v2705 = vld [vmem:[%s2702 + $0x10] sm:$0xff]
  %v2706 = vld [vmem:[%s2702 + $0x18] sm:$0xff]
  %v2707 = vld [vmem:[%s2702 + $0x20] sm:$0xff]
  %v2708 = vld [vmem:[%s2702 + $0x28] sm:$0xff]
  %v2709 = vld [vmem:[%s2702 + $0x30] sm:$0xff]
  %v2710 = vld [vmem:[%s2702 + $0x38] sm:$0xff]
  %v2712 = vsel %vm286, %v2701, 0
  %2714 = vmatprep.subr.mxu0 0.0
  %2715 = vmatpush1.msra.mxu0 %v2703
  %2716 = vmatprep.subr.mxu0 0.0
  %2717 = vmatpush1.msra.mxu0 %v2704
  %2718 = vmatprep.subr.mxu0 0.0
  %2719 = vmatpush1.msra.mxu0 %v2705
  %2720 = vmatprep.subr.mxu0 0.0
  %2721 = vmatpush1.msra.mxu0 %v2706
  %2722 = vmatprep.subr.mxu0 0.0
  %2723 = vmatpush1.msra.mxu0 %v2707
  %2724 = vmatprep.subr.mxu0 0.0
  %2725 = vmatpush1.msra.mxu0 %v2708
  %2726 = vmatprep.subr.mxu0 0.0
  %2727 = vmatpush1.msra.mxu0 %v2709
  %2728 = vmatprep.subr.mxu0 0.0
  %2729 = vmatpush1.msra.mxu0 %v2710
  %2730 = vmatprep.subr.mxu0 0.0
  %2731 = vmatpush1.msra.mxu0 0.0
  %2732 = vmatprep.subr.mxu0 0.0
  %2733 = vmatpush1.msra.mxu0 0.0
  %2734 = vmatprep.subr.mxu0 0.0
  %2735 = vmatpush1.msra.mxu0 0.0
  %2736 = vmatprep.subr.mxu0 0.0
  %2737 = vmatpush1.msra.mxu0 0.0
  %2738 = vmatprep.subr.mxu0 0.0
  %2739 = vmatpush1.msra.mxu0 0.0
  %2740 = vmatprep.subr.mxu0 0.0
  %2741 = vmatpush1.msra.mxu0 0.0
  %2742 = vmatprep.subr.mxu0 0.0
  %2743 = vmatpush1.msra.mxu0 0.0
  %2744 = vmatprep.subr.mxu0 0.0
  %2745 = vmatpush1.msra.mxu0 0.0
  %2746 = vmatprep.subr.mxu0 0.0
  %2747 = vmatpush1.msra.mxu0 0.0
  %2748 = vmatprep.subr.mxu0 0.0
  %2749 = vmatpush1.msra.mxu0 0.0
  %2750 = vmatprep.subr.mxu0 0.0
  %2751 = vmatpush1.msra.mxu0 0.0
  %2752 = vmatprep.subr.mxu0 0.0
  %2753 = vmatpush1.msra.mxu0 0.0
  %2754 = vmatprep.subr.mxu0 0.0
  %2755 = vmatpush1.msra.mxu0 0.0
  %2756 = vmatprep.subr.mxu0 0.0
  %2757 = vmatpush1.msra.mxu0 0.0
  %2758 = vmatprep.subr.mxu0 0.0
  %2759 = vmatpush1.msra.mxu0 0.0
  %2760 = vmatprep.subr.mxu0 0.0
  %2761 = vmatpush1.msra.mxu0 0.0
  %2762 = vmatprep.subr.mxu0 0.0
  %2763 = vmatpush1.msra.mxu0 0.0
  %2764 = vmatprep.subr.mxu0 0.0
  %2765 = vmatpush1.msra.mxu0 0.0
  %2766 = vmatprep.subr.mxu0 0.0
  %2767 = vmatpush1.msra.mxu0 0.0
  %2768 = vmatprep.subr.mxu0 0.0
  %2769 = vmatpush1.msra.mxu0 0.0
  %2770 = vmatprep.subr.mxu0 0.0
  %2771 = vmatpush1.msra.mxu0 0.0
  %2772 = vmatprep.subr.mxu0 0.0
  %2773 = vmatpush1.msra.mxu0 0.0
  %2774 = vmatprep.subr.mxu0 0.0
  %2775 = vmatpush1.msra.mxu0 0.0
  %2776 = vmatprep.subr.mxu0 0.0
  %2777 = vmatpush1.msra.mxu0 0.0
  %2778 = vmatprep.mubr.f32.mxu0 0.0
  %2779 = vmatmul.mubr.f32.gmra.mrb[0].mxu0 %v2712
  %v2780 = vpop.f32.mrb[0].mxu0
  %v2781 = vadd.f32 0.0, %v2780
  %v2782 = vpop.f32.mrb[0].mxu0
  %2783 = vdwg.mxu0
  %v2784 = vmax.f32 %v2781, 0.0
  %s2785 = scalar_lea.vmem %s11, 128
  %v2786 = vld [vmem:[%s2785] sm:$0xff]
  %v2787 = vld [vmem:[%s2785 + $0x8] sm:$0xff]
  %v2788 = vld [vmem:[%s2785 + $0x10] sm:$0xff]
  %v2789 = vld [vmem:[%s2785 + $0x18] sm:$0xff]
  %v2790 = vld [vmem:[%s2785 + $0x20] sm:$0xff]
  %v2791 = vld [vmem:[%s2785 + $0x28] sm:$0xff]
  %v2792 = vld [vmem:[%s2785 + $0x30] sm:$0xff]
  %v2793 = vld [vmem:[%s2785 + $0x38] sm:$0xff]
  %v2794 = vld [vmem:[%s2785 + $0x40] sm:$0xff]
  %v2795 = vld [vmem:[%s2785 + $0x48] sm:$0xff]
  %v2796 = vld [vmem:[%s2785 + $0x50] sm:$0xff]
  %v2797 = vld [vmem:[%s2785 + $0x58] sm:$0xff]
  %v2798 = vld [vmem:[%s2785 + $0x60] sm:$0xff]
  %v2799 = vld [vmem:[%s2785 + $0x68] sm:$0xff]
  %v2800 = vld [vmem:[%s2785 + $0x70] sm:$0xff]
  %v2801 = vld [vmem:[%s2785 + $0x78] sm:$0xff]
  %2802 = vmatprep.subr.mxu0 0.0
  %2803 = vmatpush1.msra.mxu0 %v2786
  %2804 = vmatprep.subr.mxu0 0.0
  %2805 = vmatpush1.msra.mxu0 %v2787
  %2806 = vmatprep.subr.mxu0 0.0
  %2807 = vmatpush1.msra.mxu0 %v2788
  %2808 = vmatprep.subr.mxu0 0.0
  %2809 = vmatpush1.msra.mxu0 %v2789
  %2810 = vmatprep.subr.mxu0 0.0
  %2811 = vmatpush1.msra.mxu0 %v2790
  %2812 = vmatprep.subr.mxu0 0.0
  %2813 = vmatpush1.msra.mxu0 %v2791
  %2814 = vmatprep.subr.mxu0 0.0
  %2815 = vmatpush1.msra.mxu0 %v2792
  %2816 = vmatprep.subr.mxu0 0.0
  %2817 = vmatpush1.msra.mxu0 %v2793
  %2818 = vmatprep.subr.mxu0 0.0
  %2819 = vmatpush1.msra.mxu0 %v2794
  %2820 = vmatprep.subr.mxu0 0.0
  %2821 = vmatpush1.msra.mxu0 %v2795
  %2822 = vmatprep.subr.mxu0 0.0
  %2823 = vmatpush1.msra.mxu0 %v2796
  %2824 = vmatprep.subr.mxu0 0.0
  %2825 = vmatpush1.msra.mxu0 %v2797
  %2826 = vmatprep.subr.mxu0 0.0
  %2827 = vmatpush1.msra.mxu0 %v2798
  %2828 = vmatprep.subr.mxu0 0.0
  %2829 = vmatpush1.msra.mxu0 %v2799
  %2830 = vmatprep.subr.mxu0 0.0
  %2831 = vmatpush1.msra.mxu0 %v2800
  %2832 = vmatprep.subr.mxu0 0.0
  %2833 = vmatpush1.msra.mxu0 %v2801
  %2834 = vmatprep.subr.mxu0 0.0
  %2835 = vmatpush1.msra.mxu0 0.0
  %2836 = vmatprep.subr.mxu0 0.0
  %2837 = vmatpush1.msra.mxu0 0.0
  %2838 = vmatprep.subr.mxu0 0.0
  %2839 = vmatpush1.msra.mxu0 0.0
  %2840 = vmatprep.subr.mxu0 0.0
  %2841 = vmatpush1.msra.mxu0 0.0
  %2842 = vmatprep.subr.mxu0 0.0
  %2843 = vmatpush1.msra.mxu0 0.0
  %2844 = vmatprep.subr.mxu0 0.0
  %2845 = vmatpush1.msra.mxu0 0.0
  %2846 = vmatprep.subr.mxu0 0.0
  %2847 = vmatpush1.msra.mxu0 0.0
  %2848 = vmatprep.subr.mxu0 0.0
  %2849 = vmatpush1.msra.mxu0 0.0
  %2850 = vmatprep.subr.mxu0 0.0
  %2851 = vmatpush1.msra.mxu0 0.0
  %2852 = vmatprep.subr.mxu0 0.0
  %2853 = vmatpush1.msra.mxu0 0.0
  %2854 = vmatprep.subr.mxu0 0.0
  %2855 = vmatpush1.msra.mxu0 0.0
  %2856 = vmatprep.subr.mxu0 0.0
  %2857 = vmatpush1.msra.mxu0 0.0
  %2858 = vmatprep.subr.mxu0 0.0
  %2859 = vmatpush1.msra.mxu0 0.0
  %2860 = vmatprep.subr.mxu0 0.0
  %2861 = vmatpush1.msra.mxu0 0.0
  %2862 = vmatprep.subr.mxu0 0.0
  %2863 = vmatpush1.msra.mxu0 0.0
  %2864 = vmatprep.subr.mxu0 0.0
  %2865 = vmatpush1.msra.mxu0 0.0
  %2866 = vmatprep.mubr.f32.mxu0 0.0
  %2867 = vmatmul.mubr.f32.gmra.mrb[0].mxu0 %v2784
  %v2868 = vpop.f32.mrb[0].mxu0
  %v2869 = vadd.f32 0.0, %v2868
  %v2870 = vpop.f32.mrb[0].mxu0
  %2871 = vdwg.mxu0
  %v2872 = vadd.f32 %v2684, %v2869
  %v2873 = vld [vmem:[%s12] sm:$0x1]
  %v2874 = vmul.f32 %v2872, %v2872
  %v2875 = vsel %vm254, %v2874, 0.0
  %2876 = vadd.xlane.f32.xlu0 %v2875
  %v2877 = vpop.xlane.xlu0 %2876
  %v2878 = vmul.f32 %v2877, %v258
  %v2879 = vadd.f32 %v2878, 1e-06
  %v2880 = vrsqrt.pop %v2879
  %v2881 = vmul.f32 %v2872, %v2880
  %v2883 = vlaneseq
  %v2884 = vshrl.u32 %v2883, 7
  %v2885 = vsub.s32 0, %v2884
  %v2886 = vrot.slane %v2873, %v2885
  %v2888 = vmul.f32 %v2881, %v2886
  %v2889 = vmul.f32 %v2888, 0.125
  %v2890 = vld [vmem:[%s13] sm:$0xff]
  %v2891 = vld [vmem:[%s13 + $0x8] sm:$0xff]
  %v2892 = vld [vmem:[%s13 + $0x10] sm:$0xff]
  %v2893 = vld [vmem:[%s13 + $0x18] sm:$0xff]
  %v2894 = vld [vmem:[%s13 + $0x20] sm:$0xff]
  %v2895 = vld [vmem:[%s13 + $0x28] sm:$0xff]
  %v2896 = vld [vmem:[%s13 + $0x30] sm:$0xff]
  %v2897 = vld [vmem:[%s13 + $0x38] sm:$0xff]
  %v2898 = vld [vmem:[%s13 + $0x40] sm:$0xff]
  %v2899 = vld [vmem:[%s13 + $0x48] sm:$0xff]
  %v2900 = vld [vmem:[%s13 + $0x50] sm:$0xff]
  %v2901 = vld [vmem:[%s13 + $0x58] sm:$0xff]
  %v2902 = vld [vmem:[%s13 + $0x60] sm:$0xff]
  %v2903 = vld [vmem:[%s13 + $0x68] sm:$0xff]
  %v2904 = vld [vmem:[%s13 + $0x70] sm:$0xff]
  %v2905 = vld [vmem:[%s13 + $0x78] sm:$0xff]
  %v2907 = vsel %vm286, %v2889, 0
  %2909 = vmatprep.subr.mxu0 %v2891
  %2910 = vmatpush1.msra.mxu0 %v2890
  %2911 = vmatprep.subr.mxu0 %v2893
  %2912 = vmatpush1.msra.mxu0 %v2892
  %2913 = vmatprep.subr.mxu0 %v2895
  %2914 = vmatpush1.msra.mxu0 %v2894
  %2915 = vmatprep.subr.mxu0 %v2897
  %2916 = vmatpush1.msra.mxu0 %v2896
  %2917 = vmatprep.subr.mxu0 %v2899
  %2918 = vmatpush1.msra.mxu0 %v2898
  %2919 = vmatprep.subr.mxu0 %v2901
  %2920 = vmatpush1.msra.mxu0 %v2900
  %2921 = vmatprep.subr.mxu0 %v2903
  %2922 = vmatpush1.msra.mxu0 %v2902
  %2923 = vmatprep.subr.mxu0 %v2905
  %2924 = vmatpush1.msra.mxu0 %v2904
  %2925 = vmatprep.subr.mxu0 0.0
  %2926 = vmatpush1.msra.mxu0 0.0
  %2927 = vmatprep.subr.mxu0 0.0
  %2928 = vmatpush1.msra.mxu0 0.0
  %2929 = vmatprep.subr.mxu0 0.0
  %2930 = vmatpush1.msra.mxu0 0.0
  %2931 = vmatprep.subr.mxu0 0.0
  %2932 = vmatpush1.msra.mxu0 0.0
  %2933 = vmatprep.subr.mxu0 0.0
  %2934 = vmatpush1.msra.mxu0 0.0
  %2935 = vmatprep.subr.mxu0 0.0
  %2936 = vmatpush1.msra.mxu0 0.0
  %2937 = vmatprep.subr.mxu0 0.0
  %2938 = vmatpush1.msra.mxu0 0.0
  %2939 = vmatprep.subr.mxu0 0.0
  %2940 = vmatpush1.msra.mxu0 0.0
  %2941 = vmatprep.subr.mxu0 0.0
  %2942 = vmatpush1.msra.mxu0 0.0
  %2943 = vmatprep.subr.mxu0 0.0
  %2944 = vmatpush1.msra.mxu0 0.0
  %2945 = vmatprep.subr.mxu0 0.0
  %2946 = vmatpush1.msra.mxu0 0.0
  %2947 = vmatprep.subr.mxu0 0.0
  %2948 = vmatpush1.msra.mxu0 0.0
  %2949 = vmatprep.subr.mxu0 0.0
  %2950 = vmatpush1.msra.mxu0 0.0
  %2951 = vmatprep.subr.mxu0 0.0
  %2952 = vmatpush1.msra.mxu0 0.0
  %2953 = vmatprep.subr.mxu0 0.0
  %2954 = vmatpush1.msra.mxu0 0.0
  %2955 = vmatprep.subr.mxu0 0.0
  %2956 = vmatpush1.msra.mxu0 0.0
  %2957 = vmatprep.subr.mxu0 0.0
  %2958 = vmatpush1.msra.mxu0 0.0
  %2959 = vmatprep.subr.mxu0 0.0
  %2960 = vmatpush1.msra.mxu0 0.0
  %2961 = vmatprep.subr.mxu0 0.0
  %2962 = vmatpush1.msra.mxu0 0.0
  %2963 = vmatprep.subr.mxu0 0.0
  %2964 = vmatpush1.msra.mxu0 0.0
  %2965 = vmatprep.subr.mxu0 0.0
  %2966 = vmatpush1.msra.mxu0 0.0
  %2967 = vmatprep.subr.mxu0 0.0
  %2968 = vmatpush1.msra.mxu0 0.0
  %2969 = vmatprep.subr.mxu0 0.0
  %2970 = vmatpush1.msra.mxu0 0.0
  %2971 = vmatprep.subr.mxu0 0.0
  %2972 = vmatpush1.msra.mxu0 0.0
  %2973 = vmatprep.mubr.f32.mxu0 0.0
  %2974 = vmatmul.mubr.f32.gmra.mrb[0].mxu0 %v2907
  %v2975 = vpop.f32.mrb[0].mxu0
  %v2976 = vadd.f32 0.0, %v2975
  %v2977 = vpop.f32.mrb[0].mxu0
  %v2978 = vadd.f32 0.0, %v2977
  %2979 = vdwg.mxu0
  %v2982 = vcombine.low %v2976, %v2978
  %v2984 = vunpack.c.l.s4 1983009808
  %v2985 = vunpack.c.0.s8 %v2984
  %v2986 = vlaneseq
  %v2987 = vshrl.u32 %v2986, 7
  %v2988 = vsub.s32 %v2985, %v2987
  %v2989 = vrot.slane %v2982, %v2988
  %2991 = vst [vmem:[%s22] sm:$0xf] %v2989
  // Predicated region
  $region90: #{t5_decoder_step.1} parent=0 // pred_check
    _
  $region91: #{t5_decoder_step.1} parent=0 // pred_check_branch
    %2993 = sbr.rel (0) target = $region93
  $region92: #{t5_decoder_step.1} parent=0 // pred_region
    _
  $region93: #{t5_decoder_step.1} parent=0 // pred_fallthru
    _
  // Predicated region
  $region94: #{t5_decoder_step.1} parent=0 // pred_check
    _
  $region95: #{t5_decoder_step.1} parent=0 // pred_check_branch
    %2995 = sbr.rel (0) target = $region97
  $region96: #{t5_decoder_step.1} parent=0 // pred_region
    _
  $region97: #{t5_decoder_step.1} parent=0 // pred_fallthru
    _
  // Predicated region
  $region98: #{t5_decoder_step.1} parent=0 // pred_check
    _
  $region99: #{t5_decoder_step.1} parent=0 // pred_check_branch
    %2997 = sbr.rel (0) target = $region101
  $region100: #{t5_decoder_step.1} parent=0 // pred_region
    _
  $region101: #{t5_decoder_step.1} parent=0 // pred_fallthru
    _
  // Predicated region
  $region102: #{t5_decoder_step.1} parent=0 // pred_check
    _
  $region103: #{t5_decoder_step.1} parent=0 // pred_check_branch
    %2999 = sbr.rel (0) target = $region105
  $region104: #{t5_decoder_step.1} parent=0 // pred_region
    _
  $region105: #{t5_decoder_step.1} parent=0 // pred_fallthru
    _
  // Predicated region
  $region106: #{t5_decoder_step.1} parent=0 // pred_check
    _
  $region107: #{t5_decoder_step.1} parent=0 // pred_check_branch
    %3001 = sbr.rel (0) target = $region109
  $region108: #{t5_decoder_step.1} parent=0 // pred_region
    _
  $region109: #{t5_decoder_step.1} parent=0 // pred_fallthru
    _
  // Predicated region
  $region110: #{t5_decoder_step.1} parent=0 // pred_check
    _
  $region111: #{t5_decoder_step.1} parent=0 // pred_check_branch
    %3003 = sbr.rel (0) target = $region113
  $region112: #{t5_decoder_step.1} parent=0 // pred_region
    _
  $region113: #{t5_decoder_step.1} parent=0 // pred_fallthru
    _
  // Predicated region
  $region114: #{t5_decoder_step.1} parent=0 // pred_check
    _
  $region115: #{t5_decoder_step.1} parent=0 // pred_check_branch
    %3005 = sbr.rel (0) target = $region117
  $region116: #{t5_decoder_step.1} parent=0 // pred_region
    _
  $region117: #{t5_decoder_step.1} parent=0 // pred_fallthru
    _
  // Predicated region
  $region118: #{t5_decoder_step.1} parent=0 // pred_check
    _
  $region119: #{t5_decoder_step.1} parent=0 // pred_check_branch
    %3007 = sbr.rel (0) target = $region121
  $region120: #{t5_decoder_step.1} parent=0 // pred_region
    _
  $region121: #{t5_decoder_step.1} parent=0 // pred_fallthru
    _
  // Predicated region
  $region122: #{t5_decoder_step.1} parent=0 // pred_check
    _
  $region123: #{t5_decoder_step.1} parent=0 // pred_check_branch
    %3009 = sbr.rel (0) target = $region125
  $region124: #{t5_decoder_step.1} parent=0 // pred_region
    _
  $region125: #{t5_decoder_step.1} parent=0 // pred_fallthru
    _
  // Predicated region
  $region126: #{t5_decoder_step.1} parent=0 // pred_check
    _
  $region127: #{t5_decoder_step.1} parent=0 // pred_check_branch
    %3011 = sbr.rel (0) target = $region129
  $region128: #{t5_decoder_step.1} parent=0 // pred_region
    _
  $region129: #{t5_decoder_step.1} parent=0 // pred_fallthru
    _

</llo_original>
